<compile_context>
chip_gen: v7x
topology: tpu7x:2x2x1
jax: 0.10.0
libtpu: 0.0.40
codegen_flags: <defaults>
</compile_context>

<pallas_src>
import functools

import numpy as np
import jax
import jax.numpy as jnp
from jax import lax
from jax.experimental import pallas as pl
from jax.experimental.pallas import tpu as pltpu


# ----------------------------------------------------------------------------
# Fused kernel: upsample + concat + pad + conv1 + relu + conv2 + relu
# ----------------------------------------------------------------------------
def _unet_up_kernel(x1_ref, x2_ref, mup_ref, mask_ref,
                    w1_ref, b1_ref, w2_ref, b2_ref,
                    o_ref, xpad1, xpad2, *, Wp, C1):
    # x1_ref : (1, C1, L)      skip connection, width-padded & flattened NCHW
    # x2_ref : (1, C2, h*w)    deep features, flattened NCHW (half resolution)
    # mup_ref  : (h*w, L)      bilinear-2x upsample fused with interior scatter
    # mask_ref : (1, L)        1.0 on valid columns, 0.0 on width-pad columns
    # w1_ref   : (9, Cout, Cin)  conv1 per-tap weight matrices (Cin = C1 + C2)
    # w2_ref   : (9, Cout, Cout) conv2 per-tap weight matrices
    # b*_ref   : (Cout, 1)
    # o_ref    : (1, Cout, L)  L = H*(W+2)  (lane-dense; pad cols stripped later)
    # xpad1    : VMEM (Cin,  P) zero-padded concat(skip, up(deep)) slab
    # xpad2    : VMEM (Cout, P) zero-padded conv1-output slab
    f32 = jnp.float32
    dn = (((1,), (0,)), ((), ()))            # contract lhs[-1] with rhs[0]
    Cin = xpad1.shape[0]
    Cout = o_ref.shape[1]
    L = o_ref.shape[2]

    # Build the padded "concat" slab on-chip; the concat never exists in HBM.
    xpad1[...] = jnp.zeros_like(xpad1)
    # skip: one contiguous interior store (input already width-padded).
    xpad1[0:C1, Wp + 1:Wp + 1 + L] = x1_ref[0].astype(f32)
    # bilinear 2x upsample (align_corners=True) + scatter, one MXU matmul.
    x2up = lax.dot_general(x2_ref[0], mup_ref[...], dn,
                           preferred_element_type=f32)         # (C2, L)
    xpad1[C1:Cin, Wp:Wp + L] = x2up

    # conv1: 9 flat-shifted taps, full-Cin contraction per tap.
    xp1 = xpad1[...]
    acc = jnp.zeros((Cout, L), f32)
    for t in range(9):
        off = (t // 3) * Wp + (t % 3)
        acc += lax.dot_general(w1_ref[t], xp1[:, off:off + L], dn,
                               preferred_element_type=f32)
    h1 = jnp.maximum(acc + b1_ref[...], 0.0) * mask_ref[...]   # bias,ReLU,mask

    # Re-pad conv1's output on-chip (VMEM) to give conv2 its zero halo.
    xpad2[...] = jnp.zeros_like(xpad2)
    xpad2[:, Wp + 1:Wp + 1 + L] = h1

    # conv2: 9 flat-shifted taps + bias + ReLU, written lane-dense.
    xp2 = xpad2[...]
    acc2 = jnp.zeros((Cout, L), f32)
    for t in range(9):
        off = (t // 3) * Wp + (t % 3)
        acc2 += lax.dot_general(w2_ref[t], xp2[:, off:off + L], dn,
                                preferred_element_type=f32)
    o_ref[0] = jnp.maximum(acc2 + b2_ref[...], 0.0).astype(o_ref.dtype)


# ----------------------------------------------------------------------------
# Compile-time constants (numpy -> baked into the program)
# ----------------------------------------------------------------------------
def _bilinear_matrix(in_size, out_size):
    """(out_size, in_size) align_corners=True linear interpolation matrix."""
    m = np.zeros((out_size, in_size), np.float64)
    if out_size == 1 or in_size == 1:
        m[:, 0] = 1.0
        return m.astype(np.float32)
    src = np.arange(out_size, dtype=np.float64) * (in_size - 1) / (out_size - 1)
    i0 = np.clip(np.floor(src).astype(np.int64), 0, in_size - 1)
    i1 = np.minimum(i0 + 1, in_size - 1)
    frac = src - i0
    m[np.arange(out_size), i0] += 1.0 - frac
    m[np.arange(out_size), i1] += frac
    return m.astype(np.float32)


def _build_constants(H, W, h, w):
    Wp = W + 2
    L = H * Wp
    # destination column inside the length-L interior slab for out pixel (i, j)
    cols = (np.arange(H)[:, None] * Wp + np.arange(W)[None, :] + 1).reshape(-1)

    # bilinear 2x upsample (align_corners=True) fused with the scatter: (h*w, L)
    ry = _bilinear_matrix(h, H)                                  # (H, h)
    rx = _bilinear_matrix(w, W)                                  # (W, w)
    u = np.einsum("oy,px->opyx", ry, rx).reshape(H * W, h * w)   # (H*W, h*w)
    m_up = np.zeros((h * w, L), np.float32)
    m_up[:, cols] = u.T

    # 1.0 on real output columns, 0.0 on the two width-pad columns per row
    mask = (np.arange(L) % Wp < W).astype(np.float32)[None, :]
    return m_up, mask


# ----------------------------------------------------------------------------
# unetUp forward (NCHW in / NCHW out, like the PyTorch module)
# ----------------------------------------------------------------------------
def unet_up_forward(inputs1, inputs2, params):
    """inputs1: (N, C1, H, W); inputs2: (N, C2, H//2, W//2)."""
    N, C1, H, W = inputs1.shape
    _, C2, h, w = inputs2.shape
    assert (H, W) == (2 * h, 2 * w)
    Cin = C1 + C2
    Cout = params["b1"].shape[0]
    Wp = W + 2
    L = H * Wp
    P = (H + 2) * Wp + 2          # +2 so every 3x3 tap window slice fits

    m_up_np, mask_np = _build_constants(H, W, h, w)
    m_up = jnp.asarray(m_up_np)
    mask = jnp.asarray(mask_np)

    # Skip connection: cheap width-only pad + free reshape (no transposes).
    x1w = jnp.pad(inputs1.astype(jnp.float32),
                  ((0, 0), (0, 0), (0, 0), (0, 2))).reshape(N, C1, L)
    x2f = inputs2.reshape(N, C2, h * w).astype(jnp.float32)

    # Per-tap weight matrices (tiny): OIHW -> (9, Cout, Cin).
    w1t = jnp.transpose(params["w1"].astype(jnp.float32), (2, 3, 0, 1))
    w1t = w1t.reshape(9, Cout, Cin)
    w2t = jnp.transpose(params["w2"].astype(jnp.float32), (2, 3, 0, 1))
    w2t = w2t.reshape(9, Cout, Cout)
    b1 = params["b1"].reshape(Cout, 1).astype(jnp.float32)
    b2 = params["b2"].reshape(Cout, 1).astype(jnp.float32)

    kernel = functools.partial(_unet_up_kernel, Wp=Wp, C1=C1)

    flops = 2 * N * L * (C2 * h * w + 9 * Cout * (Cin + Cout))
    bytes_accessed = 4 * (x1w.size + x2f.size + m_up.size + mask.size
                          + w1t.size + w2t.size + b1.size + b2.size
                          + N * Cout * L)

    # TODO(synk): for large UNet decoder resolutions, tile H into halo'd strips
    # (grid=(N, H//strip)) and build the upsample separably so the dense
    # (h*w, L) matrix and the padded slabs stay under v7x's 64 MiB VMEM.
    out_flat = pl.pallas_call(
        kernel,
        out_shape=jax.ShapeDtypeStruct((N, Cout, L), inputs1.dtype),
        grid=(N,),
        in_specs=[
            pl.BlockSpec((1, C1, L), lambda n: (n, 0, 0)),
            pl.BlockSpec((1, C2, h * w), lambda n: (n, 0, 0)),
            pl.BlockSpec((h * w, L), lambda n: (0, 0)),
            pl.BlockSpec((1, L), lambda n: (0, 0)),
            pl.BlockSpec((9, Cout, Cin), lambda n: (0, 0, 0)),
            pl.BlockSpec((Cout, 1), lambda n: (0, 0)),
            pl.BlockSpec((9, Cout, Cout), lambda n: (0, 0, 0)),
            pl.BlockSpec((Cout, 1), lambda n: (0, 0)),
        ],
        out_specs=pl.BlockSpec((1, Cout, L), lambda n: (n, 0, 0)),
        scratch_shapes=[pltpu.VMEM((Cin, P), jnp.float32),
                        pltpu.VMEM((Cout, P), jnp.float32)],
        compiler_params=pltpu.CompilerParams(
            dimension_semantics=("parallel",)),
        cost_estimate=pl.CostEstimate(flops=int(flops), transcendentals=0,
                                      bytes_accessed=int(bytes_accessed)),
    )(x1w, x2f, m_up, mask, w1t, b1, w2t, b2)

    # Strip the two width-pad columns per row; the reshape itself is free.
    out = out_flat.reshape(N, Cout, H, Wp)[:, :, :, :W]
    return out.astype(inputs1.dtype)


def init_params(key, in_size, out_size, dtype=jnp.float32):
    """Weights in PyTorch OIHW layout: (Cout, Cin, 3, 3)."""
    k1, k2, k3, k4 = jax.random.split(key, 4)
    w1 = jax.random.normal(k1, (out_size, in_size, 3, 3), dtype) * 0.1
    b1 = jax.random.normal(k2, (out_size,), dtype) * 0.1
    w2 = jax.random.normal(k3, (out_size, out_size, 3, 3), dtype) * 0.1
    b2 = jax.random.normal(k4, (out_size,), dtype) * 0.1
    return {"w1": w1, "b1": b1, "w2": w2, "b2": b2}


# ----------------------------------------------------------------------------
# Pure-JAX reference (mirrors the PyTorch module) for validation only
# ----------------------------------------------------------------------------
def _ref_upsample_bilinear_2x(x):
    N, C, H, W = x.shape
    Ho, Wo = 2 * H, 2 * W

    def coords(in_size, out_size):
        src = (jnp.arange(out_size, dtype=jnp.float32)
               * (in_size - 1) / (out_size - 1))
        i0 = jnp.clip(jnp.floor(src).astype(jnp.int32), 0, in_size - 1)
        i1 = jnp.minimum(i0 + 1, in_size - 1)
        return i0, i1, src - i0.astype(jnp.float32)

    y0, y1, wy = coords(H, Ho)
    x0, x1, wx = coords(W, Wo)
    top, bot = x[:, :, y0, :], x[:, :, y1, :]
    rows = top * (1 - wy)[None, None, :, None] + bot * wy[None, None, :, None]
    return (rows[:, :, :, x0] * (1 - wx)[None, None, None, :]
            + rows[:, :, :, x1] * wx[None, None, None, :])


def _ref_conv3x3_relu_nchw(x, w_oihw, b):
    y = lax.conv_general_dilated(x, w_oihw, (1, 1), ((1, 1), (1, 1)),
                                 dimension_numbers=("NCHW", "OIHW", "NCHW"))
    return jnp.maximum(y + b[None, :, None, None], 0.0)


if __name__ == "__main__":
    key = jax.random.PRNGKey(0)
    k_in1, k_in2, k_p = jax.random.split(key, 3)

    # Small UNet-decoder-like shapes:
    #   inputs1 (skip):     (N=2, C1=4, H=16, W=16)
    #   inputs2 (deep):     (N=2, C2=8, H=8,  W=8) -> upsampled to 16x16
    #   in_size = 12, out_size = 8
    N, C1, H, W = 2, 4, 16, 16
    C2 = 8
    in_size, out_size = C1 + C2, 8

    inputs1 = jax.random.normal(k_in1, (N, C1, H, W), jnp.float32)
    inputs2 = jax.random.normal(k_in2, (N, C2, H // 2, W // 2), jnp.float32)
    params = init_params(k_p, in_size, out_size)

    out = jax.jit(unet_up_forward)(inputs1, inputs2, params)
    out = jax.block_until_ready(out)
    assert out.shape == (N, out_size, H, W), out.shape

    # Validate against a pure-JAX reference of the PyTorch forward.
    up2 = _ref_upsample_bilinear_2x(inputs2)
    cat = jnp.concatenate([inputs1, up2], axis=1)
    ref = _ref_conv3x3_relu_nchw(cat, params["w1"], params["b1"])
    ref = _ref_conv3x3_relu_nchw(ref, params["w2"], params["b2"])
    err = float(jnp.max(jnp.abs(out - ref)))
    assert jnp.allclose(out, ref, atol=1e-4, rtol=1e-4), err

    print("KERNEL_OK")
</pallas_src>

<mosaic_0001>
module attributes {stable_mosaic.version = 11 : i64} {
  func.func @_unet_up_kernel(%arg0: i32, %arg1: memref<1x4x288xf32, #tpu.memory_space<vmem>>, %arg2: memref<1x8x64xf32, #tpu.memory_space<vmem>>, %arg3: memref<64x288xf32, #tpu.memory_space<vmem>>, %arg4: memref<1x288xf32, #tpu.memory_space<vmem>>, %arg5: memref<9x8x12xf32, #tpu.memory_space<vmem>>, %arg6: memref<8x1xf32, #tpu.memory_space<vmem>>, %arg7: memref<9x8x8xf32, #tpu.memory_space<vmem>>, %arg8: memref<8x1xf32, #tpu.memory_space<vmem>>, %arg9: memref<1x8x288xf32, #tpu.memory_space<vmem>>, %arg10: memref<12x326xf32, #tpu.memory_space<vmem>>, %arg11: memref<8x326xf32, #tpu.memory_space<vmem>>) attributes {dimension_semantics = [#tpu.dimension_semantics<parallel>], iteration_bounds = array<i64: 2>, scalar_prefetch = 0 : i64, scratch_operands = 2 : i64, tpu.core_type = #tpu.core_type<tc>, window_params = [{transform_indices = @transform_0, window_bounds = array<i64: 1, 4, 288>}, {transform_indices = @transform_1, window_bounds = array<i64: 1, 8, 64>}, {pipeline_mode = #tpu.pipeline_mode<synchronous>, transform_indices = @transform_2, window_bounds = array<i64: 64, 288>}, {pipeline_mode = #tpu.pipeline_mode<synchronous>, transform_indices = @transform_3, window_bounds = array<i64: 1, 288>}, {pipeline_mode = #tpu.pipeline_mode<synchronous>, transform_indices = @transform_4, window_bounds = array<i64: 9, 8, 12>}, {pipeline_mode = #tpu.pipeline_mode<synchronous>, transform_indices = @transform_5, window_bounds = array<i64: 8, 1>}, {pipeline_mode = #tpu.pipeline_mode<synchronous>, transform_indices = @transform_6, window_bounds = array<i64: 9, 8, 8>}, {pipeline_mode = #tpu.pipeline_mode<synchronous>, transform_indices = @transform_7, window_bounds = array<i64: 8, 1>}, {transform_indices = @transform_8, window_bounds = array<i64: 1, 8, 288>}]} {
    %cst = arith.constant 0.000000e+00 : f32
    %0 = vector.broadcast %cst : f32 to vector<12x326xf32>
    %c0 = arith.constant 0 : index
    %c0_0 = arith.constant 0 : index
    %1 = vector.load %arg10[%c0, %c0_0] : memref<12x326xf32, #tpu.memory_space<vmem>>, vector<12x326xf32>
    tpu.vector_store %arg10[%c0, %c0_0], %0 {strides = array<i32>} : memref<12x326xf32, #tpu.memory_space<vmem>>, vector<12x326xf32>,
    %c0_1 = arith.constant 0 : index
    %c0_2 = arith.constant 0 : index
    %c0_3 = arith.constant 0 : index
    %2 = vector.load %arg1[%c0_1, %c0_2, %c0_3] : memref<1x4x288xf32, #tpu.memory_space<vmem>>, vector<1x4x288xf32>
    %3 = vector.shape_cast %2 : vector<1x4x288xf32> to vector<4x288xf32>
    %c0_4 = arith.constant 0 : index
    %c19 = arith.constant 19 : index
    %4 = vector.load %arg10[%c0_4, %c19] : memref<12x326xf32, #tpu.memory_space<vmem>>, vector<4x288xf32>
    tpu.vector_store %arg10[%c0_4, %c19], %3 {strides = array<i32>} : memref<12x326xf32, #tpu.memory_space<vmem>>, vector<4x288xf32>,
    %c0_5 = arith.constant 0 : index
    %c0_6 = arith.constant 0 : index
    %c0_7 = arith.constant 0 : index
    %5 = vector.load %arg2[%c0_5, %c0_6, %c0_7] : memref<1x8x64xf32, #tpu.memory_space<vmem>>, vector<1x8x64xf32>
    %6 = vector.shape_cast %5 : vector<1x8x64xf32> to vector<8x64xf32>
    %c0_8 = arith.constant 0 : index
    %c0_9 = arith.constant 0 : index
    %7 = vector.load %arg3[%c0_8, %c0_9] : memref<64x288xf32, #tpu.memory_space<vmem>>, vector<64x288xf32>
    %cst_10 = arith.constant dense<0.000000e+00> : vector<8x288xf32>
    %8 = tpu.matmul %6, %7, %cst_10 {dimension_numbers = #tpu.dot_dimension_numbers<[1], [0], [0], [1], [0, 0, 1, 1], [], []>} : vector<8x64xf32>, vector<64x288xf32>, vector<8x288xf32> -> vector<8x288xf32>
    %c4 = arith.constant 4 : index
    %c18 = arith.constant 18 : index
    %9 = vector.load %arg10[%c4, %c18] : memref<12x326xf32, #tpu.memory_space<vmem>>, vector<8x288xf32>
    tpu.vector_store %arg10[%c4, %c18], %8 {strides = array<i32>} : memref<12x326xf32, #tpu.memory_space<vmem>>, vector<8x288xf32>,
    %c0_11 = arith.constant 0 : index
    %c0_12 = arith.constant 0 : index
    %10 = vector.load %arg10[%c0_11, %c0_12] : memref<12x326xf32, #tpu.memory_space<vmem>>, vector<12x326xf32>
    %cst_13 = arith.constant 0.000000e+00 : f32
    %11 = vector.broadcast %cst_13 : f32 to vector<8x288xf32>
    %c0_14 = arith.constant 0 : index
    %c0_15 = arith.constant 0 : index
    %c0_16 = arith.constant 0 : index
    %12 = vector.load %arg5[%c0_14, %c0_15, %c0_16] : memref<9x8x12xf32, #tpu.memory_space<vmem>>, vector<1x8x12xf32>
    %13 = vector.shape_cast %12 : vector<1x8x12xf32> to vector<8x12xf32>
    %14 = vector.extract_strided_slice %10 {offsets = [0, 0], sizes = [12, 288], strides = [1, 1]} : vector<12x326xf32> to vector<12x288xf32>
    %cst_17 = arith.constant dense<0.000000e+00> : vector<8x288xf32>
    %15 = tpu.matmul %13, %14, %cst_17 {dimension_numbers = #tpu.dot_dimension_numbers<[1], [0], [0], [1], [0, 0, 1, 1], [], []>} : vector<8x12xf32>, vector<12x288xf32>, vector<8x288xf32> -> vector<8x288xf32>
    %16 = arith.addf %11, %15 : vector<8x288xf32>
    %c1 = arith.constant 1 : index
    %c0_18 = arith.constant 0 : index
    %c0_19 = arith.constant 0 : index
    %17 = vector.load %arg5[%c1, %c0_18, %c0_19] : memref<9x8x12xf32, #tpu.memory_space<vmem>>, vector<1x8x12xf32>
    %18 = vector.shape_cast %17 : vector<1x8x12xf32> to vector<8x12xf32>
    %19 = vector.extract_strided_slice %10 {offsets = [0, 1], sizes = [12, 288], strides = [1, 1]} : vector<12x326xf32> to vector<12x288xf32>
    %cst_20 = arith.constant dense<0.000000e+00> : vector<8x288xf32>
    %20 = tpu.matmul %18, %19, %cst_20 {dimension_numbers = #tpu.dot_dimension_numbers<[1], [0], [0], [1], [0, 0, 1, 1], [], []>} : vector<8x12xf32>, vector<12x288xf32>, vector<8x288xf32> -> vector<8x288xf32>
    %21 = arith.addf %16, %20 : vector<8x288xf32>
    %c2 = arith.constant 2 : index
    %c0_21 = arith.constant 0 : index
    %c0_22 = arith.constant 0 : index
    %22 = vector.load %arg5[%c2, %c0_21, %c0_22] : memref<9x8x12xf32, #tpu.memory_space<vmem>>, vector<1x8x12xf32>
    %23 = vector.shape_cast %22 : vector<1x8x12xf32> to vector<8x12xf32>
    %24 = vector.extract_strided_slice %10 {offsets = [0, 2], sizes = [12, 288], strides = [1, 1]} : vector<12x326xf32> to vector<12x288xf32>
    %cst_23 = arith.constant dense<0.000000e+00> : vector<8x288xf32>
    %25 = tpu.matmul %23, %24, %cst_23 {dimension_numbers = #tpu.dot_dimension_numbers<[1], [0], [0], [1], [0, 0, 1, 1], [], []>} : vector<8x12xf32>, vector<12x288xf32>, vector<8x288xf32> -> vector<8x288xf32>
    %26 = arith.addf %21, %25 : vector<8x288xf32>
    %c3 = arith.constant 3 : index
    %c0_24 = arith.constant 0 : index
    %c0_25 = arith.constant 0 : index
    %27 = vector.load %arg5[%c3, %c0_24, %c0_25] : memref<9x8x12xf32, #tpu.memory_space<vmem>>, vector<1x8x12xf32>
    %28 = vector.shape_cast %27 : vector<1x8x12xf32> to vector<8x12xf32>
    %29 = vector.extract_strided_slice %10 {offsets = [0, 18], sizes = [12, 288], strides = [1, 1]} : vector<12x326xf32> to vector<12x288xf32>
    %cst_26 = arith.constant dense<0.000000e+00> : vector<8x288xf32>
    %30 = tpu.matmul %28, %29, %cst_26 {dimension_numbers = #tpu.dot_dimension_numbers<[1], [0], [0], [1], [0, 0, 1, 1], [], []>} : vector<8x12xf32>, vector<12x288xf32>, vector<8x288xf32> -> vector<8x288xf32>
    %31 = arith.addf %26, %30 : vector<8x288xf32>
    %c4_27 = arith.constant 4 : index
    %c0_28 = arith.constant 0 : index
    %c0_29 = arith.constant 0 : index
    %32 = vector.load %arg5[%c4_27, %c0_28, %c0_29] : memref<9x8x12xf32, #tpu.memory_space<vmem>>, vector<1x8x12xf32>
    %33 = vector.shape_cast %32 : vector<1x8x12xf32> to vector<8x12xf32>
    %34 = vector.extract_strided_slice %10 {offsets = [0, 19], sizes = [12, 288], strides = [1, 1]} : vector<12x326xf32> to vector<12x288xf32>
    %cst_30 = arith.constant dense<0.000000e+00> : vector<8x288xf32>
    %35 = tpu.matmul %33, %34, %cst_30 {dimension_numbers = #tpu.dot_dimension_numbers<[1], [0], [0], [1], [0, 0, 1, 1], [], []>} : vector<8x12xf32>, vector<12x288xf32>, vector<8x288xf32> -> vector<8x288xf32>
    %36 = arith.addf %31, %35 : vector<8x288xf32>
    %c5 = arith.constant 5 : index
    %c0_31 = arith.constant 0 : index
    %c0_32 = arith.constant 0 : index
    %37 = vector.load %arg5[%c5, %c0_31, %c0_32] : memref<9x8x12xf32, #tpu.memory_space<vmem>>, vector<1x8x12xf32>
    %38 = vector.shape_cast %37 : vector<1x8x12xf32> to vector<8x12xf32>
    %39 = vector.extract_strided_slice %10 {offsets = [0, 20], sizes = [12, 288], strides = [1, 1]} : vector<12x326xf32> to vector<12x288xf32>
    %cst_33 = arith.constant dense<0.000000e+00> : vector<8x288xf32>
    %40 = tpu.matmul %38, %39, %cst_33 {dimension_numbers = #tpu.dot_dimension_numbers<[1], [0], [0], [1], [0, 0, 1, 1], [], []>} : vector<8x12xf32>, vector<12x288xf32>, vector<8x288xf32> -> vector<8x288xf32>
    %41 = arith.addf %36, %40 : vector<8x288xf32>
    %c6 = arith.constant 6 : index
    %c0_34 = arith.constant 0 : index
    %c0_35 = arith.constant 0 : index
    %42 = vector.load %arg5[%c6, %c0_34, %c0_35] : memref<9x8x12xf32, #tpu.memory_space<vmem>>, vector<1x8x12xf32>
    %43 = vector.shape_cast %42 : vector<1x8x12xf32> to vector<8x12xf32>
    %44 = vector.extract_strided_slice %10 {offsets = [0, 36], sizes = [12, 288], strides = [1, 1]} : vector<12x326xf32> to vector<12x288xf32>
    %cst_36 = arith.constant dense<0.000000e+00> : vector<8x288xf32>
    %45 = tpu.matmul %43, %44, %cst_36 {dimension_numbers = #tpu.dot_dimension_numbers<[1], [0], [0], [1], [0, 0, 1, 1], [], []>} : vector<8x12xf32>, vector<12x288xf32>, vector<8x288xf32> -> vector<8x288xf32>
    %46 = arith.addf %41, %45 : vector<8x288xf32>
    %c7 = arith.constant 7 : index
    %c0_37 = arith.constant 0 : index
    %c0_38 = arith.constant 0 : index
    %47 = vector.load %arg5[%c7, %c0_37, %c0_38] : memref<9x8x12xf32, #tpu.memory_space<vmem>>, vector<1x8x12xf32>
    %48 = vector.shape_cast %47 : vector<1x8x12xf32> to vector<8x12xf32>
    %49 = vector.extract_strided_slice %10 {offsets = [0, 37], sizes = [12, 288], strides = [1, 1]} : vector<12x326xf32> to vector<12x288xf32>
    %cst_39 = arith.constant dense<0.000000e+00> : vector<8x288xf32>
    %50 = tpu.matmul %48, %49, %cst_39 {dimension_numbers = #tpu.dot_dimension_numbers<[1], [0], [0], [1], [0, 0, 1, 1], [], []>} : vector<8x12xf32>, vector<12x288xf32>, vector<8x288xf32> -> vector<8x288xf32>
    %51 = arith.addf %46, %50 : vector<8x288xf32>
    %c8 = arith.constant 8 : index
    %c0_40 = arith.constant 0 : index
    %c0_41 = arith.constant 0 : index
    %52 = vector.load %arg5[%c8, %c0_40, %c0_41] : memref<9x8x12xf32, #tpu.memory_space<vmem>>, vector<1x8x12xf32>
    %53 = vector.shape_cast %52 : vector<1x8x12xf32> to vector<8x12xf32>
    %54 = vector.extract_strided_slice %10 {offsets = [0, 38], sizes = [12, 288], strides = [1, 1]} : vector<12x326xf32> to vector<12x288xf32>
    %cst_42 = arith.constant dense<0.000000e+00> : vector<8x288xf32>
    %55 = tpu.matmul %53, %54, %cst_42 {dimension_numbers = #tpu.dot_dimension_numbers<[1], [0], [0], [1], [0, 0, 1, 1], [], []>} : vector<8x12xf32>, vector<12x288xf32>, vector<8x288xf32> -> vector<8x288xf32>
    %56 = arith.addf %51, %55 : vector<8x288xf32>
    %c0_43 = arith.constant 0 : index
    %c0_44 = arith.constant 0 : index
    %57 = vector.load %arg6[%c0_43, %c0_44] : memref<8x1xf32, #tpu.memory_space<vmem>>, vector<8x1xf32>
    %58 = vector.broadcast %57 : vector<8x1xf32> to vector<8x288xf32>
    %59 = arith.addf %56, %58 : vector<8x288xf32>
    %cst_45 = arith.constant 0.000000e+00 : f32
    %60 = vector.broadcast %cst_45 : f32 to vector<8x288xf32>
    %61 = arith.maximumf %59, %60 : vector<8x288xf32>
    %c0_46 = arith.constant 0 : index
    %c0_47 = arith.constant 0 : index
    %62 = vector.load %arg4[%c0_46, %c0_47] : memref<1x288xf32, #tpu.memory_space<vmem>>, vector<1x288xf32>
    %63 = vector.broadcast %62 : vector<1x288xf32> to vector<8x288xf32>
    %64 = arith.mulf %61, %63 : vector<8x288xf32>
    %cst_48 = arith.constant 0.000000e+00 : f32
    %65 = vector.broadcast %cst_48 : f32 to vector<8x326xf32>
    %c0_49 = arith.constant 0 : index
    %c0_50 = arith.constant 0 : index
    %66 = vector.load %arg11[%c0_49, %c0_50] : memref<8x326xf32, #tpu.memory_space<vmem>>, vector<8x326xf32>
    tpu.vector_store %arg11[%c0_49, %c0_50], %65 {strides = array<i32>} : memref<8x326xf32, #tpu.memory_space<vmem>>, vector<8x326xf32>,
    %c0_51 = arith.constant 0 : index
    %c19_52 = arith.constant 19 : index
    %67 = vector.load %arg11[%c0_51, %c19_52] : memref<8x326xf32, #tpu.memory_space<vmem>>, vector<8x288xf32>
    tpu.vector_store %arg11[%c0_51, %c19_52], %64 {strides = array<i32>} : memref<8x326xf32, #tpu.memory_space<vmem>>, vector<8x288xf32>,
    %c0_53 = arith.constant 0 : index
    %c0_54 = arith.constant 0 : index
    %68 = vector.load %arg11[%c0_53, %c0_54] : memref<8x326xf32, #tpu.memory_space<vmem>>, vector<8x326xf32>
    %cst_55 = arith.constant 0.000000e+00 : f32
    %69 = vector.broadcast %cst_55 : f32 to vector<8x288xf32>
    %c0_56 = arith.constant 0 : index
    %c0_57 = arith.constant 0 : index
    %c0_58 = arith.constant 0 : index
    %70 = vector.load %arg7[%c0_56, %c0_57, %c0_58] : memref<9x8x8xf32, #tpu.memory_space<vmem>>, vector<1x8x8xf32>
    %71 = vector.shape_cast %70 : vector<1x8x8xf32> to vector<8x8xf32>
    %72 = vector.extract_strided_slice %68 {offsets = [0, 0], sizes = [8, 288], strides = [1, 1]} : vector<8x326xf32> to vector<8x288xf32>
    %cst_59 = arith.constant dense<0.000000e+00> : vector<8x288xf32>
    %73 = tpu.matmul %71, %72, %cst_59 {dimension_numbers = #tpu.dot_dimension_numbers<[1], [0], [0], [1], [0, 0, 1, 1], [], []>} : vector<8x8xf32>, vector<8x288xf32>, vector<8x288xf32> -> vector<8x288xf32>
    %74 = arith.addf %69, %73 : vector<8x288xf32>
    %c1_60 = arith.constant 1 : index
    %c0_61 = arith.constant 0 : index
    %c0_62 = arith.constant 0 : index
    %75 = vector.load %arg7[%c1_60, %c0_61, %c0_62] : memref<9x8x8xf32, #tpu.memory_space<vmem>>, vector<1x8x8xf32>
    %76 = vector.shape_cast %75 : vector<1x8x8xf32> to vector<8x8xf32>
    %77 = vector.extract_strided_slice %68 {offsets = [0, 1], sizes = [8, 288], strides = [1, 1]} : vector<8x326xf32> to vector<8x288xf32>
    %cst_63 = arith.constant dense<0.000000e+00> : vector<8x288xf32>
    %78 = tpu.matmul %76, %77, %cst_63 {dimension_numbers = #tpu.dot_dimension_numbers<[1], [0], [0], [1], [0, 0, 1, 1], [], []>} : vector<8x8xf32>, vector<8x288xf32>, vector<8x288xf32> -> vector<8x288xf32>
    %79 = arith.addf %74, %78 : vector<8x288xf32>
    %c2_64 = arith.constant 2 : index
    %c0_65 = arith.constant 0 : index
    %c0_66 = arith.constant 0 : index
    %80 = vector.load %arg7[%c2_64, %c0_65, %c0_66] : memref<9x8x8xf32, #tpu.memory_space<vmem>>, vector<1x8x8xf32>
    %81 = vector.shape_cast %80 : vector<1x8x8xf32> to vector<8x8xf32>
    %82 = vector.extract_strided_slice %68 {offsets = [0, 2], sizes = [8, 288], strides = [1, 1]} : vector<8x326xf32> to vector<8x288xf32>
    %cst_67 = arith.constant dense<0.000000e+00> : vector<8x288xf32>
    %83 = tpu.matmul %81, %82, %cst_67 {dimension_numbers = #tpu.dot_dimension_numbers<[1], [0], [0], [1], [0, 0, 1, 1], [], []>} : vector<8x8xf32>, vector<8x288xf32>, vector<8x288xf32> -> vector<8x288xf32>
    %84 = arith.addf %79, %83 : vector<8x288xf32>
    %c3_68 = arith.constant 3 : index
    %c0_69 = arith.constant 0 : index
    %c0_70 = arith.constant 0 : index
    %85 = vector.load %arg7[%c3_68, %c0_69, %c0_70] : memref<9x8x8xf32, #tpu.memory_space<vmem>>, vector<1x8x8xf32>
    %86 = vector.shape_cast %85 : vector<1x8x8xf32> to vector<8x8xf32>
    %87 = vector.extract_strided_slice %68 {offsets = [0, 18], sizes = [8, 288], strides = [1, 1]} : vector<8x326xf32> to vector<8x288xf32>
    %cst_71 = arith.constant dense<0.000000e+00> : vector<8x288xf32>
    %88 = tpu.matmul %86, %87, %cst_71 {dimension_numbers = #tpu.dot_dimension_numbers<[1], [0], [0], [1], [0, 0, 1, 1], [], []>} : vector<8x8xf32>, vector<8x288xf32>, vector<8x288xf32> -> vector<8x288xf32>
    %89 = arith.addf %84, %88 : vector<8x288xf32>
    %c4_72 = arith.constant 4 : index
    %c0_73 = arith.constant 0 : index
    %c0_74 = arith.constant 0 : index
    %90 = vector.load %arg7[%c4_72, %c0_73, %c0_74] : memref<9x8x8xf32, #tpu.memory_space<vmem>>, vector<1x8x8xf32>
    %91 = vector.shape_cast %90 : vector<1x8x8xf32> to vector<8x8xf32>
    %92 = vector.extract_strided_slice %68 {offsets = [0, 19], sizes = [8, 288], strides = [1, 1]} : vector<8x326xf32> to vector<8x288xf32>
    %cst_75 = arith.constant dense<0.000000e+00> : vector<8x288xf32>
    %93 = tpu.matmul %91, %92, %cst_75 {dimension_numbers = #tpu.dot_dimension_numbers<[1], [0], [0], [1], [0, 0, 1, 1], [], []>} : vector<8x8xf32>, vector<8x288xf32>, vector<8x288xf32> -> vector<8x288xf32>
    %94 = arith.addf %89, %93 : vector<8x288xf32>
    %c5_76 = arith.constant 5 : index
    %c0_77 = arith.constant 0 : index
    %c0_78 = arith.constant 0 : index
    %95 = vector.load %arg7[%c5_76, %c0_77, %c0_78] : memref<9x8x8xf32, #tpu.memory_space<vmem>>, vector<1x8x8xf32>
    %96 = vector.shape_cast %95 : vector<1x8x8xf32> to vector<8x8xf32>
    %97 = vector.extract_strided_slice %68 {offsets = [0, 20], sizes = [8, 288], strides = [1, 1]} : vector<8x326xf32> to vector<8x288xf32>
    %cst_79 = arith.constant dense<0.000000e+00> : vector<8x288xf32>
    %98 = tpu.matmul %96, %97, %cst_79 {dimension_numbers = #tpu.dot_dimension_numbers<[1], [0], [0], [1], [0, 0, 1, 1], [], []>} : vector<8x8xf32>, vector<8x288xf32>, vector<8x288xf32> -> vector<8x288xf32>
    %99 = arith.addf %94, %98 : vector<8x288xf32>
    %c6_80 = arith.constant 6 : index
    %c0_81 = arith.constant 0 : index
    %c0_82 = arith.constant 0 : index
    %100 = vector.load %arg7[%c6_80, %c0_81, %c0_82] : memref<9x8x8xf32, #tpu.memory_space<vmem>>, vector<1x8x8xf32>
    %101 = vector.shape_cast %100 : vector<1x8x8xf32> to vector<8x8xf32>
    %102 = vector.extract_strided_slice %68 {offsets = [0, 36], sizes = [8, 288], strides = [1, 1]} : vector<8x326xf32> to vector<8x288xf32>
    %cst_83 = arith.constant dense<0.000000e+00> : vector<8x288xf32>
    %103 = tpu.matmul %101, %102, %cst_83 {dimension_numbers = #tpu.dot_dimension_numbers<[1], [0], [0], [1], [0, 0, 1, 1], [], []>} : vector<8x8xf32>, vector<8x288xf32>, vector<8x288xf32> -> vector<8x288xf32>
    %104 = arith.addf %99, %103 : vector<8x288xf32>
    %c7_84 = arith.constant 7 : index
    %c0_85 = arith.constant 0 : index
    %c0_86 = arith.constant 0 : index
    %105 = vector.load %arg7[%c7_84, %c0_85, %c0_86] : memref<9x8x8xf32, #tpu.memory_space<vmem>>, vector<1x8x8xf32>
    %106 = vector.shape_cast %105 : vector<1x8x8xf32> to vector<8x8xf32>
    %107 = vector.extract_strided_slice %68 {offsets = [0, 37], sizes = [8, 288], strides = [1, 1]} : vector<8x326xf32> to vector<8x288xf32>
    %cst_87 = arith.constant dense<0.000000e+00> : vector<8x288xf32>
    %108 = tpu.matmul %106, %107, %cst_87 {dimension_numbers = #tpu.dot_dimension_numbers<[1], [0], [0], [1], [0, 0, 1, 1], [], []>} : vector<8x8xf32>, vector<8x288xf32>, vector<8x288xf32> -> vector<8x288xf32>
    %109 = arith.addf %104, %108 : vector<8x288xf32>
    %c8_88 = arith.constant 8 : index
    %c0_89 = arith.constant 0 : index
    %c0_90 = arith.constant 0 : index
    %110 = vector.load %arg7[%c8_88, %c0_89, %c0_90] : memref<9x8x8xf32, #tpu.memory_space<vmem>>, vector<1x8x8xf32>
    %111 = vector.shape_cast %110 : vector<1x8x8xf32> to vector<8x8xf32>
    %112 = vector.extract_strided_slice %68 {offsets = [0, 38], sizes = [8, 288], strides = [1, 1]} : vector<8x326xf32> to vector<8x288xf32>
    %cst_91 = arith.constant dense<0.000000e+00> : vector<8x288xf32>
    %113 = tpu.matmul %111, %112, %cst_91 {dimension_numbers = #tpu.dot_dimension_numbers<[1], [0], [0], [1], [0, 0, 1, 1], [], []>} : vector<8x8xf32>, vector<8x288xf32>, vector<8x288xf32> -> vector<8x288xf32>
    %114 = arith.addf %109, %113 : vector<8x288xf32>
    %c0_92 = arith.constant 0 : index
    %c0_93 = arith.constant 0 : index
    %115 = vector.load %arg8[%c0_92, %c0_93] : memref<8x1xf32, #tpu.memory_space<vmem>>, vector<8x1xf32>
    %116 = vector.broadcast %115 : vector<8x1xf32> to vector<8x288xf32>
    %117 = arith.addf %114, %116 : vector<8x288xf32>
    %cst_94 = arith.constant 0.000000e+00 : f32
    %118 = vector.broadcast %cst_94 : f32 to vector<8x288xf32>
    %119 = arith.maximumf %117, %118 : vector<8x288xf32>
    %c0_95 = arith.constant 0 : index
    %c0_96 = arith.constant 0 : index
    %c0_97 = arith.constant 0 : index
    %120 = vector.load %arg9[%c0_95, %c0_96, %c0_97] : memref<1x8x288xf32, #tpu.memory_space<vmem>>, vector<1x8x288xf32>
    %121 = vector.shape_cast %120 : vector<1x8x288xf32> to vector<8x288xf32>
    %122 = vector.shape_cast %119 : vector<8x288xf32> to vector<1x8x288xf32>
    tpu.vector_store %arg9[%c0_95, %c0_96, %c0_97], %122 {strides = array<i32>} : memref<1x8x288xf32, #tpu.memory_space<vmem>>, vector<1x8x288xf32>,
    return
  }
  func.func @transform_0(%arg0: i32) -> (i32, i32, i32) {
    %c0_i32 = arith.constant 0 : i32
    %c0_i32_0 = arith.constant 0 : i32
    %c0_i32_1 = arith.constant 0 : i32
    return %arg0, %c0_i32, %c0_i32_0 : i32, i32, i32
  }
  func.func @transform_1(%arg0: i32) -> (i32, i32, i32) {
    %c0_i32 = arith.constant 0 : i32
    %c0_i32_0 = arith.constant 0 : i32
    %c0_i32_1 = arith.constant 0 : i32
    return %arg0, %c0_i32, %c0_i32_0 : i32, i32, i32
  }
  func.func @transform_2(%arg0: i32) -> (i32, i32) {
    %c0_i32 = arith.constant 0 : i32
    %c0_i32_0 = arith.constant 0 : i32
    %c0_i32_1 = arith.constant 0 : i32
    return %c0_i32, %c0_i32_0 : i32, i32
  }
  func.func @transform_3(%arg0: i32) -> (i32, i32) {
    %c0_i32 = arith.constant 0 : i32
    %c0_i32_0 = arith.constant 0 : i32
    %c0_i32_1 = arith.constant 0 : i32
    return %c0_i32, %c0_i32_0 : i32, i32
  }
  func.func @transform_4(%arg0: i32) -> (i32, i32, i32) {
    %c0_i32 = arith.constant 0 : i32
    %c0_i32_0 = arith.constant 0 : i32
    %c0_i32_1 = arith.constant 0 : i32
    %c0_i32_2 = arith.constant 0 : i32
    return %c0_i32, %c0_i32_0, %c0_i32_1 : i32, i32, i32
  }
  func.func @transform_5(%arg0: i32) -> (i32, i32) {
    %c0_i32 = arith.constant 0 : i32
    %c0_i32_0 = arith.constant 0 : i32
    %c0_i32_1 = arith.constant 0 : i32
    return %c0_i32, %c0_i32_0 : i32, i32
  }
  func.func @transform_6(%arg0: i32) -> (i32, i32, i32) {
    %c0_i32 = arith.constant 0 : i32
    %c0_i32_0 = arith.constant 0 : i32
    %c0_i32_1 = arith.constant 0 : i32
    %c0_i32_2 = arith.constant 0 : i32
    return %c0_i32, %c0_i32_0, %c0_i32_1 : i32, i32, i32
  }
  func.func @transform_7(%arg0: i32) -> (i32, i32) {
    %c0_i32 = arith.constant 0 : i32
    %c0_i32_0 = arith.constant 0 : i32
    %c0_i32_1 = arith.constant 0 : i32
    return %c0_i32, %c0_i32_0 : i32, i32
  }
  func.func @transform_8(%arg0: i32) -> (i32, i32, i32) {
    %c0_i32 = arith.constant 0 : i32
    %c0_i32_0 = arith.constant 0 : i32
    %c0_i32_1 = arith.constant 0 : i32
    return %arg0, %c0_i32, %c0_i32_0 : i32, i32, i32
  }
}

</mosaic_0001>

<llo_original>
// kernel: unet_up_forward.1
$region0: #{unet_up_forward.1}
  #allocation0 [shape = 'u32[]', space=smem, size = 0x4, offset = 0x4, fixed_abs, tag = 'smem constant byte address 0x4 - core index']
  #allocation1 [shape = 'u32[144,128]{1,0:T(1,128)}', space=vmem, size = 0x12000, scoped, tag = 'internal scratch']
  #allocation2 [shape = 'f32[12,326]{1,0:T(8,128)}', space=vmem, size = 0x6000, scoped, tag = 'scratch operand']
  #allocation3 [shape = 'f32[8,326]{1,0:T(8,128)}', space=vmem, size = 0x3000, scoped, tag = 'scratch operand']
  %s0 = inlined_call_operand.vmem [shape: f32[2,4,288], index: 0, kind: input, shape index: {}]
  %s1 = inlined_call_operand.vmem [shape: f32[2,8,64], index: 1, kind: input, shape index: {}]
  %s2 = inlined_call_operand.vmem [shape: f32[64,288], index: 2, kind: input, shape index: {}]
  %s3 = inlined_call_operand.vmem [shape: f32[1,288], index: 3, kind: input, shape index: {}]
  %s4 = inlined_call_operand.vmem [shape: f32[9,8,12], index: 4, kind: input, shape index: {}]
  %s5 = inlined_call_operand.vmem [shape: f32[8,1], index: 5, kind: input, shape index: {}]
  %s6 = inlined_call_operand.vmem [shape: f32[9,8,8], index: 6, kind: input, shape index: {}]
  %s7 = inlined_call_operand.vmem [shape: f32[8,1], index: 7, kind: input, shape index: {}]
  %s8 = inlined_call_operand.vmem [shape: f32[2,8,288], index: 8, kind: output, shape index: {}]
  %s9 = sld [smem:[#allocation0]]
  $region65: #{unet_up_forward.1} parent=0
    _
  %s11 = ssub.s32 1, %s9
  %s12 = scalar_select 0, %s11, %s9
  loop: start=0, step=1, limit=4
  $region2: #{unet_up_forward.1} parent=0 // loop_pre_header
    _
  $region3: #{unet_up_forward.1} parent=0 // loop_header
    %s14 = sphi 0, %s18
    %p15 = scmp.ge.s32.totalorder %s14, 4
    %s24 = sphi 0, %s26
    %s27 = sphi 0, %s24
    %s28 = sphi 0, %s27
    %s44 = sphi 0, %s28
    %s50 = sphi 0, %s52
    %s53 = sphi 0, %s50
    %s54 = sphi 0, %s53
    %s70 = sphi 0, %s54
    %s74 = sphi 0, %s74
    %s76 = sphi 0, %s74
    %s77 = sphi 0, %s76
    %s91 = sphi 0, %s77
    %s95 = sphi 0, %s95
    %s97 = sphi 0, %s95
    %s98 = sphi 0, %s97
    %s112 = sphi 0, %s98
    %s116 = sphi 0, %s116
    %s118 = sphi 0, %s116
    %s119 = sphi 0, %s118
    %s133 = sphi 0, %s119
    %s137 = sphi 0, %s137
    %s139 = sphi 0, %s137
    %s140 = sphi 0, %s139
    %s154 = sphi 0, %s140
    %s158 = sphi 0, %s158
    %s160 = sphi 0, %s158
    %s161 = sphi 0, %s160
    %s175 = sphi 0, %s161
    %s179 = sphi 0, %s179
    %s181 = sphi 0, %s179
    %s182 = sphi 0, %s181
    %s196 = sphi 0, %s182
    %s202 = sphi 0, %s204
    %s205 = sphi 0, %s202
    %s206 = sphi 0, %s205
    %s222 = sphi 0, %s206
  $region4: #{unet_up_forward.1} parent=0 // loop_header_branch
    %17 = sbr.rel (%p15) target = $region8
  $region5: #{unet_up_forward.1} parent=0 // loop_body
    %s19 = ssub.s32 %s14, 1
    %s20 = ssub.s32 %s14, 2
    %s21 = sadd.s32 %s14, 1
    %s22 = ssub.s32 %s14, %s21
    %p23 = scmp.eq.s32.totalorder %s22, 0
    %s25 = sadd.s32 %s24, 1
    %s26 = scalar_select %p23, %s24, %s25
    %p29 = pneg %p23
    %p30 = scmp.eq.s32.totalorder %s14, 1
    %p31 = por %p29, %p30
    %p32 = scmp.ne.s32.totalorder %s24, %s27
    %p33 = scmp.eq.s32.totalorder %s14, 0
    %p34 = por %p32, %p33
    %p35 = scmp.ne.s32.totalorder %s24, %s27
    %p36 = scmp.eq.s32.totalorder %s19, 1
    %p37 = por %p35, %p36
    %p38 = scmp.ne.s32.totalorder %s27, %s28
    %p39 = scmp.eq.s32.totalorder %s19, 0
    %p40 = por %p38, %p39
    %p41 = scmp.ne.s32.totalorder %s27, %s28
    %p42 = scmp.eq.s32.totalorder %s20, 1
    %p43 = por %p41, %p42
    %p45 = scmp.ne.s32.totalorder %s28, %s44
    %p46 = scmp.eq.s32.totalorder %s20, 0
    %p47 = por %p45, %p46
    %s48 = ssub.s32 %s14, %s21
    %p49 = scmp.eq.s32.totalorder %s48, 0
    %s51 = sadd.s32 %s50, 1
    %s52 = scalar_select %p49, %s50, %s51
    %p55 = pneg %p49
    %p56 = scmp.eq.s32.totalorder %s14, 1
    %p57 = por %p55, %p56
    %p58 = scmp.ne.s32.totalorder %s50, %s53
    %p59 = scmp.eq.s32.totalorder %s14, 0
    %p60 = por %p58, %p59
    %p61 = scmp.ne.s32.totalorder %s50, %s53
    %p62 = scmp.eq.s32.totalorder %s19, 1
    %p63 = por %p61, %p62
    %p64 = scmp.ne.s32.totalorder %s53, %s54
    %p65 = scmp.eq.s32.totalorder %s19, 0
    %p66 = por %p64, %p65
    %p67 = scmp.ne.s32.totalorder %s53, %s54
    %p68 = scmp.eq.s32.totalorder %s20, 1
    %p69 = por %p67, %p68
    %p71 = scmp.ne.s32.totalorder %s54, %s70
    %p72 = scmp.eq.s32.totalorder %s20, 0
    %p73 = por %p71, %p72
    %s75 = sadd.s32 %s74, 1
    %p78 = scmp.eq.s32.totalorder %s14, 1
    %p79 = scmp.ne.s32.totalorder %s74, %s76
    %p80 = scmp.eq.s32.totalorder %s14, 0
    %p81 = por %p79, %p80
    %p82 = scmp.ne.s32.totalorder %s74, %s76
    %p83 = scmp.eq.s32.totalorder %s19, 1
    %p84 = por %p82, %p83
    %p85 = scmp.ne.s32.totalorder %s76, %s77
    %p86 = scmp.eq.s32.totalorder %s19, 0
    %p87 = por %p85, %p86
    %p88 = scmp.ne.s32.totalorder %s76, %s77
    %p89 = scmp.eq.s32.totalorder %s20, 1
    %p90 = por %p88, %p89
    %p92 = scmp.ne.s32.totalorder %s77, %s91
    %p93 = scmp.eq.s32.totalorder %s20, 0
    %p94 = por %p92, %p93
    %s96 = sadd.s32 %s95, 1
    %p99 = scmp.eq.s32.totalorder %s14, 1
    %p100 = scmp.ne.s32.totalorder %s95, %s97
    %p101 = scmp.eq.s32.totalorder %s14, 0
    %p102 = por %p100, %p101
    %p103 = scmp.ne.s32.totalorder %s95, %s97
    %p104 = scmp.eq.s32.totalorder %s19, 1
    %p105 = por %p103, %p104
    %p106 = scmp.ne.s32.totalorder %s97, %s98
    %p107 = scmp.eq.s32.totalorder %s19, 0
    %p108 = por %p106, %p107
    %p109 = scmp.ne.s32.totalorder %s97, %s98
    %p110 = scmp.eq.s32.totalorder %s20, 1
    %p111 = por %p109, %p110
    %p113 = scmp.ne.s32.totalorder %s98, %s112
    %p114 = scmp.eq.s32.totalorder %s20, 0
    %p115 = por %p113, %p114
    %s117 = sadd.s32 %s116, 1
    %p120 = scmp.eq.s32.totalorder %s14, 1
    %p121 = scmp.ne.s32.totalorder %s116, %s118
    %p122 = scmp.eq.s32.totalorder %s14, 0
    %p123 = por %p121, %p122
    %p124 = scmp.ne.s32.totalorder %s116, %s118
    %p125 = scmp.eq.s32.totalorder %s19, 1
    %p126 = por %p124, %p125
    %p127 = scmp.ne.s32.totalorder %s118, %s119
    %p128 = scmp.eq.s32.totalorder %s19, 0
    %p129 = por %p127, %p128
    %p130 = scmp.ne.s32.totalorder %s118, %s119
    %p131 = scmp.eq.s32.totalorder %s20, 1
    %p132 = por %p130, %p131
    %p134 = scmp.ne.s32.totalorder %s119, %s133
    %p135 = scmp.eq.s32.totalorder %s20, 0
    %p136 = por %p134, %p135
    %s138 = sadd.s32 %s137, 1
    %p141 = scmp.eq.s32.totalorder %s14, 1
    %p142 = scmp.ne.s32.totalorder %s137, %s139
    %p143 = scmp.eq.s32.totalorder %s14, 0
    %p144 = por %p142, %p143
    %p145 = scmp.ne.s32.totalorder %s137, %s139
    %p146 = scmp.eq.s32.totalorder %s19, 1
    %p147 = por %p145, %p146
    %p148 = scmp.ne.s32.totalorder %s139, %s140
    %p149 = scmp.eq.s32.totalorder %s19, 0
    %p150 = por %p148, %p149
    %p151 = scmp.ne.s32.totalorder %s139, %s140
    %p152 = scmp.eq.s32.totalorder %s20, 1
    %p153 = por %p151, %p152
    %p155 = scmp.ne.s32.totalorder %s140, %s154
    %p156 = scmp.eq.s32.totalorder %s20, 0
    %p157 = por %p155, %p156
    %s159 = sadd.s32 %s158, 1
    %p162 = scmp.eq.s32.totalorder %s14, 1
    %p163 = scmp.ne.s32.totalorder %s158, %s160
    %p164 = scmp.eq.s32.totalorder %s14, 0
    %p165 = por %p163, %p164
    %p166 = scmp.ne.s32.totalorder %s158, %s160
    %p167 = scmp.eq.s32.totalorder %s19, 1
    %p168 = por %p166, %p167
    %p169 = scmp.ne.s32.totalorder %s160, %s161
    %p170 = scmp.eq.s32.totalorder %s19, 0
    %p171 = por %p169, %p170
    %p172 = scmp.ne.s32.totalorder %s160, %s161
    %p173 = scmp.eq.s32.totalorder %s20, 1
    %p174 = por %p172, %p173
    %p176 = scmp.ne.s32.totalorder %s161, %s175
    %p177 = scmp.eq.s32.totalorder %s20, 0
    %p178 = por %p176, %p177
    %s180 = sadd.s32 %s179, 1
    %p183 = scmp.eq.s32.totalorder %s14, 1
    %p184 = scmp.ne.s32.totalorder %s179, %s181
    %p185 = scmp.eq.s32.totalorder %s14, 0
    %p186 = por %p184, %p185
    %p187 = scmp.ne.s32.totalorder %s179, %s181
    %p188 = scmp.eq.s32.totalorder %s19, 1
    %p189 = por %p187, %p188
    %p190 = scmp.ne.s32.totalorder %s181, %s182
    %p191 = scmp.eq.s32.totalorder %s19, 0
    %p192 = por %p190, %p191
    %p193 = scmp.ne.s32.totalorder %s181, %s182
    %p194 = scmp.eq.s32.totalorder %s20, 1
    %p195 = por %p193, %p194
    %p197 = scmp.ne.s32.totalorder %s182, %s196
    %p198 = scmp.eq.s32.totalorder %s20, 0
    %p199 = por %p197, %p198
    %s200 = ssub.s32 %s14, %s21
    %p201 = scmp.eq.s32.totalorder %s200, 0
    %s203 = sadd.s32 %s202, 1
    %s204 = scalar_select %p201, %s202, %s203
    %p207 = pneg %p201
    %p208 = scmp.eq.s32.totalorder %s14, 1
    %p209 = por %p207, %p208
    %p210 = scmp.ne.s32.totalorder %s202, %s205
    %p211 = scmp.eq.s32.totalorder %s14, 0
    %p212 = por %p210, %p211
    %p213 = scmp.ne.s32.totalorder %s202, %s205
    %p214 = scmp.eq.s32.totalorder %s19, 1
    %p215 = por %p213, %p214
    %p216 = scmp.ne.s32.totalorder %s205, %s206
    %p217 = scmp.eq.s32.totalorder %s19, 0
    %p218 = por %p216, %p217
    %p219 = scmp.ne.s32.totalorder %s205, %s206
    %p220 = scmp.eq.s32.totalorder %s20, 1
    %p221 = por %p219, %p220
    %p223 = scmp.ne.s32.totalorder %s206, %s222
    %p224 = scmp.eq.s32.totalorder %s20, 0
    %p225 = por %p223, %p224
    %p226 = scmp.le.s32.totalorder 1, %s14
    %p227 = scmp.lt.s32.totalorder %s14, 3
    %p228 = pnand %p226, %p227
    %p229 = pneg %p228
    // Predicated region
    $region9: #{unet_up_forward.1} parent=5 // pred_check
      _
    $region10: #{unet_up_forward.1} parent=5 // pred_check_branch
      %231 = sbr.rel (%p228) target = $region12
    $region11: #{unet_up_forward.1} parent=5 // pred_region
      %s232 = ssub.s32 %s14, 1
      // Predicated region
      $region13: #{unet_up_forward.1} parent=11 // pred_check
        %p233 = pneg %p87
      $region14: #{unet_up_forward.1} parent=11 // pred_check_branch
        %235 = sbr.rel (%p233) target = $region16
      $region15: #{unet_up_forward.1} parent=11 // pred_region
        _
      $region16: #{unet_up_forward.1} parent=11 // pred_fallthru
        _
      // Predicated region
      $region17: #{unet_up_forward.1} parent=11 // pred_check
        %p236 = pneg %p108
      $region18: #{unet_up_forward.1} parent=11 // pred_check_branch
        %238 = sbr.rel (%p236) target = $region20
      $region19: #{unet_up_forward.1} parent=11 // pred_region
        _
      $region20: #{unet_up_forward.1} parent=11 // pred_fallthru
        _
      // Predicated region
      $region21: #{unet_up_forward.1} parent=11 // pred_check
        %p239 = pneg %p129
      $region22: #{unet_up_forward.1} parent=11 // pred_check_branch
        %241 = sbr.rel (%p239) target = $region24
      $region23: #{unet_up_forward.1} parent=11 // pred_region
        _
      $region24: #{unet_up_forward.1} parent=11 // pred_fallthru
        _
      // Predicated region
      $region25: #{unet_up_forward.1} parent=11 // pred_check
        %p242 = pneg %p150
      $region26: #{unet_up_forward.1} parent=11 // pred_check_branch
        %244 = sbr.rel (%p242) target = $region28
      $region27: #{unet_up_forward.1} parent=11 // pred_region
        _
      $region28: #{unet_up_forward.1} parent=11 // pred_fallthru
        _
      // Predicated region
      $region29: #{unet_up_forward.1} parent=11 // pred_check
        %p245 = pneg %p171
      $region30: #{unet_up_forward.1} parent=11 // pred_check_branch
        %247 = sbr.rel (%p245) target = $region32
      $region31: #{unet_up_forward.1} parent=11 // pred_region
        _
      $region32: #{unet_up_forward.1} parent=11 // pred_fallthru
        _
      // Predicated region
      $region33: #{unet_up_forward.1} parent=11 // pred_check
        %p248 = pneg %p192
      $region34: #{unet_up_forward.1} parent=11 // pred_check_branch
        %250 = sbr.rel (%p248) target = $region36
      $region35: #{unet_up_forward.1} parent=11 // pred_region
        _
      $region36: #{unet_up_forward.1} parent=11 // pred_fallthru
        _
    $region12: #{unet_up_forward.1} parent=5 // pred_fallthru
      _
    %p251 = scmp.lt.s32.totalorder %s14, 2
    // Predicated region
    $region37: #{unet_up_forward.1} parent=5 // pred_check
      %p252 = pneg %p251
    $region38: #{unet_up_forward.1} parent=5 // pred_check_branch
      %254 = sbr.rel (%p252) target = $region40
    $region39: #{unet_up_forward.1} parent=5 // pred_region
      // Predicated region
      $region41: #{unet_up_forward.1} parent=39 // pred_check
        %p255 = pneg %p34
      $region42: #{unet_up_forward.1} parent=39 // pred_check_branch
        %257 = sbr.rel (%p255) target = $region44
      $region43: #{unet_up_forward.1} parent=39 // pred_region
        %p258 = scmp.lt.s32.totalorder %s14, 1
        %s259 = scalar_select %p258, %s14, 1
        %s260 = smul.addr %s259, 3
        %s261 = smul.addr %s260, 4
        %s262 = scalar_lea.vmem %s0, %s261
      $region44: #{unet_up_forward.1} parent=39 // pred_fallthru
        _
      // Predicated region
      $region45: #{unet_up_forward.1} parent=39 // pred_check
        %p263 = pneg %p60
      $region46: #{unet_up_forward.1} parent=39 // pred_check_branch
        %265 = sbr.rel (%p263) target = $region48
      $region47: #{unet_up_forward.1} parent=39 // pred_region
        %p266 = scmp.lt.s32.totalorder %s14, 1
        %s267 = scalar_select %p266, %s14, 1
        %s268 = smul.addr %s267, 8
        %s269 = scalar_lea.vmem %s1, %s268
      $region48: #{unet_up_forward.1} parent=39 // pred_fallthru
        _
    $region40: #{unet_up_forward.1} parent=5 // pred_fallthru
      _
    %p270 = scmp.le.s32.totalorder 1, %s14
    %p271 = scmp.lt.s32.totalorder %s14, 3
    %p272 = pnand %p270, %p271
    %p273 = pneg %p272
    // Predicated region
    $region49: #{unet_up_forward.1} parent=5 // pred_check
      _
    $region50: #{unet_up_forward.1} parent=5 // pred_check_branch
      %275 = sbr.rel (%p272) target = $region52
    $region51: #{unet_up_forward.1} parent=5 // pred_region
      %s276 = ssub.s32 %s14, 1
      %p277 = scmp.lt.s32.totalorder %s19, 1
      %s278 = scalar_select %p277, %s19, 1
      %s279 = smul.addr %s278, 3
      %s280 = smul.addr %s279, 4
      %s281 = scalar_lea.vmem %s0, %s280
      %p282 = pneg %p40
      %p283 = pneg %p37
      %p284 = scmp.lt.s32.totalorder %s19, 1
      %s285 = scalar_select %p284, %s19, 1
      %s286 = smul.addr %s285, 8
      %s287 = scalar_lea.vmem %s1, %s286
      %p288 = pneg %p66
      %p289 = pneg %p63
      %p290 = pneg %p87
      %p291 = pneg %p84
      %p292 = pneg %p108
      %p293 = pneg %p105
      %p294 = pneg %p129
      %p295 = pneg %p126
      %p296 = pneg %p150
      %p297 = pneg %p147
      %p298 = pneg %p171
      %p299 = pneg %p168
      %p300 = pneg %p192
      %p301 = pneg %p189
      %p302 = pneg %p218
      %p303 = pneg %p215
      %p304 = scmp.lt.s32.totalorder %s19, 1
      %s305 = scalar_select %p304, %s19, 1
      %s306 = smul.addr %s305, 3
      %s307 = smul.addr %s306, 8
      %s308 = scalar_lea.vmem %s8, %s307
      %p309 = scmp.lt.s32.totalorder %s19, 1
      %s310 = scalar_select %p309, %s19, 1
      %s311 = smul.addr %s310, 3
      %s312 = smul.addr %s311, 4
      %s313 = scalar_lea.vmem %s0, %s312
      %p314 = scmp.lt.s32.totalorder %s19, 1
      %s315 = scalar_select %p314, %s19, 1
      %s316 = smul.addr %s315, 8
      %s317 = scalar_lea.vmem %s1, %s316
      %p318 = scmp.lt.s32.totalorder %s19, 1
      %s319 = scalar_select %p318, %s19, 1
      %s320 = smul.addr %s319, 3
      %s321 = smul.addr %s320, 8
      %s322 = scalar_lea.vmem %s8, %s321
      %323 = vst [vmem:[#allocation2] sm:$0xff] 0.0
      %324 = vst [vmem:[#allocation2 + $0x8] sm:$0xff] 0.0
      %vm325 = vcmask 572416
      %326 = vst.msk [vmem:[#allocation2 + $0x10] sm:$0xff] %vm325, 0.0
      %327 = vst [vmem:[#allocation2 + $0x18] sm:$0xf] 0.0
      %328 = vst [vmem:[#allocation2 + $0x20] sm:$0xf] 0.0
      %vm329 = vcmask 568320
      %330 = vst.msk [vmem:[#allocation2 + $0x28] sm:$0xf] %vm329, 0.0
      %v331 = vld [vmem:[%s313] sm:$0xff]
      %v332 = vld [vmem:[%s313 + $0x8] sm:$0xf]
      %v335 = vcombine.high %v331, %v331
      %336 = vrot.lane.b32.xlu0 %v331, 19
      %v337 = vpop.permute.xlu0 %336
      %338 = vrot.lane.b32.xlu0 %v335, 19
      %v339 = vpop.permute.xlu0 %338
      %340 = vrot.lane.b32.xlu0 %v332, 19
      %v341 = vpop.permute.xlu0 %340
      %vm342 = vcmask 154624
      %v343 = vsel %vm342, %v337, %v339
      %v344 = vsel %vm342, %v339, %v341
      %vm348 = vcmask 1043608
      %349 = vst.msk [vmem:[#allocation2] sm:$0xf] %vm348, %v337
      %350 = vst [vmem:[#allocation2 + $0x8] sm:$0xf] %v343
      %vm351 = vcmask 412672
      %352 = vst.msk [vmem:[#allocation2 + $0x10] sm:$0xf] %vm351, %v344
      %v353 = vld [vmem:[%s317] sm:$0xff]
      %v354 = vld [vmem:[%s2] sm:$0xff]
      %v355 = vld [vmem:[%s2 + $0x8] sm:$0xff]
      %v356 = vld [vmem:[%s2 + $0x10] sm:$0xff]
      %v357 = vld [vmem:[%s2 + $0x18] sm:$0xff]
      %v358 = vld [vmem:[%s2 + $0x20] sm:$0xff]
      %v359 = vld [vmem:[%s2 + $0x28] sm:$0xff]
      %v360 = vld [vmem:[%s2 + $0x30] sm:$0xff]
      %v361 = vld [vmem:[%s2 + $0x38] sm:$0xff]
      %v362 = vld [vmem:[%s2 + $0x40] sm:$0xff]
      %v363 = vld [vmem:[%s2 + $0x48] sm:$0xff]
      %v364 = vld [vmem:[%s2 + $0x50] sm:$0xff]
      %v365 = vld [vmem:[%s2 + $0x58] sm:$0xff]
      %v366 = vld [vmem:[%s2 + $0x60] sm:$0xff]
      %v367 = vld [vmem:[%s2 + $0x68] sm:$0xff]
      %v368 = vld [vmem:[%s2 + $0x70] sm:$0xff]
      %v369 = vld [vmem:[%s2 + $0x78] sm:$0xff]
      %v370 = vld [vmem:[%s2 + $0x80] sm:$0xff]
      %v371 = vld [vmem:[%s2 + $0x88] sm:$0xff]
      %v372 = vld [vmem:[%s2 + $0x90] sm:$0xff]
      %v373 = vld [vmem:[%s2 + $0x98] sm:$0xff]
      %v374 = vld [vmem:[%s2 + $0xa0] sm:$0xff]
      %v375 = vld [vmem:[%s2 + $0xa8] sm:$0xff]
      %v376 = vld [vmem:[%s2 + $0xb0] sm:$0xff]
      %v377 = vld [vmem:[%s2 + $0xb8] sm:$0xff]
      %vm378 = vcmask 523264
      %v380 = vsel %vm378, %v353, 0
      %382 = vmatprep.subr.mxu0 %v355
      %383 = vmatpush1.msra.mxu0 %v354
      %384 = vmatprep.subr.mxu0 %v358
      %385 = vmatpush1.msra.mxu0 %v357
      %386 = vmatprep.subr.mxu0 %v361
      %387 = vmatpush1.msra.mxu0 %v360
      %388 = vmatprep.subr.mxu0 %v364
      %389 = vmatpush1.msra.mxu0 %v363
      %390 = vmatprep.subr.mxu0 %v367
      %391 = vmatpush1.msra.mxu0 %v366
      %392 = vmatprep.subr.mxu0 %v370
      %393 = vmatpush1.msra.mxu0 %v369
      %394 = vmatprep.subr.mxu0 %v373
      %395 = vmatpush1.msra.mxu0 %v372
      %396 = vmatprep.subr.mxu0 %v376
      %397 = vmatpush1.msra.mxu0 %v375
      %398 = vmatprep.subr.mxu0 0.0
      %399 = vmatpush1.msra.mxu0 0.0
      %400 = vmatprep.subr.mxu0 0.0
      %401 = vmatpush1.msra.mxu0 0.0
      %402 = vmatprep.subr.mxu0 0.0
      %403 = vmatpush1.msra.mxu0 0.0
      %404 = vmatprep.subr.mxu0 0.0
      %405 = vmatpush1.msra.mxu0 0.0
      %406 = vmatprep.subr.mxu0 0.0
      %407 = vmatpush1.msra.mxu0 0.0
      %408 = vmatprep.subr.mxu0 0.0
      %409 = vmatpush1.msra.mxu0 0.0
      %410 = vmatprep.subr.mxu0 0.0
      %411 = vmatpush1.msra.mxu0 0.0
      %412 = vmatprep.subr.mxu0 0.0
      %413 = vmatpush1.msra.mxu0 0.0
      %414 = vmatprep.subr.mxu0 0.0
      %415 = vmatpush1.msra.mxu0 0.0
      %416 = vmatprep.subr.mxu0 0.0
      %417 = vmatpush1.msra.mxu0 0.0
      %418 = vmatprep.subr.mxu0 0.0
      %419 = vmatpush1.msra.mxu0 0.0
      %420 = vmatprep.subr.mxu0 0.0
      %421 = vmatpush1.msra.mxu0 0.0
      %422 = vmatprep.subr.mxu0 0.0
      %423 = vmatpush1.msra.mxu0 0.0
      %424 = vmatprep.subr.mxu0 0.0
      %425 = vmatpush1.msra.mxu0 0.0
      %426 = vmatprep.subr.mxu0 0.0
      %427 = vmatpush1.msra.mxu0 0.0
      %428 = vmatprep.subr.mxu0 0.0
      %429 = vmatpush1.msra.mxu0 0.0
      %430 = vmatprep.subr.mxu0 0.0
      %431 = vmatpush1.msra.mxu0 0.0
      %432 = vmatprep.subr.mxu0 0.0
      %433 = vmatpush1.msra.mxu0 0.0
      %434 = vmatprep.subr.mxu0 0.0
      %435 = vmatpush1.msra.mxu0 0.0
      %436 = vmatprep.subr.mxu0 0.0
      %437 = vmatpush1.msra.mxu0 0.0
      %438 = vmatprep.subr.mxu0 0.0
      %439 = vmatpush1.msra.mxu0 0.0
      %440 = vmatprep.subr.mxu0 0.0
      %441 = vmatpush1.msra.mxu0 0.0
      %442 = vmatprep.subr.mxu0 0.0
      %443 = vmatpush1.msra.mxu0 0.0
      %444 = vmatprep.subr.mxu0 0.0
      %445 = vmatpush1.msra.mxu0 0.0
      %446 = vmatprep.mubr.f32.mxu0 0.0
      %447 = vmatmul.mubr.f32.gmra.mrb[0].mxu0 %v380
      %v448 = vpop.f32.mrb[0].mxu0
      %v449 = vadd.f32 0.0, %v448
      %v450 = vpop.f32.mrb[0].mxu0
      %v451 = vadd.f32 0.0, %v450
      %452 = vdwg.mxu0
      %453 = vmatprep.subr.mxu0 0.0
      %454 = vmatpush1.msra.mxu0 %v356
      %455 = vmatprep.subr.mxu0 0.0
      %456 = vmatpush1.msra.mxu0 %v359
      %457 = vmatprep.subr.mxu0 0.0
      %458 = vmatpush1.msra.mxu0 %v362
      %459 = vmatprep.subr.mxu0 0.0
      %460 = vmatpush1.msra.mxu0 %v365
      %461 = vmatprep.subr.mxu0 0.0
      %462 = vmatpush1.msra.mxu0 %v368
      %463 = vmatprep.subr.mxu0 0.0
      %464 = vmatpush1.msra.mxu0 %v371
      %465 = vmatprep.subr.mxu0 0.0
      %466 = vmatpush1.msra.mxu0 %v374
      %467 = vmatprep.subr.mxu0 0.0
      %468 = vmatpush1.msra.mxu0 %v377
      %469 = vmatprep.subr.mxu0 0.0
      %470 = vmatpush1.msra.mxu0 0.0
      %471 = vmatprep.subr.mxu0 0.0
      %472 = vmatpush1.msra.mxu0 0.0
      %473 = vmatprep.subr.mxu0 0.0
      %474 = vmatpush1.msra.mxu0 0.0
      %475 = vmatprep.subr.mxu0 0.0
      %476 = vmatpush1.msra.mxu0 0.0
      %477 = vmatprep.subr.mxu0 0.0
      %478 = vmatpush1.msra.mxu0 0.0
      %479 = vmatprep.subr.mxu0 0.0
      %480 = vmatpush1.msra.mxu0 0.0
      %481 = vmatprep.subr.mxu0 0.0
      %482 = vmatpush1.msra.mxu0 0.0
      %483 = vmatprep.subr.mxu0 0.0
      %484 = vmatpush1.msra.mxu0 0.0
      %485 = vmatprep.subr.mxu0 0.0
      %486 = vmatpush1.msra.mxu0 0.0
      %487 = vmatprep.subr.mxu0 0.0
      %488 = vmatpush1.msra.mxu0 0.0
      %489 = vmatprep.subr.mxu0 0.0
      %490 = vmatpush1.msra.mxu0 0.0
      %491 = vmatprep.subr.mxu0 0.0
      %492 = vmatpush1.msra.mxu0 0.0
      %493 = vmatprep.subr.mxu0 0.0
      %494 = vmatpush1.msra.mxu0 0.0
      %495 = vmatprep.subr.mxu0 0.0
      %496 = vmatpush1.msra.mxu0 0.0
      %497 = vmatprep.subr.mxu0 0.0
      %498 = vmatpush1.msra.mxu0 0.0
      %499 = vmatprep.subr.mxu0 0.0
      %500 = vmatpush1.msra.mxu0 0.0
      %501 = vmatprep.subr.mxu0 0.0
      %502 = vmatpush1.msra.mxu0 0.0
      %503 = vmatprep.subr.mxu0 0.0
      %504 = vmatpush1.msra.mxu0 0.0
      %505 = vmatprep.subr.mxu0 0.0
      %506 = vmatpush1.msra.mxu0 0.0
      %507 = vmatprep.subr.mxu0 0.0
      %508 = vmatpush1.msra.mxu0 0.0
      %509 = vmatprep.subr.mxu0 0.0
      %510 = vmatpush1.msra.mxu0 0.0
      %511 = vmatprep.subr.mxu0 0.0
      %512 = vmatpush1.msra.mxu0 0.0
      %513 = vmatprep.subr.mxu0 0.0
      %514 = vmatpush1.msra.mxu0 0.0
      %515 = vmatprep.subr.mxu0 0.0
      %516 = vmatpush1.msra.mxu0 0.0
      %517 = vmatprep.mubr.f32.mxu0 0.0
      %518 = vmatmul.mubr.f32.gmra.mrb[0].mxu0 %v380
      %v519 = vpop.f32.mrb[0].mxu0
      %v520 = vadd.f32 0.0, %v519
      %v521 = vpop.f32.mrb[0].mxu0
      %522 = vdwg.mxu0
      %v526 = vrot.slane %v449, 4
      %v527 = vrot.slane %v451, 4
      %v528 = vrot.slane %v520, 4
      %529 = vrot.lane.b32.xlu0 %v526, 18
      %v530 = vpop.permute.xlu0 %529
      %531 = vrot.lane.b32.xlu0 %v527, 18
      %v532 = vpop.permute.xlu0 %531
      %533 = vrot.lane.b32.xlu0 %v528, 18
      %v534 = vpop.permute.xlu0 %533
      %vm535 = vcmask 146432
      %v536 = vsel %vm535, %v530, %v532
      %v537 = vsel %vm535, %v532, %v534
      %vm541 = vcmask 1047700
      %542 = vst.msk [vmem:[#allocation2] sm:$0xf0] %vm541, %v530
      %543 = vst [vmem:[#allocation2 + $0x8] sm:$0xf0] %v536
      %vm544 = vcmask 408580
      %545 = vst.msk [vmem:[#allocation2 + $0x10] sm:$0xf0] %vm544, %v537
      %vm546 = vcmask 1043600
      %547 = vst.msk [vmem:[#allocation2 + $0x18] sm:$0xf] %vm546, %v530
      %548 = vst [vmem:[#allocation2 + $0x20] sm:$0xf] %v536
      %vm549 = vcmask 404480
      %550 = vst.msk [vmem:[#allocation2 + $0x28] sm:$0xf] %vm549, %v537
      %v551 = vld [vmem:[#allocation2] sm:$0xff]
      %v552 = vld [vmem:[#allocation2 + $0x8] sm:$0xff]
      %v553 = vld [vmem:[#allocation2 + $0x10] sm:$0xff]
      %v554 = vld [vmem:[#allocation2 + $0x18] sm:$0xf]
      %v555 = vld [vmem:[#allocation2 + $0x20] sm:$0xf]
      %v556 = vld [vmem:[#allocation2 + $0x28] sm:$0xf]
      %v557 = vld [vmem:[%s4] sm:$0xff]
      %s558 = scalar_lea.vmem %s4, 8
      %v559 = vld [vmem:[%s558] sm:$0xff]
      %566 = vrot.lane.b32.xlu0 %v551, 127
      %v567 = vpop.permute.xlu0 %566
      %568 = vrot.lane.b32.xlu0 %v552, 127
      %v569 = vpop.permute.xlu0 %568
      %570 = vrot.lane.b32.xlu0 %v553, 127
      %v571 = vpop.permute.xlu0 %570
      %572 = vrot.lane.b32.xlu0 %v554, 127
      %v573 = vpop.permute.xlu0 %572
      %574 = vrot.lane.b32.xlu0 %v555, 127
      %v575 = vpop.permute.xlu0 %574
      %576 = vrot.lane.b32.xlu0 %v556, 127
      %v577 = vpop.permute.xlu0 %576
      %vm578 = vcmask 1039360
      %v579 = vsel %vm578, %v567, %v569
      %v580 = vsel %vm578, %v569, %v571
      %v581 = vsel %vm578, %v573, %v575
      %v582 = vsel %vm578, %v575, %v577
      %vm586 = vcmask 97280
      %v588 = vsel %vm586, %v559, 0
      %vm590 = vcmask 1043456
      %v591 = vsel %vm590, %v581, 0
      %v593 = vsel %vm590, %v582, 0
      %v595 = vsel %vm590, %v577, 0
      %597 = vmatprep.subr.mxu0 %v580
      %598 = vmatpush1.msra.mxu0 %v579
      %599 = vmatprep.subr.mxu0 %v593
      %600 = vmatpush1.msra.mxu0 %v591
      %601 = vmatprep.subr.mxu0 0.0
      %602 = vmatpush1.msra.mxu0 0.0
      %603 = vmatprep.subr.mxu0 0.0
      %604 = vmatpush1.msra.mxu0 0.0
      %605 = vmatprep.subr.mxu0 0.0
      %606 = vmatpush1.msra.mxu0 0.0
      %607 = vmatprep.subr.mxu0 0.0
      %608 = vmatpush1.msra.mxu0 0.0
      %609 = vmatprep.subr.mxu0 0.0
      %610 = vmatpush1.msra.mxu0 0.0
      %611 = vmatprep.subr.mxu0 0.0
      %612 = vmatpush1.msra.mxu0 0.0
      %613 = vmatprep.subr.mxu0 0.0
      %614 = vmatpush1.msra.mxu0 0.0
      %615 = vmatprep.subr.mxu0 0.0
      %616 = vmatpush1.msra.mxu0 0.0
      %617 = vmatprep.subr.mxu0 0.0
      %618 = vmatpush1.msra.mxu0 0.0
      %619 = vmatprep.subr.mxu0 0.0
      %620 = vmatpush1.msra.mxu0 0.0
      %621 = vmatprep.subr.mxu0 0.0
      %622 = vmatpush1.msra.mxu0 0.0
      %623 = vmatprep.subr.mxu0 0.0
      %624 = vmatpush1.msra.mxu0 0.0
      %625 = vmatprep.subr.mxu0 0.0
      %626 = vmatpush1.msra.mxu0 0.0
      %627 = vmatprep.subr.mxu0 0.0
      %628 = vmatpush1.msra.mxu0 0.0
      %629 = vmatprep.subr.mxu0 0.0
      %630 = vmatpush1.msra.mxu0 0.0
      %631 = vmatprep.subr.mxu0 0.0
      %632 = vmatpush1.msra.mxu0 0.0
      %633 = vmatprep.subr.mxu0 0.0
      %634 = vmatpush1.msra.mxu0 0.0
      %635 = vmatprep.subr.mxu0 0.0
      %636 = vmatpush1.msra.mxu0 0.0
      %637 = vmatprep.subr.mxu0 0.0
      %638 = vmatpush1.msra.mxu0 0.0
      %639 = vmatprep.subr.mxu0 0.0
      %640 = vmatpush1.msra.mxu0 0.0
      %641 = vmatprep.subr.mxu0 0.0
      %642 = vmatpush1.msra.mxu0 0.0
      %643 = vmatprep.subr.mxu0 0.0
      %644 = vmatpush1.msra.mxu0 0.0
      %645 = vmatprep.subr.mxu0 0.0
      %646 = vmatpush1.msra.mxu0 0.0
      %647 = vmatprep.subr.mxu0 0.0
      %648 = vmatpush1.msra.mxu0 0.0
      %649 = vmatprep.subr.mxu0 0.0
      %650 = vmatpush1.msra.mxu0 0.0
      %651 = vmatprep.subr.mxu0 0.0
      %652 = vmatpush1.msra.mxu0 0.0
      %653 = vmatprep.subr.mxu0 0.0
      %654 = vmatpush1.msra.mxu0 0.0
      %655 = vmatprep.subr.mxu0 0.0
      %656 = vmatpush1.msra.mxu0 0.0
      %657 = vmatprep.subr.mxu0 0.0
      %658 = vmatpush1.msra.mxu0 0.0
      %659 = vmatprep.subr.mxu0 0.0
      %660 = vmatpush1.msra.mxu0 0.0
      %661 = vmatprep.mubr.f32.mxu0 0.0
      %662 = vmatmul.mubr.f32.gmra.mrb[0].mxu0 %v588
      %v663 = vpop.f32.mrb[0].mxu0
      %v664 = vadd.f32 0.0, %v663
      %v665 = vpop.f32.mrb[0].mxu0
      %v666 = vadd.f32 0.0, %v665
      %667 = vdwg.mxu0
      %668 = vmatprep.subr.mxu0 0.0
      %669 = vmatpush1.msra.mxu0 %v571
      %670 = vmatprep.subr.mxu0 0.0
      %671 = vmatpush1.msra.mxu0 %v595
      %672 = vmatprep.subr.mxu0 0.0
      %673 = vmatpush1.msra.mxu0 0.0
      %674 = vmatprep.subr.mxu0 0.0
      %675 = vmatpush1.msra.mxu0 0.0
      %676 = vmatprep.subr.mxu0 0.0
      %677 = vmatpush1.msra.mxu0 0.0
      %678 = vmatprep.subr.mxu0 0.0
      %679 = vmatpush1.msra.mxu0 0.0
      %680 = vmatprep.subr.mxu0 0.0
      %681 = vmatpush1.msra.mxu0 0.0
      %682 = vmatprep.subr.mxu0 0.0
      %683 = vmatpush1.msra.mxu0 0.0
      %684 = vmatprep.subr.mxu0 0.0
      %685 = vmatpush1.msra.mxu0 0.0
      %686 = vmatprep.subr.mxu0 0.0
      %687 = vmatpush1.msra.mxu0 0.0
      %688 = vmatprep.subr.mxu0 0.0
      %689 = vmatpush1.msra.mxu0 0.0
      %690 = vmatprep.subr.mxu0 0.0
      %691 = vmatpush1.msra.mxu0 0.0
      %692 = vmatprep.subr.mxu0 0.0
      %693 = vmatpush1.msra.mxu0 0.0
      %694 = vmatprep.subr.mxu0 0.0
      %695 = vmatpush1.msra.mxu0 0.0
      %696 = vmatprep.subr.mxu0 0.0
      %697 = vmatpush1.msra.mxu0 0.0
      %698 = vmatprep.subr.mxu0 0.0
      %699 = vmatpush1.msra.mxu0 0.0
      %700 = vmatprep.subr.mxu0 0.0
      %701 = vmatpush1.msra.mxu0 0.0
      %702 = vmatprep.subr.mxu0 0.0
      %703 = vmatpush1.msra.mxu0 0.0
      %704 = vmatprep.subr.mxu0 0.0
      %705 = vmatpush1.msra.mxu0 0.0
      %706 = vmatprep.subr.mxu0 0.0
      %707 = vmatpush1.msra.mxu0 0.0
      %708 = vmatprep.subr.mxu0 0.0
      %709 = vmatpush1.msra.mxu0 0.0
      %710 = vmatprep.subr.mxu0 0.0
      %711 = vmatpush1.msra.mxu0 0.0
      %712 = vmatprep.subr.mxu0 0.0
      %713 = vmatpush1.msra.mxu0 0.0
      %714 = vmatprep.subr.mxu0 0.0
      %715 = vmatpush1.msra.mxu0 0.0
      %716 = vmatprep.subr.mxu0 0.0
      %717 = vmatpush1.msra.mxu0 0.0
      %718 = vmatprep.subr.mxu0 0.0
      %719 = vmatpush1.msra.mxu0 0.0
      %720 = vmatprep.subr.mxu0 0.0
      %721 = vmatpush1.msra.mxu0 0.0
      %722 = vmatprep.subr.mxu0 0.0
      %723 = vmatpush1.msra.mxu0 0.0
      %724 = vmatprep.subr.mxu0 0.0
      %725 = vmatpush1.msra.mxu0 0.0
      %726 = vmatprep.subr.mxu0 0.0
      %727 = vmatpush1.msra.mxu0 0.0
      %728 = vmatprep.subr.mxu0 0.0
      %729 = vmatpush1.msra.mxu0 0.0
      %730 = vmatprep.subr.mxu0 0.0
      %731 = vmatpush1.msra.mxu0 0.0
      %732 = vmatprep.mubr.f32.mxu0 0.0
      %733 = vmatmul.mubr.f32.gmra.mrb[0].mxu0 %v588
      %v734 = vpop.f32.mrb[0].mxu0
      %v735 = vadd.f32 0.0, %v734
      %v736 = vpop.f32.mrb[0].mxu0
      %737 = vdwg.mxu0
      %v739 = vsel %vm586, %v557, 0
      %v741 = vsel %vm590, %v554, 0
      %v743 = vsel %vm590, %v555, 0
      %v745 = vsel %vm590, %v556, 0
      %747 = vmatprep.subr.mxu0 %v552
      %748 = vmatpush1.msra.mxu0 %v551
      %749 = vmatprep.subr.mxu0 %v743
      %750 = vmatpush1.msra.mxu0 %v741
      %751 = vmatprep.subr.mxu0 0.0
      %752 = vmatpush1.msra.mxu0 0.0
      %753 = vmatprep.subr.mxu0 0.0
      %754 = vmatpush1.msra.mxu0 0.0
      %755 = vmatprep.subr.mxu0 0.0
      %756 = vmatpush1.msra.mxu0 0.0
      %757 = vmatprep.subr.mxu0 0.0
      %758 = vmatpush1.msra.mxu0 0.0
      %759 = vmatprep.subr.mxu0 0.0
      %760 = vmatpush1.msra.mxu0 0.0
      %761 = vmatprep.subr.mxu0 0.0
      %762 = vmatpush1.msra.mxu0 0.0
      %763 = vmatprep.subr.mxu0 0.0
      %764 = vmatpush1.msra.mxu0 0.0
      %765 = vmatprep.subr.mxu0 0.0
      %766 = vmatpush1.msra.mxu0 0.0
      %767 = vmatprep.subr.mxu0 0.0
      %768 = vmatpush1.msra.mxu0 0.0
      %769 = vmatprep.subr.mxu0 0.0
      %770 = vmatpush1.msra.mxu0 0.0
      %771 = vmatprep.subr.mxu0 0.0
      %772 = vmatpush1.msra.mxu0 0.0
      %773 = vmatprep.subr.mxu0 0.0
      %774 = vmatpush1.msra.mxu0 0.0
      %775 = vmatprep.subr.mxu0 0.0
      %776 = vmatpush1.msra.mxu0 0.0
      %777 = vmatprep.subr.mxu0 0.0
      %778 = vmatpush1.msra.mxu0 0.0
      %779 = vmatprep.subr.mxu0 0.0
      %780 = vmatpush1.msra.mxu0 0.0
      %781 = vmatprep.subr.mxu0 0.0
      %782 = vmatpush1.msra.mxu0 0.0
      %783 = vmatprep.subr.mxu0 0.0
      %784 = vmatpush1.msra.mxu0 0.0
      %785 = vmatprep.subr.mxu0 0.0
      %786 = vmatpush1.msra.mxu0 0.0
      %787 = vmatprep.subr.mxu0 0.0
      %788 = vmatpush1.msra.mxu0 0.0
      %789 = vmatprep.subr.mxu0 0.0
      %790 = vmatpush1.msra.mxu0 0.0
      %791 = vmatprep.subr.mxu0 0.0
      %792 = vmatpush1.msra.mxu0 0.0
      %793 = vmatprep.subr.mxu0 0.0
      %794 = vmatpush1.msra.mxu0 0.0
      %795 = vmatprep.subr.mxu0 0.0
      %796 = vmatpush1.msra.mxu0 0.0
      %797 = vmatprep.subr.mxu0 0.0
      %798 = vmatpush1.msra.mxu0 0.0
      %799 = vmatprep.subr.mxu0 0.0
      %800 = vmatpush1.msra.mxu0 0.0
      %801 = vmatprep.subr.mxu0 0.0
      %802 = vmatpush1.msra.mxu0 0.0
      %803 = vmatprep.subr.mxu0 0.0
      %804 = vmatpush1.msra.mxu0 0.0
      %805 = vmatprep.subr.mxu0 0.0
      %806 = vmatpush1.msra.mxu0 0.0
      %807 = vmatprep.subr.mxu0 0.0
      %808 = vmatpush1.msra.mxu0 0.0
      %809 = vmatprep.subr.mxu0 0.0
      %810 = vmatpush1.msra.mxu0 0.0
      %811 = vmatprep.mubr.f32.mxu0 0.0
      %812 = vmatmul.mubr.f32.gmra.mrb[0].mxu0 %v739
      %v813 = vpop.f32.mrb[0].mxu0
      %v814 = vadd.f32 %v664, %v813
      %v815 = vpop.f32.mrb[0].mxu0
      %v816 = vadd.f32 %v666, %v815
      %817 = vdwg.mxu0
      %818 = vmatprep.subr.mxu0 0.0
      %819 = vmatpush1.msra.mxu0 %v553
      %820 = vmatprep.subr.mxu0 0.0
      %821 = vmatpush1.msra.mxu0 %v745
      %822 = vmatprep.subr.mxu0 0.0
      %823 = vmatpush1.msra.mxu0 0.0
      %824 = vmatprep.subr.mxu0 0.0
      %825 = vmatpush1.msra.mxu0 0.0
      %826 = vmatprep.subr.mxu0 0.0
      %827 = vmatpush1.msra.mxu0 0.0
      %828 = vmatprep.subr.mxu0 0.0
      %829 = vmatpush1.msra.mxu0 0.0
      %830 = vmatprep.subr.mxu0 0.0
      %831 = vmatpush1.msra.mxu0 0.0
      %832 = vmatprep.subr.mxu0 0.0
      %833 = vmatpush1.msra.mxu0 0.0
      %834 = vmatprep.subr.mxu0 0.0
      %835 = vmatpush1.msra.mxu0 0.0
      %836 = vmatprep.subr.mxu0 0.0
      %837 = vmatpush1.msra.mxu0 0.0
      %838 = vmatprep.subr.mxu0 0.0
      %839 = vmatpush1.msra.mxu0 0.0
      %840 = vmatprep.subr.mxu0 0.0
      %841 = vmatpush1.msra.mxu0 0.0
      %842 = vmatprep.subr.mxu0 0.0
      %843 = vmatpush1.msra.mxu0 0.0
      %844 = vmatprep.subr.mxu0 0.0
      %845 = vmatpush1.msra.mxu0 0.0
      %846 = vmatprep.subr.mxu0 0.0
      %847 = vmatpush1.msra.mxu0 0.0
      %848 = vmatprep.subr.mxu0 0.0
      %849 = vmatpush1.msra.mxu0 0.0
      %850 = vmatprep.subr.mxu0 0.0
      %851 = vmatpush1.msra.mxu0 0.0
      %852 = vmatprep.subr.mxu0 0.0
      %853 = vmatpush1.msra.mxu0 0.0
      %854 = vmatprep.subr.mxu0 0.0
      %855 = vmatpush1.msra.mxu0 0.0
      %856 = vmatprep.subr.mxu0 0.0
      %857 = vmatpush1.msra.mxu0 0.0
      %858 = vmatprep.subr.mxu0 0.0
      %859 = vmatpush1.msra.mxu0 0.0
      %860 = vmatprep.subr.mxu0 0.0
      %861 = vmatpush1.msra.mxu0 0.0
      %862 = vmatprep.subr.mxu0 0.0
      %863 = vmatpush1.msra.mxu0 0.0
      %864 = vmatprep.subr.mxu0 0.0
      %865 = vmatpush1.msra.mxu0 0.0
      %866 = vmatprep.subr.mxu0 0.0
      %867 = vmatpush1.msra.mxu0 0.0
      %868 = vmatprep.subr.mxu0 0.0
      %869 = vmatpush1.msra.mxu0 0.0
      %870 = vmatprep.subr.mxu0 0.0
      %871 = vmatpush1.msra.mxu0 0.0
      %872 = vmatprep.subr.mxu0 0.0
      %873 = vmatpush1.msra.mxu0 0.0
      %874 = vmatprep.subr.mxu0 0.0
      %875 = vmatpush1.msra.mxu0 0.0
      %876 = vmatprep.subr.mxu0 0.0
      %877 = vmatpush1.msra.mxu0 0.0
      %878 = vmatprep.subr.mxu0 0.0
      %879 = vmatpush1.msra.mxu0 0.0
      %880 = vmatprep.subr.mxu0 0.0
      %881 = vmatpush1.msra.mxu0 0.0
      %882 = vmatprep.mubr.f32.mxu0 0.0
      %883 = vmatmul.mubr.f32.gmra.mrb[0].mxu0 %v739
      %v884 = vpop.f32.mrb[0].mxu0
      %v885 = vadd.f32 %v735, %v884
      %v886 = vpop.f32.mrb[0].mxu0
      %887 = vdwg.mxu0
      %s888 = scalar_lea.vmem %s4, 16
      %v889 = vld [vmem:[%s888] sm:$0xff]
      %890 = vrot.lane.b32.xlu0 %v551, 126
      %v891 = vpop.permute.xlu0 %890
      %892 = vrot.lane.b32.xlu0 %v552, 126
      %v893 = vpop.permute.xlu0 %892
      %894 = vrot.lane.b32.xlu0 %v553, 126
      %v895 = vpop.permute.xlu0 %894
      %896 = vrot.lane.b32.xlu0 %v554, 126
      %v897 = vpop.permute.xlu0 %896
      %898 = vrot.lane.b32.xlu0 %v555, 126
      %v899 = vpop.permute.xlu0 %898
      %900 = vrot.lane.b32.xlu0 %v556, 126
      %v901 = vpop.permute.xlu0 %900
      %vm902 = vcmask 1031168
      %v903 = vsel %vm902, %v891, %v893
      %v904 = vsel %vm902, %v893, %v895
      %v905 = vsel %vm902, %v897, %v899
      %v906 = vsel %vm902, %v899, %v901
      %v911 = vsel %vm586, %v889, 0
      %v913 = vsel %vm590, %v905, 0
      %v915 = vsel %vm590, %v906, 0
      %v917 = vsel %vm590, %v901, 0
      %919 = vmatprep.subr.mxu0 %v904
      %920 = vmatpush1.msra.mxu0 %v903
      %921 = vmatprep.subr.mxu0 %v915
      %922 = vmatpush1.msra.mxu0 %v913
      %923 = vmatprep.subr.mxu0 0.0
      %924 = vmatpush1.msra.mxu0 0.0
      %925 = vmatprep.subr.mxu0 0.0
      %926 = vmatpush1.msra.mxu0 0.0
      %927 = vmatprep.subr.mxu0 0.0
      %928 = vmatpush1.msra.mxu0 0.0
      %929 = vmatprep.subr.mxu0 0.0
      %930 = vmatpush1.msra.mxu0 0.0
      %931 = vmatprep.subr.mxu0 0.0
      %932 = vmatpush1.msra.mxu0 0.0
      %933 = vmatprep.subr.mxu0 0.0
      %934 = vmatpush1.msra.mxu0 0.0
      %935 = vmatprep.subr.mxu0 0.0
      %936 = vmatpush1.msra.mxu0 0.0
      %937 = vmatprep.subr.mxu0 0.0
      %938 = vmatpush1.msra.mxu0 0.0
      %939 = vmatprep.subr.mxu0 0.0
      %940 = vmatpush1.msra.mxu0 0.0
      %941 = vmatprep.subr.mxu0 0.0
      %942 = vmatpush1.msra.mxu0 0.0
      %943 = vmatprep.subr.mxu0 0.0
      %944 = vmatpush1.msra.mxu0 0.0
      %945 = vmatprep.subr.mxu0 0.0
      %946 = vmatpush1.msra.mxu0 0.0
      %947 = vmatprep.subr.mxu0 0.0
      %948 = vmatpush1.msra.mxu0 0.0
      %949 = vmatprep.subr.mxu0 0.0
      %950 = vmatpush1.msra.mxu0 0.0
      %951 = vmatprep.subr.mxu0 0.0
      %952 = vmatpush1.msra.mxu0 0.0
      %953 = vmatprep.subr.mxu0 0.0
      %954 = vmatpush1.msra.mxu0 0.0
      %955 = vmatprep.subr.mxu0 0.0
      %956 = vmatpush1.msra.mxu0 0.0
      %957 = vmatprep.subr.mxu0 0.0
      %958 = vmatpush1.msra.mxu0 0.0
      %959 = vmatprep.subr.mxu0 0.0
      %960 = vmatpush1.msra.mxu0 0.0
      %961 = vmatprep.subr.mxu0 0.0
      %962 = vmatpush1.msra.mxu0 0.0
      %963 = vmatprep.subr.mxu0 0.0
      %964 = vmatpush1.msra.mxu0 0.0
      %965 = vmatprep.subr.mxu0 0.0
      %966 = vmatpush1.msra.mxu0 0.0
      %967 = vmatprep.subr.mxu0 0.0
      %968 = vmatpush1.msra.mxu0 0.0
      %969 = vmatprep.subr.mxu0 0.0
      %970 = vmatpush1.msra.mxu0 0.0
      %971 = vmatprep.subr.mxu0 0.0
      %972 = vmatpush1.msra.mxu0 0.0
      %973 = vmatprep.subr.mxu0 0.0
      %974 = vmatpush1.msra.mxu0 0.0
      %975 = vmatprep.subr.mxu0 0.0
      %976 = vmatpush1.msra.mxu0 0.0
      %977 = vmatprep.subr.mxu0 0.0
      %978 = vmatpush1.msra.mxu0 0.0
      %979 = vmatprep.subr.mxu0 0.0
      %980 = vmatpush1.msra.mxu0 0.0
      %981 = vmatprep.subr.mxu0 0.0
      %982 = vmatpush1.msra.mxu0 0.0
      %983 = vmatprep.mubr.f32.mxu0 0.0
      %984 = vmatmul.mubr.f32.gmra.mrb[0].mxu0 %v911
      %v985 = vpop.f32.mrb[0].mxu0
      %v986 = vadd.f32 0.0, %v985
      %v987 = vpop.f32.mrb[0].mxu0
      %v988 = vadd.f32 0.0, %v987
      %989 = vdwg.mxu0
      %990 = vmatprep.subr.mxu0 0.0
      %991 = vmatpush1.msra.mxu0 %v895
      %992 = vmatprep.subr.mxu0 0.0
      %993 = vmatpush1.msra.mxu0 %v917
      %994 = vmatprep.subr.mxu0 0.0
      %995 = vmatpush1.msra.mxu0 0.0
      %996 = vmatprep.subr.mxu0 0.0
      %997 = vmatpush1.msra.mxu0 0.0
      %998 = vmatprep.subr.mxu0 0.0
      %999 = vmatpush1.msra.mxu0 0.0
      %1000 = vmatprep.subr.mxu0 0.0
      %1001 = vmatpush1.msra.mxu0 0.0
      %1002 = vmatprep.subr.mxu0 0.0
      %1003 = vmatpush1.msra.mxu0 0.0
      %1004 = vmatprep.subr.mxu0 0.0
      %1005 = vmatpush1.msra.mxu0 0.0
      %1006 = vmatprep.subr.mxu0 0.0
      %1007 = vmatpush1.msra.mxu0 0.0
      %1008 = vmatprep.subr.mxu0 0.0
      %1009 = vmatpush1.msra.mxu0 0.0
      %1010 = vmatprep.subr.mxu0 0.0
      %1011 = vmatpush1.msra.mxu0 0.0
      %1012 = vmatprep.subr.mxu0 0.0
      %1013 = vmatpush1.msra.mxu0 0.0
      %1014 = vmatprep.subr.mxu0 0.0
      %1015 = vmatpush1.msra.mxu0 0.0
      %1016 = vmatprep.subr.mxu0 0.0
      %1017 = vmatpush1.msra.mxu0 0.0
      %1018 = vmatprep.subr.mxu0 0.0
      %1019 = vmatpush1.msra.mxu0 0.0
      %1020 = vmatprep.subr.mxu0 0.0
      %1021 = vmatpush1.msra.mxu0 0.0
      %1022 = vmatprep.subr.mxu0 0.0
      %1023 = vmatpush1.msra.mxu0 0.0
      %1024 = vmatprep.subr.mxu0 0.0
      %1025 = vmatpush1.msra.mxu0 0.0
      %1026 = vmatprep.subr.mxu0 0.0
      %1027 = vmatpush1.msra.mxu0 0.0
      %1028 = vmatprep.subr.mxu0 0.0
      %1029 = vmatpush1.msra.mxu0 0.0
      %1030 = vmatprep.subr.mxu0 0.0
      %1031 = vmatpush1.msra.mxu0 0.0
      %1032 = vmatprep.subr.mxu0 0.0
      %1033 = vmatpush1.msra.mxu0 0.0
      %1034 = vmatprep.subr.mxu0 0.0
      %1035 = vmatpush1.msra.mxu0 0.0
      %1036 = vmatprep.subr.mxu0 0.0
      %1037 = vmatpush1.msra.mxu0 0.0
      %1038 = vmatprep.subr.mxu0 0.0
      %1039 = vmatpush1.msra.mxu0 0.0
      %1040 = vmatprep.subr.mxu0 0.0
      %1041 = vmatpush1.msra.mxu0 0.0
      %1042 = vmatprep.subr.mxu0 0.0
      %1043 = vmatpush1.msra.mxu0 0.0
      %1044 = vmatprep.subr.mxu0 0.0
      %1045 = vmatpush1.msra.mxu0 0.0
      %1046 = vmatprep.subr.mxu0 0.0
      %1047 = vmatpush1.msra.mxu0 0.0
      %1048 = vmatprep.subr.mxu0 0.0
      %1049 = vmatpush1.msra.mxu0 0.0
      %1050 = vmatprep.subr.mxu0 0.0
      %1051 = vmatpush1.msra.mxu0 0.0
      %1052 = vmatprep.subr.mxu0 0.0
      %1053 = vmatpush1.msra.mxu0 0.0
      %1054 = vmatprep.mubr.f32.mxu0 0.0
      %1055 = vmatmul.mubr.f32.gmra.mrb[0].mxu0 %v911
      %v1056 = vpop.f32.mrb[0].mxu0
      %v1057 = vadd.f32 0.0, %v1056
      %v1058 = vpop.f32.mrb[0].mxu0
      %1059 = vdwg.mxu0
      %v1060 = vadd.f32 %v814, %v986
      %v1061 = vadd.f32 %v816, %v988
      %v1062 = vadd.f32 %v885, %v1057
      %s1063 = scalar_lea.vmem %s4, 24
      %v1064 = vld [vmem:[%s1063] sm:$0xff]
      %1065 = vrot.lane.b32.xlu0 %v551, 110
      %v1066 = vpop.permute.xlu0 %1065
      %1067 = vrot.lane.b32.xlu0 %v552, 110
      %v1068 = vpop.permute.xlu0 %1067
      %1069 = vrot.lane.b32.xlu0 %v553, 110
      %v1070 = vpop.permute.xlu0 %1069
      %1071 = vrot.lane.b32.xlu0 %v554, 110
      %v1072 = vpop.permute.xlu0 %1071
      %1073 = vrot.lane.b32.xlu0 %v555, 110
      %v1074 = vpop.permute.xlu0 %1073
      %1075 = vrot.lane.b32.xlu0 %v556, 110
      %v1076 = vpop.permute.xlu0 %1075
      %vm1077 = vcmask 900096
      %v1078 = vsel %vm1077, %v1066, %v1068
      %v1079 = vsel %vm1077, %v1068, %v1070
      %v1080 = vsel %vm1077, %v1072, %v1074
      %v1081 = vsel %vm1077, %v1074, %v1076
      %v1086 = vsel %vm586, %v1064, 0
      %v1088 = vsel %vm590, %v1080, 0
      %v1090 = vsel %vm590, %v1081, 0
      %v1092 = vsel %vm590, %v1076, 0
      %1094 = vmatprep.subr.mxu0 %v1079
      %1095 = vmatpush1.msra.mxu0 %v1078
      %1096 = vmatprep.subr.mxu0 %v1090
      %1097 = vmatpush1.msra.mxu0 %v1088
      %1098 = vmatprep.subr.mxu0 0.0
      %1099 = vmatpush1.msra.mxu0 0.0
      %1100 = vmatprep.subr.mxu0 0.0
      %1101 = vmatpush1.msra.mxu0 0.0
      %1102 = vmatprep.subr.mxu0 0.0
      %1103 = vmatpush1.msra.mxu0 0.0
      %1104 = vmatprep.subr.mxu0 0.0
      %1105 = vmatpush1.msra.mxu0 0.0
      %1106 = vmatprep.subr.mxu0 0.0
      %1107 = vmatpush1.msra.mxu0 0.0
      %1108 = vmatprep.subr.mxu0 0.0
      %1109 = vmatpush1.msra.mxu0 0.0
      %1110 = vmatprep.subr.mxu0 0.0
      %1111 = vmatpush1.msra.mxu0 0.0
      %1112 = vmatprep.subr.mxu0 0.0
      %1113 = vmatpush1.msra.mxu0 0.0
      %1114 = vmatprep.subr.mxu0 0.0
      %1115 = vmatpush1.msra.mxu0 0.0
      %1116 = vmatprep.subr.mxu0 0.0
      %1117 = vmatpush1.msra.mxu0 0.0
      %1118 = vmatprep.subr.mxu0 0.0
      %1119 = vmatpush1.msra.mxu0 0.0
      %1120 = vmatprep.subr.mxu0 0.0
      %1121 = vmatpush1.msra.mxu0 0.0
      %1122 = vmatprep.subr.mxu0 0.0
      %1123 = vmatpush1.msra.mxu0 0.0
      %1124 = vmatprep.subr.mxu0 0.0
      %1125 = vmatpush1.msra.mxu0 0.0
      %1126 = vmatprep.subr.mxu0 0.0
      %1127 = vmatpush1.msra.mxu0 0.0
      %1128 = vmatprep.subr.mxu0 0.0
      %1129 = vmatpush1.msra.mxu0 0.0
      %1130 = vmatprep.subr.mxu0 0.0
      %1131 = vmatpush1.msra.mxu0 0.0
      %1132 = vmatprep.subr.mxu0 0.0
      %1133 = vmatpush1.msra.mxu0 0.0
      %1134 = vmatprep.subr.mxu0 0.0
      %1135 = vmatpush1.msra.mxu0 0.0
      %1136 = vmatprep.subr.mxu0 0.0
      %1137 = vmatpush1.msra.mxu0 0.0
      %1138 = vmatprep.subr.mxu0 0.0
      %1139 = vmatpush1.msra.mxu0 0.0
      %1140 = vmatprep.subr.mxu0 0.0
      %1141 = vmatpush1.msra.mxu0 0.0
      %1142 = vmatprep.subr.mxu0 0.0
      %1143 = vmatpush1.msra.mxu0 0.0
      %1144 = vmatprep.subr.mxu0 0.0
      %1145 = vmatpush1.msra.mxu0 0.0
      %1146 = vmatprep.subr.mxu0 0.0
      %1147 = vmatpush1.msra.mxu0 0.0
      %1148 = vmatprep.subr.mxu0 0.0
      %1149 = vmatpush1.msra.mxu0 0.0
      %1150 = vmatprep.subr.mxu0 0.0
      %1151 = vmatpush1.msra.mxu0 0.0
      %1152 = vmatprep.subr.mxu0 0.0
      %1153 = vmatpush1.msra.mxu0 0.0
      %1154 = vmatprep.subr.mxu0 0.0
      %1155 = vmatpush1.msra.mxu0 0.0
      %1156 = vmatprep.subr.mxu0 0.0
      %1157 = vmatpush1.msra.mxu0 0.0
      %1158 = vmatprep.mubr.f32.mxu0 0.0
      %1159 = vmatmul.mubr.f32.gmra.mrb[0].mxu0 %v1086
      %v1160 = vpop.f32.mrb[0].mxu0
      %v1161 = vadd.f32 0.0, %v1160
      %v1162 = vpop.f32.mrb[0].mxu0
      %v1163 = vadd.f32 0.0, %v1162
      %1164 = vdwg.mxu0
      %1165 = vmatprep.subr.mxu0 0.0
      %1166 = vmatpush1.msra.mxu0 %v1070
      %1167 = vmatprep.subr.mxu0 0.0
      %1168 = vmatpush1.msra.mxu0 %v1092
      %1169 = vmatprep.subr.mxu0 0.0
      %1170 = vmatpush1.msra.mxu0 0.0
      %1171 = vmatprep.subr.mxu0 0.0
      %1172 = vmatpush1.msra.mxu0 0.0
      %1173 = vmatprep.subr.mxu0 0.0
      %1174 = vmatpush1.msra.mxu0 0.0
      %1175 = vmatprep.subr.mxu0 0.0
      %1176 = vmatpush1.msra.mxu0 0.0
      %1177 = vmatprep.subr.mxu0 0.0
      %1178 = vmatpush1.msra.mxu0 0.0
      %1179 = vmatprep.subr.mxu0 0.0
      %1180 = vmatpush1.msra.mxu0 0.0
      %1181 = vmatprep.subr.mxu0 0.0
      %1182 = vmatpush1.msra.mxu0 0.0
      %1183 = vmatprep.subr.mxu0 0.0
      %1184 = vmatpush1.msra.mxu0 0.0
      %1185 = vmatprep.subr.mxu0 0.0
      %1186 = vmatpush1.msra.mxu0 0.0
      %1187 = vmatprep.subr.mxu0 0.0
      %1188 = vmatpush1.msra.mxu0 0.0
      %1189 = vmatprep.subr.mxu0 0.0
      %1190 = vmatpush1.msra.mxu0 0.0
      %1191 = vmatprep.subr.mxu0 0.0
      %1192 = vmatpush1.msra.mxu0 0.0
      %1193 = vmatprep.subr.mxu0 0.0
      %1194 = vmatpush1.msra.mxu0 0.0
      %1195 = vmatprep.subr.mxu0 0.0
      %1196 = vmatpush1.msra.mxu0 0.0
      %1197 = vmatprep.subr.mxu0 0.0
      %1198 = vmatpush1.msra.mxu0 0.0
      %1199 = vmatprep.subr.mxu0 0.0
      %1200 = vmatpush1.msra.mxu0 0.0
      %1201 = vmatprep.subr.mxu0 0.0
      %1202 = vmatpush1.msra.mxu0 0.0
      %1203 = vmatprep.subr.mxu0 0.0
      %1204 = vmatpush1.msra.mxu0 0.0
      %1205 = vmatprep.subr.mxu0 0.0
      %1206 = vmatpush1.msra.mxu0 0.0
      %1207 = vmatprep.subr.mxu0 0.0
      %1208 = vmatpush1.msra.mxu0 0.0
      %1209 = vmatprep.subr.mxu0 0.0
      %1210 = vmatpush1.msra.mxu0 0.0
      %1211 = vmatprep.subr.mxu0 0.0
      %1212 = vmatpush1.msra.mxu0 0.0
      %1213 = vmatprep.subr.mxu0 0.0
      %1214 = vmatpush1.msra.mxu0 0.0
      %1215 = vmatprep.subr.mxu0 0.0
      %1216 = vmatpush1.msra.mxu0 0.0
      %1217 = vmatprep.subr.mxu0 0.0
      %1218 = vmatpush1.msra.mxu0 0.0
      %1219 = vmatprep.subr.mxu0 0.0
      %1220 = vmatpush1.msra.mxu0 0.0
      %1221 = vmatprep.subr.mxu0 0.0
      %1222 = vmatpush1.msra.mxu0 0.0
      %1223 = vmatprep.subr.mxu0 0.0
      %1224 = vmatpush1.msra.mxu0 0.0
      %1225 = vmatprep.subr.mxu0 0.0
      %1226 = vmatpush1.msra.mxu0 0.0
      %1227 = vmatprep.subr.mxu0 0.0
      %1228 = vmatpush1.msra.mxu0 0.0
      %1229 = vmatprep.mubr.f32.mxu0 0.0
      %1230 = vmatmul.mubr.f32.gmra.mrb[0].mxu0 %v1086
      %v1231 = vpop.f32.mrb[0].mxu0
      %v1232 = vadd.f32 0.0, %v1231
      %v1233 = vpop.f32.mrb[0].mxu0
      %1234 = vdwg.mxu0
      %v1235 = vadd.f32 %v1060, %v1161
      %v1236 = vadd.f32 %v1061, %v1163
      %v1237 = vadd.f32 %v1062, %v1232
      %s1238 = scalar_lea.vmem %s4, 32
      %v1239 = vld [vmem:[%s1238] sm:$0xff]
      %1240 = vrot.lane.b32.xlu0 %v551, 109
      %v1241 = vpop.permute.xlu0 %1240
      %1242 = vrot.lane.b32.xlu0 %v552, 109
      %v1243 = vpop.permute.xlu0 %1242
      %1244 = vrot.lane.b32.xlu0 %v553, 109
      %v1245 = vpop.permute.xlu0 %1244
      %1246 = vrot.lane.b32.xlu0 %v554, 109
      %v1247 = vpop.permute.xlu0 %1246
      %1248 = vrot.lane.b32.xlu0 %v555, 109
      %v1249 = vpop.permute.xlu0 %1248
      %1250 = vrot.lane.b32.xlu0 %v556, 109
      %v1251 = vpop.permute.xlu0 %1250
      %vm1252 = vcmask 891904
      %v1253 = vsel %vm1252, %v1241, %v1243
      %v1254 = vsel %vm1252, %v1243, %v1245
      %v1255 = vsel %vm1252, %v1247, %v1249
      %v1256 = vsel %vm1252, %v1249, %v1251
      %v1261 = vsel %vm586, %v1239, 0
      %v1263 = vsel %vm590, %v1255, 0
      %v1265 = vsel %vm590, %v1256, 0
      %v1267 = vsel %vm590, %v1251, 0
      %1269 = vmatprep.subr.mxu0 %v1254
      %1270 = vmatpush1.msra.mxu0 %v1253
      %1271 = vmatprep.subr.mxu0 %v1265
      %1272 = vmatpush1.msra.mxu0 %v1263
      %1273 = vmatprep.subr.mxu0 0.0
      %1274 = vmatpush1.msra.mxu0 0.0
      %1275 = vmatprep.subr.mxu0 0.0
      %1276 = vmatpush1.msra.mxu0 0.0
      %1277 = vmatprep.subr.mxu0 0.0
      %1278 = vmatpush1.msra.mxu0 0.0
      %1279 = vmatprep.subr.mxu0 0.0
      %1280 = vmatpush1.msra.mxu0 0.0
      %1281 = vmatprep.subr.mxu0 0.0
      %1282 = vmatpush1.msra.mxu0 0.0
      %1283 = vmatprep.subr.mxu0 0.0
      %1284 = vmatpush1.msra.mxu0 0.0
      %1285 = vmatprep.subr.mxu0 0.0
      %1286 = vmatpush1.msra.mxu0 0.0
      %1287 = vmatprep.subr.mxu0 0.0
      %1288 = vmatpush1.msra.mxu0 0.0
      %1289 = vmatprep.subr.mxu0 0.0
      %1290 = vmatpush1.msra.mxu0 0.0
      %1291 = vmatprep.subr.mxu0 0.0
      %1292 = vmatpush1.msra.mxu0 0.0
      %1293 = vmatprep.subr.mxu0 0.0
      %1294 = vmatpush1.msra.mxu0 0.0
      %1295 = vmatprep.subr.mxu0 0.0
      %1296 = vmatpush1.msra.mxu0 0.0
      %1297 = vmatprep.subr.mxu0 0.0
      %1298 = vmatpush1.msra.mxu0 0.0
      %1299 = vmatprep.subr.mxu0 0.0
      %1300 = vmatpush1.msra.mxu0 0.0
      %1301 = vmatprep.subr.mxu0 0.0
      %1302 = vmatpush1.msra.mxu0 0.0
      %1303 = vmatprep.subr.mxu0 0.0
      %1304 = vmatpush1.msra.mxu0 0.0
      %1305 = vmatprep.subr.mxu0 0.0
      %1306 = vmatpush1.msra.mxu0 0.0
      %1307 = vmatprep.subr.mxu0 0.0
      %1308 = vmatpush1.msra.mxu0 0.0
      %1309 = vmatprep.subr.mxu0 0.0
      %1310 = vmatpush1.msra.mxu0 0.0
      %1311 = vmatprep.subr.mxu0 0.0
      %1312 = vmatpush1.msra.mxu0 0.0
      %1313 = vmatprep.subr.mxu0 0.0
      %1314 = vmatpush1.msra.mxu0 0.0
      %1315 = vmatprep.subr.mxu0 0.0
      %1316 = vmatpush1.msra.mxu0 0.0
      %1317 = vmatprep.subr.mxu0 0.0
      %1318 = vmatpush1.msra.mxu0 0.0
      %1319 = vmatprep.subr.mxu0 0.0
      %1320 = vmatpush1.msra.mxu0 0.0
      %1321 = vmatprep.subr.mxu0 0.0
      %1322 = vmatpush1.msra.mxu0 0.0
      %1323 = vmatprep.subr.mxu0 0.0
      %1324 = vmatpush1.msra.mxu0 0.0
      %1325 = vmatprep.subr.mxu0 0.0
      %1326 = vmatpush1.msra.mxu0 0.0
      %1327 = vmatprep.subr.mxu0 0.0
      %1328 = vmatpush1.msra.mxu0 0.0
      %1329 = vmatprep.subr.mxu0 0.0
      %1330 = vmatpush1.msra.mxu0 0.0
      %1331 = vmatprep.subr.mxu0 0.0
      %1332 = vmatpush1.msra.mxu0 0.0
      %1333 = vmatprep.mubr.f32.mxu0 0.0
      %1334 = vmatmul.mubr.f32.gmra.mrb[0].mxu0 %v1261
      %v1335 = vpop.f32.mrb[0].mxu0
      %v1336 = vadd.f32 0.0, %v1335
      %v1337 = vpop.f32.mrb[0].mxu0
      %v1338 = vadd.f32 0.0, %v1337
      %1339 = vdwg.mxu0
      %1340 = vmatprep.subr.mxu0 0.0
      %1341 = vmatpush1.msra.mxu0 %v1245
      %1342 = vmatprep.subr.mxu0 0.0
      %1343 = vmatpush1.msra.mxu0 %v1267
      %1344 = vmatprep.subr.mxu0 0.0
      %1345 = vmatpush1.msra.mxu0 0.0
      %1346 = vmatprep.subr.mxu0 0.0
      %1347 = vmatpush1.msra.mxu0 0.0
      %1348 = vmatprep.subr.mxu0 0.0
      %1349 = vmatpush1.msra.mxu0 0.0
      %1350 = vmatprep.subr.mxu0 0.0
      %1351 = vmatpush1.msra.mxu0 0.0
      %1352 = vmatprep.subr.mxu0 0.0
      %1353 = vmatpush1.msra.mxu0 0.0
      %1354 = vmatprep.subr.mxu0 0.0
      %1355 = vmatpush1.msra.mxu0 0.0
      %1356 = vmatprep.subr.mxu0 0.0
      %1357 = vmatpush1.msra.mxu0 0.0
      %1358 = vmatprep.subr.mxu0 0.0
      %1359 = vmatpush1.msra.mxu0 0.0
      %1360 = vmatprep.subr.mxu0 0.0
      %1361 = vmatpush1.msra.mxu0 0.0
      %1362 = vmatprep.subr.mxu0 0.0
      %1363 = vmatpush1.msra.mxu0 0.0
      %1364 = vmatprep.subr.mxu0 0.0
      %1365 = vmatpush1.msra.mxu0 0.0
      %1366 = vmatprep.subr.mxu0 0.0
      %1367 = vmatpush1.msra.mxu0 0.0
      %1368 = vmatprep.subr.mxu0 0.0
      %1369 = vmatpush1.msra.mxu0 0.0
      %1370 = vmatprep.subr.mxu0 0.0
      %1371 = vmatpush1.msra.mxu0 0.0
      %1372 = vmatprep.subr.mxu0 0.0
      %1373 = vmatpush1.msra.mxu0 0.0
      %1374 = vmatprep.subr.mxu0 0.0
      %1375 = vmatpush1.msra.mxu0 0.0
      %1376 = vmatprep.subr.mxu0 0.0
      %1377 = vmatpush1.msra.mxu0 0.0
      %1378 = vmatprep.subr.mxu0 0.0
      %1379 = vmatpush1.msra.mxu0 0.0
      %1380 = vmatprep.subr.mxu0 0.0
      %1381 = vmatpush1.msra.mxu0 0.0
      %1382 = vmatprep.subr.mxu0 0.0
      %1383 = vmatpush1.msra.mxu0 0.0
      %1384 = vmatprep.subr.mxu0 0.0
      %1385 = vmatpush1.msra.mxu0 0.0
      %1386 = vmatprep.subr.mxu0 0.0
      %1387 = vmatpush1.msra.mxu0 0.0
      %1388 = vmatprep.subr.mxu0 0.0
      %1389 = vmatpush1.msra.mxu0 0.0
      %1390 = vmatprep.subr.mxu0 0.0
      %1391 = vmatpush1.msra.mxu0 0.0
      %1392 = vmatprep.subr.mxu0 0.0
      %1393 = vmatpush1.msra.mxu0 0.0
      %1394 = vmatprep.subr.mxu0 0.0
      %1395 = vmatpush1.msra.mxu0 0.0
      %1396 = vmatprep.subr.mxu0 0.0
      %1397 = vmatpush1.msra.mxu0 0.0
      %1398 = vmatprep.subr.mxu0 0.0
      %1399 = vmatpush1.msra.mxu0 0.0
      %1400 = vmatprep.subr.mxu0 0.0
      %1401 = vmatpush1.msra.mxu0 0.0
      %1402 = vmatprep.subr.mxu0 0.0
      %1403 = vmatpush1.msra.mxu0 0.0
      %1404 = vmatprep.mubr.f32.mxu0 0.0
      %1405 = vmatmul.mubr.f32.gmra.mrb[0].mxu0 %v1261
      %v1406 = vpop.f32.mrb[0].mxu0
      %v1407 = vadd.f32 0.0, %v1406
      %v1408 = vpop.f32.mrb[0].mxu0
      %1409 = vdwg.mxu0
      %v1410 = vadd.f32 %v1235, %v1336
      %v1411 = vadd.f32 %v1236, %v1338
      %v1412 = vadd.f32 %v1237, %v1407
      %s1413 = scalar_lea.vmem %s4, 40
      %v1414 = vld [vmem:[%s1413] sm:$0xff]
      %1415 = vrot.lane.b32.xlu0 %v551, 108
      %v1416 = vpop.permute.xlu0 %1415
      %1417 = vrot.lane.b32.xlu0 %v552, 108
      %v1418 = vpop.permute.xlu0 %1417
      %1419 = vrot.lane.b32.xlu0 %v553, 108
      %v1420 = vpop.permute.xlu0 %1419
      %1421 = vrot.lane.b32.xlu0 %v554, 108
      %v1422 = vpop.permute.xlu0 %1421
      %1423 = vrot.lane.b32.xlu0 %v555, 108
      %v1424 = vpop.permute.xlu0 %1423
      %1425 = vrot.lane.b32.xlu0 %v556, 108
      %v1426 = vpop.permute.xlu0 %1425
      %vm1427 = vcmask 883712
      %v1428 = vsel %vm1427, %v1416, %v1418
      %v1429 = vsel %vm1427, %v1418, %v1420
      %v1430 = vsel %vm1427, %v1422, %v1424
      %v1431 = vsel %vm1427, %v1424, %v1426
      %v1436 = vsel %vm586, %v1414, 0
      %v1438 = vsel %vm590, %v1430, 0
      %v1440 = vsel %vm590, %v1431, 0
      %v1442 = vsel %vm590, %v1426, 0
      %1444 = vmatprep.subr.mxu0 %v1429
      %1445 = vmatpush1.msra.mxu0 %v1428
      %1446 = vmatprep.subr.mxu0 %v1440
      %1447 = vmatpush1.msra.mxu0 %v1438
      %1448 = vmatprep.subr.mxu0 0.0
      %1449 = vmatpush1.msra.mxu0 0.0
      %1450 = vmatprep.subr.mxu0 0.0
      %1451 = vmatpush1.msra.mxu0 0.0
      %1452 = vmatprep.subr.mxu0 0.0
      %1453 = vmatpush1.msra.mxu0 0.0
      %1454 = vmatprep.subr.mxu0 0.0
      %1455 = vmatpush1.msra.mxu0 0.0
      %1456 = vmatprep.subr.mxu0 0.0
      %1457 = vmatpush1.msra.mxu0 0.0
      %1458 = vmatprep.subr.mxu0 0.0
      %1459 = vmatpush1.msra.mxu0 0.0
      %1460 = vmatprep.subr.mxu0 0.0
      %1461 = vmatpush1.msra.mxu0 0.0
      %1462 = vmatprep.subr.mxu0 0.0
      %1463 = vmatpush1.msra.mxu0 0.0
      %1464 = vmatprep.subr.mxu0 0.0
      %1465 = vmatpush1.msra.mxu0 0.0
      %1466 = vmatprep.subr.mxu0 0.0
      %1467 = vmatpush1.msra.mxu0 0.0
      %1468 = vmatprep.subr.mxu0 0.0
      %1469 = vmatpush1.msra.mxu0 0.0
      %1470 = vmatprep.subr.mxu0 0.0
      %1471 = vmatpush1.msra.mxu0 0.0
      %1472 = vmatprep.subr.mxu0 0.0
      %1473 = vmatpush1.msra.mxu0 0.0
      %1474 = vmatprep.subr.mxu0 0.0
      %1475 = vmatpush1.msra.mxu0 0.0
      %1476 = vmatprep.subr.mxu0 0.0
      %1477 = vmatpush1.msra.mxu0 0.0
      %1478 = vmatprep.subr.mxu0 0.0
      %1479 = vmatpush1.msra.mxu0 0.0
      %1480 = vmatprep.subr.mxu0 0.0
      %1481 = vmatpush1.msra.mxu0 0.0
      %1482 = vmatprep.subr.mxu0 0.0
      %1483 = vmatpush1.msra.mxu0 0.0
      %1484 = vmatprep.subr.mxu0 0.0
      %1485 = vmatpush1.msra.mxu0 0.0
      %1486 = vmatprep.subr.mxu0 0.0
      %1487 = vmatpush1.msra.mxu0 0.0
      %1488 = vmatprep.subr.mxu0 0.0
      %1489 = vmatpush1.msra.mxu0 0.0
      %1490 = vmatprep.subr.mxu0 0.0
      %1491 = vmatpush1.msra.mxu0 0.0
      %1492 = vmatprep.subr.mxu0 0.0
      %1493 = vmatpush1.msra.mxu0 0.0
      %1494 = vmatprep.subr.mxu0 0.0
      %1495 = vmatpush1.msra.mxu0 0.0
      %1496 = vmatprep.subr.mxu0 0.0
      %1497 = vmatpush1.msra.mxu0 0.0
      %1498 = vmatprep.subr.mxu0 0.0
      %1499 = vmatpush1.msra.mxu0 0.0
      %1500 = vmatprep.subr.mxu0 0.0
      %1501 = vmatpush1.msra.mxu0 0.0
      %1502 = vmatprep.subr.mxu0 0.0
      %1503 = vmatpush1.msra.mxu0 0.0
      %1504 = vmatprep.subr.mxu0 0.0
      %1505 = vmatpush1.msra.mxu0 0.0
      %1506 = vmatprep.subr.mxu0 0.0
      %1507 = vmatpush1.msra.mxu0 0.0
      %1508 = vmatprep.mubr.f32.mxu0 0.0
      %1509 = vmatmul.mubr.f32.gmra.mrb[0].mxu0 %v1436
      %v1510 = vpop.f32.mrb[0].mxu0
      %v1511 = vadd.f32 0.0, %v1510
      %v1512 = vpop.f32.mrb[0].mxu0
      %v1513 = vadd.f32 0.0, %v1512
      %1514 = vdwg.mxu0
      %1515 = vmatprep.subr.mxu0 0.0
      %1516 = vmatpush1.msra.mxu0 %v1420
      %1517 = vmatprep.subr.mxu0 0.0
      %1518 = vmatpush1.msra.mxu0 %v1442
      %1519 = vmatprep.subr.mxu0 0.0
      %1520 = vmatpush1.msra.mxu0 0.0
      %1521 = vmatprep.subr.mxu0 0.0
      %1522 = vmatpush1.msra.mxu0 0.0
      %1523 = vmatprep.subr.mxu0 0.0
      %1524 = vmatpush1.msra.mxu0 0.0
      %1525 = vmatprep.subr.mxu0 0.0
      %1526 = vmatpush1.msra.mxu0 0.0
      %1527 = vmatprep.subr.mxu0 0.0
      %1528 = vmatpush1.msra.mxu0 0.0
      %1529 = vmatprep.subr.mxu0 0.0
      %1530 = vmatpush1.msra.mxu0 0.0
      %1531 = vmatprep.subr.mxu0 0.0
      %1532 = vmatpush1.msra.mxu0 0.0
      %1533 = vmatprep.subr.mxu0 0.0
      %1534 = vmatpush1.msra.mxu0 0.0
      %1535 = vmatprep.subr.mxu0 0.0
      %1536 = vmatpush1.msra.mxu0 0.0
      %1537 = vmatprep.subr.mxu0 0.0
      %1538 = vmatpush1.msra.mxu0 0.0
      %1539 = vmatprep.subr.mxu0 0.0
      %1540 = vmatpush1.msra.mxu0 0.0
      %1541 = vmatprep.subr.mxu0 0.0
      %1542 = vmatpush1.msra.mxu0 0.0
      %1543 = vmatprep.subr.mxu0 0.0
      %1544 = vmatpush1.msra.mxu0 0.0
      %1545 = vmatprep.subr.mxu0 0.0
      %1546 = vmatpush1.msra.mxu0 0.0
      %1547 = vmatprep.subr.mxu0 0.0
      %1548 = vmatpush1.msra.mxu0 0.0
      %1549 = vmatprep.subr.mxu0 0.0
      %1550 = vmatpush1.msra.mxu0 0.0
      %1551 = vmatprep.subr.mxu0 0.0
      %1552 = vmatpush1.msra.mxu0 0.0
      %1553 = vmatprep.subr.mxu0 0.0
      %1554 = vmatpush1.msra.mxu0 0.0
      %1555 = vmatprep.subr.mxu0 0.0
      %1556 = vmatpush1.msra.mxu0 0.0
      %1557 = vmatprep.subr.mxu0 0.0
      %1558 = vmatpush1.msra.mxu0 0.0
      %1559 = vmatprep.subr.mxu0 0.0
      %1560 = vmatpush1.msra.mxu0 0.0
      %1561 = vmatprep.subr.mxu0 0.0
      %1562 = vmatpush1.msra.mxu0 0.0
      %1563 = vmatprep.subr.mxu0 0.0
      %1564 = vmatpush1.msra.mxu0 0.0
      %1565 = vmatprep.subr.mxu0 0.0
      %1566 = vmatpush1.msra.mxu0 0.0
      %1567 = vmatprep.subr.mxu0 0.0
      %1568 = vmatpush1.msra.mxu0 0.0
      %1569 = vmatprep.subr.mxu0 0.0
      %1570 = vmatpush1.msra.mxu0 0.0
      %1571 = vmatprep.subr.mxu0 0.0
      %1572 = vmatpush1.msra.mxu0 0.0
      %1573 = vmatprep.subr.mxu0 0.0
      %1574 = vmatpush1.msra.mxu0 0.0
      %1575 = vmatprep.subr.mxu0 0.0
      %1576 = vmatpush1.msra.mxu0 0.0
      %1577 = vmatprep.subr.mxu0 0.0
      %1578 = vmatpush1.msra.mxu0 0.0
      %1579 = vmatprep.mubr.f32.mxu0 0.0
      %1580 = vmatmul.mubr.f32.gmra.mrb[0].mxu0 %v1436
      %v1581 = vpop.f32.mrb[0].mxu0
      %v1582 = vadd.f32 0.0, %v1581
      %v1583 = vpop.f32.mrb[0].mxu0
      %1584 = vdwg.mxu0
      %v1585 = vadd.f32 %v1410, %v1511
      %v1586 = vadd.f32 %v1411, %v1513
      %v1587 = vadd.f32 %v1412, %v1582
      %s1588 = scalar_lea.vmem %s4, 48
      %v1589 = vld [vmem:[%s1588] sm:$0xff]
      %1590 = vrot.lane.b32.xlu0 %v551, 92
      %v1591 = vpop.permute.xlu0 %1590
      %1592 = vrot.lane.b32.xlu0 %v552, 92
      %v1593 = vpop.permute.xlu0 %1592
      %1594 = vrot.lane.b32.xlu0 %v553, 92
      %v1595 = vpop.permute.xlu0 %1594
      %1596 = vrot.lane.b32.xlu0 %v554, 92
      %v1597 = vpop.permute.xlu0 %1596
      %1598 = vrot.lane.b32.xlu0 %v555, 92
      %v1599 = vpop.permute.xlu0 %1598
      %1600 = vrot.lane.b32.xlu0 %v556, 92
      %v1601 = vpop.permute.xlu0 %1600
      %vm1602 = vcmask 752640
      %v1603 = vsel %vm1602, %v1591, %v1593
      %v1604 = vsel %vm1602, %v1593, %v1595
      %v1605 = vsel %vm1602, %v1597, %v1599
      %v1606 = vsel %vm1602, %v1599, %v1601
      %v1611 = vsel %vm586, %v1589, 0
      %v1613 = vsel %vm590, %v1605, 0
      %v1615 = vsel %vm590, %v1606, 0
      %v1617 = vsel %vm590, %v1601, 0
      %1619 = vmatprep.subr.mxu0 %v1604
      %1620 = vmatpush1.msra.mxu0 %v1603
      %1621 = vmatprep.subr.mxu0 %v1615
      %1622 = vmatpush1.msra.mxu0 %v1613
      %1623 = vmatprep.subr.mxu0 0.0
      %1624 = vmatpush1.msra.mxu0 0.0
      %1625 = vmatprep.subr.mxu0 0.0
      %1626 = vmatpush1.msra.mxu0 0.0
      %1627 = vmatprep.subr.mxu0 0.0
      %1628 = vmatpush1.msra.mxu0 0.0
      %1629 = vmatprep.subr.mxu0 0.0
      %1630 = vmatpush1.msra.mxu0 0.0
      %1631 = vmatprep.subr.mxu0 0.0
      %1632 = vmatpush1.msra.mxu0 0.0
      %1633 = vmatprep.subr.mxu0 0.0
      %1634 = vmatpush1.msra.mxu0 0.0
      %1635 = vmatprep.subr.mxu0 0.0
      %1636 = vmatpush1.msra.mxu0 0.0
      %1637 = vmatprep.subr.mxu0 0.0
      %1638 = vmatpush1.msra.mxu0 0.0
      %1639 = vmatprep.subr.mxu0 0.0
      %1640 = vmatpush1.msra.mxu0 0.0
      %1641 = vmatprep.subr.mxu0 0.0
      %1642 = vmatpush1.msra.mxu0 0.0
      %1643 = vmatprep.subr.mxu0 0.0
      %1644 = vmatpush1.msra.mxu0 0.0
      %1645 = vmatprep.subr.mxu0 0.0
      %1646 = vmatpush1.msra.mxu0 0.0
      %1647 = vmatprep.subr.mxu0 0.0
      %1648 = vmatpush1.msra.mxu0 0.0
      %1649 = vmatprep.subr.mxu0 0.0
      %1650 = vmatpush1.msra.mxu0 0.0
      %1651 = vmatprep.subr.mxu0 0.0
      %1652 = vmatpush1.msra.mxu0 0.0
      %1653 = vmatprep.subr.mxu0 0.0
      %1654 = vmatpush1.msra.mxu0 0.0
      %1655 = vmatprep.subr.mxu0 0.0
      %1656 = vmatpush1.msra.mxu0 0.0
      %1657 = vmatprep.subr.mxu0 0.0
      %1658 = vmatpush1.msra.mxu0 0.0
      %1659 = vmatprep.subr.mxu0 0.0
      %1660 = vmatpush1.msra.mxu0 0.0
      %1661 = vmatprep.subr.mxu0 0.0
      %1662 = vmatpush1.msra.mxu0 0.0
      %1663 = vmatprep.subr.mxu0 0.0
      %1664 = vmatpush1.msra.mxu0 0.0
      %1665 = vmatprep.subr.mxu0 0.0
      %1666 = vmatpush1.msra.mxu0 0.0
      %1667 = vmatprep.subr.mxu0 0.0
      %1668 = vmatpush1.msra.mxu0 0.0
      %1669 = vmatprep.subr.mxu0 0.0
      %1670 = vmatpush1.msra.mxu0 0.0
      %1671 = vmatprep.subr.mxu0 0.0
      %1672 = vmatpush1.msra.mxu0 0.0
      %1673 = vmatprep.subr.mxu0 0.0
      %1674 = vmatpush1.msra.mxu0 0.0
      %1675 = vmatprep.subr.mxu0 0.0
      %1676 = vmatpush1.msra.mxu0 0.0
      %1677 = vmatprep.subr.mxu0 0.0
      %1678 = vmatpush1.msra.mxu0 0.0
      %1679 = vmatprep.subr.mxu0 0.0
      %1680 = vmatpush1.msra.mxu0 0.0
      %1681 = vmatprep.subr.mxu0 0.0
      %1682 = vmatpush1.msra.mxu0 0.0
      %1683 = vmatprep.mubr.f32.mxu0 0.0
      %1684 = vmatmul.mubr.f32.gmra.mrb[0].mxu0 %v1611
      %v1685 = vpop.f32.mrb[0].mxu0
      %v1686 = vadd.f32 0.0, %v1685
      %v1687 = vpop.f32.mrb[0].mxu0
      %v1688 = vadd.f32 0.0, %v1687
      %1689 = vdwg.mxu0
      %1690 = vmatprep.subr.mxu0 0.0
      %1691 = vmatpush1.msra.mxu0 %v1595
      %1692 = vmatprep.subr.mxu0 0.0
      %1693 = vmatpush1.msra.mxu0 %v1617
      %1694 = vmatprep.subr.mxu0 0.0
      %1695 = vmatpush1.msra.mxu0 0.0
      %1696 = vmatprep.subr.mxu0 0.0
      %1697 = vmatpush1.msra.mxu0 0.0
      %1698 = vmatprep.subr.mxu0 0.0
      %1699 = vmatpush1.msra.mxu0 0.0
      %1700 = vmatprep.subr.mxu0 0.0
      %1701 = vmatpush1.msra.mxu0 0.0
      %1702 = vmatprep.subr.mxu0 0.0
      %1703 = vmatpush1.msra.mxu0 0.0
      %1704 = vmatprep.subr.mxu0 0.0
      %1705 = vmatpush1.msra.mxu0 0.0
      %1706 = vmatprep.subr.mxu0 0.0
      %1707 = vmatpush1.msra.mxu0 0.0
      %1708 = vmatprep.subr.mxu0 0.0
      %1709 = vmatpush1.msra.mxu0 0.0
      %1710 = vmatprep.subr.mxu0 0.0
      %1711 = vmatpush1.msra.mxu0 0.0
      %1712 = vmatprep.subr.mxu0 0.0
      %1713 = vmatpush1.msra.mxu0 0.0
      %1714 = vmatprep.subr.mxu0 0.0
      %1715 = vmatpush1.msra.mxu0 0.0
      %1716 = vmatprep.subr.mxu0 0.0
      %1717 = vmatpush1.msra.mxu0 0.0
      %1718 = vmatprep.subr.mxu0 0.0
      %1719 = vmatpush1.msra.mxu0 0.0
      %1720 = vmatprep.subr.mxu0 0.0
      %1721 = vmatpush1.msra.mxu0 0.0
      %1722 = vmatprep.subr.mxu0 0.0
      %1723 = vmatpush1.msra.mxu0 0.0
      %1724 = vmatprep.subr.mxu0 0.0
      %1725 = vmatpush1.msra.mxu0 0.0
      %1726 = vmatprep.subr.mxu0 0.0
      %1727 = vmatpush1.msra.mxu0 0.0
      %1728 = vmatprep.subr.mxu0 0.0
      %1729 = vmatpush1.msra.mxu0 0.0
      %1730 = vmatprep.subr.mxu0 0.0
      %1731 = vmatpush1.msra.mxu0 0.0
      %1732 = vmatprep.subr.mxu0 0.0
      %1733 = vmatpush1.msra.mxu0 0.0
      %1734 = vmatprep.subr.mxu0 0.0
      %1735 = vmatpush1.msra.mxu0 0.0
      %1736 = vmatprep.subr.mxu0 0.0
      %1737 = vmatpush1.msra.mxu0 0.0
      %1738 = vmatprep.subr.mxu0 0.0
      %1739 = vmatpush1.msra.mxu0 0.0
      %1740 = vmatprep.subr.mxu0 0.0
      %1741 = vmatpush1.msra.mxu0 0.0
      %1742 = vmatprep.subr.mxu0 0.0
      %1743 = vmatpush1.msra.mxu0 0.0
      %1744 = vmatprep.subr.mxu0 0.0
      %1745 = vmatpush1.msra.mxu0 0.0
      %1746 = vmatprep.subr.mxu0 0.0
      %1747 = vmatpush1.msra.mxu0 0.0
      %1748 = vmatprep.subr.mxu0 0.0
      %1749 = vmatpush1.msra.mxu0 0.0
      %1750 = vmatprep.subr.mxu0 0.0
      %1751 = vmatpush1.msra.mxu0 0.0
      %1752 = vmatprep.subr.mxu0 0.0
      %1753 = vmatpush1.msra.mxu0 0.0
      %1754 = vmatprep.mubr.f32.mxu0 0.0
      %1755 = vmatmul.mubr.f32.gmra.mrb[0].mxu0 %v1611
      %v1756 = vpop.f32.mrb[0].mxu0
      %v1757 = vadd.f32 0.0, %v1756
      %v1758 = vpop.f32.mrb[0].mxu0
      %1759 = vdwg.mxu0
      %v1760 = vadd.f32 %v1585, %v1686
      %v1761 = vadd.f32 %v1586, %v1688
      %v1762 = vadd.f32 %v1587, %v1757
      %s1763 = scalar_lea.vmem %s4, 56
      %v1764 = vld [vmem:[%s1763] sm:$0xff]
      %1765 = vrot.lane.b32.xlu0 %v551, 91
      %v1766 = vpop.permute.xlu0 %1765
      %1767 = vrot.lane.b32.xlu0 %v552, 91
      %v1768 = vpop.permute.xlu0 %1767
      %1769 = vrot.lane.b32.xlu0 %v553, 91
      %v1770 = vpop.permute.xlu0 %1769
      %1771 = vrot.lane.b32.xlu0 %v554, 91
      %v1772 = vpop.permute.xlu0 %1771
      %1773 = vrot.lane.b32.xlu0 %v555, 91
      %v1774 = vpop.permute.xlu0 %1773
      %1775 = vrot.lane.b32.xlu0 %v556, 91
      %v1776 = vpop.permute.xlu0 %1775
      %vm1777 = vcmask 744448
      %v1778 = vsel %vm1777, %v1766, %v1768
      %v1779 = vsel %vm1777, %v1768, %v1770
      %v1780 = vsel %vm1777, %v1772, %v1774
      %v1781 = vsel %vm1777, %v1774, %v1776
      %v1786 = vsel %vm586, %v1764, 0
      %v1788 = vsel %vm590, %v1780, 0
      %v1790 = vsel %vm590, %v1781, 0
      %v1792 = vsel %vm590, %v1776, 0
      %1794 = vmatprep.subr.mxu0 %v1779
      %1795 = vmatpush1.msra.mxu0 %v1778
      %1796 = vmatprep.subr.mxu0 %v1790
      %1797 = vmatpush1.msra.mxu0 %v1788
      %1798 = vmatprep.subr.mxu0 0.0
      %1799 = vmatpush1.msra.mxu0 0.0
      %1800 = vmatprep.subr.mxu0 0.0
      %1801 = vmatpush1.msra.mxu0 0.0
      %1802 = vmatprep.subr.mxu0 0.0
      %1803 = vmatpush1.msra.mxu0 0.0
      %1804 = vmatprep.subr.mxu0 0.0
      %1805 = vmatpush1.msra.mxu0 0.0
      %1806 = vmatprep.subr.mxu0 0.0
      %1807 = vmatpush1.msra.mxu0 0.0
      %1808 = vmatprep.subr.mxu0 0.0
      %1809 = vmatpush1.msra.mxu0 0.0
      %1810 = vmatprep.subr.mxu0 0.0
      %1811 = vmatpush1.msra.mxu0 0.0
      %1812 = vmatprep.subr.mxu0 0.0
      %1813 = vmatpush1.msra.mxu0 0.0
      %1814 = vmatprep.subr.mxu0 0.0
      %1815 = vmatpush1.msra.mxu0 0.0
      %1816 = vmatprep.subr.mxu0 0.0
      %1817 = vmatpush1.msra.mxu0 0.0
      %1818 = vmatprep.subr.mxu0 0.0
      %1819 = vmatpush1.msra.mxu0 0.0
      %1820 = vmatprep.subr.mxu0 0.0
      %1821 = vmatpush1.msra.mxu0 0.0
      %1822 = vmatprep.subr.mxu0 0.0
      %1823 = vmatpush1.msra.mxu0 0.0
      %1824 = vmatprep.subr.mxu0 0.0
      %1825 = vmatpush1.msra.mxu0 0.0
      %1826 = vmatprep.subr.mxu0 0.0
      %1827 = vmatpush1.msra.mxu0 0.0
      %1828 = vmatprep.subr.mxu0 0.0
      %1829 = vmatpush1.msra.mxu0 0.0
      %1830 = vmatprep.subr.mxu0 0.0
      %1831 = vmatpush1.msra.mxu0 0.0
      %1832 = vmatprep.subr.mxu0 0.0
      %1833 = vmatpush1.msra.mxu0 0.0
      %1834 = vmatprep.subr.mxu0 0.0
      %1835 = vmatpush1.msra.mxu0 0.0
      %1836 = vmatprep.subr.mxu0 0.0
      %1837 = vmatpush1.msra.mxu0 0.0
      %1838 = vmatprep.subr.mxu0 0.0
      %1839 = vmatpush1.msra.mxu0 0.0
      %1840 = vmatprep.subr.mxu0 0.0
      %1841 = vmatpush1.msra.mxu0 0.0
      %1842 = vmatprep.subr.mxu0 0.0
      %1843 = vmatpush1.msra.mxu0 0.0
      %1844 = vmatprep.subr.mxu0 0.0
      %1845 = vmatpush1.msra.mxu0 0.0
      %1846 = vmatprep.subr.mxu0 0.0
      %1847 = vmatpush1.msra.mxu0 0.0
      %1848 = vmatprep.subr.mxu0 0.0
      %1849 = vmatpush1.msra.mxu0 0.0
      %1850 = vmatprep.subr.mxu0 0.0
      %1851 = vmatpush1.msra.mxu0 0.0
      %1852 = vmatprep.subr.mxu0 0.0
      %1853 = vmatpush1.msra.mxu0 0.0
      %1854 = vmatprep.subr.mxu0 0.0
      %1855 = vmatpush1.msra.mxu0 0.0
      %1856 = vmatprep.subr.mxu0 0.0
      %1857 = vmatpush1.msra.mxu0 0.0
      %1858 = vmatprep.mubr.f32.mxu0 0.0
      %1859 = vmatmul.mubr.f32.gmra.mrb[0].mxu0 %v1786
      %v1860 = vpop.f32.mrb[0].mxu0
      %v1861 = vadd.f32 0.0, %v1860
      %v1862 = vpop.f32.mrb[0].mxu0
      %v1863 = vadd.f32 0.0, %v1862
      %1864 = vdwg.mxu0
      %1865 = vmatprep.subr.mxu0 0.0
      %1866 = vmatpush1.msra.mxu0 %v1770
      %1867 = vmatprep.subr.mxu0 0.0
      %1868 = vmatpush1.msra.mxu0 %v1792
      %1869 = vmatprep.subr.mxu0 0.0
      %1870 = vmatpush1.msra.mxu0 0.0
      %1871 = vmatprep.subr.mxu0 0.0
      %1872 = vmatpush1.msra.mxu0 0.0
      %1873 = vmatprep.subr.mxu0 0.0
      %1874 = vmatpush1.msra.mxu0 0.0
      %1875 = vmatprep.subr.mxu0 0.0
      %1876 = vmatpush1.msra.mxu0 0.0
      %1877 = vmatprep.subr.mxu0 0.0
      %1878 = vmatpush1.msra.mxu0 0.0
      %1879 = vmatprep.subr.mxu0 0.0
      %1880 = vmatpush1.msra.mxu0 0.0
      %1881 = vmatprep.subr.mxu0 0.0
      %1882 = vmatpush1.msra.mxu0 0.0
      %1883 = vmatprep.subr.mxu0 0.0
      %1884 = vmatpush1.msra.mxu0 0.0
      %1885 = vmatprep.subr.mxu0 0.0
      %1886 = vmatpush1.msra.mxu0 0.0
      %1887 = vmatprep.subr.mxu0 0.0
      %1888 = vmatpush1.msra.mxu0 0.0
      %1889 = vmatprep.subr.mxu0 0.0
      %1890 = vmatpush1.msra.mxu0 0.0
      %1891 = vmatprep.subr.mxu0 0.0
      %1892 = vmatpush1.msra.mxu0 0.0
      %1893 = vmatprep.subr.mxu0 0.0
      %1894 = vmatpush1.msra.mxu0 0.0
      %1895 = vmatprep.subr.mxu0 0.0
      %1896 = vmatpush1.msra.mxu0 0.0
      %1897 = vmatprep.subr.mxu0 0.0
      %1898 = vmatpush1.msra.mxu0 0.0
      %1899 = vmatprep.subr.mxu0 0.0
      %1900 = vmatpush1.msra.mxu0 0.0
      %1901 = vmatprep.subr.mxu0 0.0
      %1902 = vmatpush1.msra.mxu0 0.0
      %1903 = vmatprep.subr.mxu0 0.0
      %1904 = vmatpush1.msra.mxu0 0.0
      %1905 = vmatprep.subr.mxu0 0.0
      %1906 = vmatpush1.msra.mxu0 0.0
      %1907 = vmatprep.subr.mxu0 0.0
      %1908 = vmatpush1.msra.mxu0 0.0
      %1909 = vmatprep.subr.mxu0 0.0
      %1910 = vmatpush1.msra.mxu0 0.0
      %1911 = vmatprep.subr.mxu0 0.0
      %1912 = vmatpush1.msra.mxu0 0.0
      %1913 = vmatprep.subr.mxu0 0.0
      %1914 = vmatpush1.msra.mxu0 0.0
      %1915 = vmatprep.subr.mxu0 0.0
      %1916 = vmatpush1.msra.mxu0 0.0
      %1917 = vmatprep.subr.mxu0 0.0
      %1918 = vmatpush1.msra.mxu0 0.0
      %1919 = vmatprep.subr.mxu0 0.0
      %1920 = vmatpush1.msra.mxu0 0.0
      %1921 = vmatprep.subr.mxu0 0.0
      %1922 = vmatpush1.msra.mxu0 0.0
      %1923 = vmatprep.subr.mxu0 0.0
      %1924 = vmatpush1.msra.mxu0 0.0
      %1925 = vmatprep.subr.mxu0 0.0
      %1926 = vmatpush1.msra.mxu0 0.0
      %1927 = vmatprep.subr.mxu0 0.0
      %1928 = vmatpush1.msra.mxu0 0.0
      %1929 = vmatprep.mubr.f32.mxu0 0.0
      %1930 = vmatmul.mubr.f32.gmra.mrb[0].mxu0 %v1786
      %v1931 = vpop.f32.mrb[0].mxu0
      %v1932 = vadd.f32 0.0, %v1931
      %v1933 = vpop.f32.mrb[0].mxu0
      %1934 = vdwg.mxu0
      %v1935 = vadd.f32 %v1760, %v1861
      %v1936 = vadd.f32 %v1761, %v1863
      %v1937 = vadd.f32 %v1762, %v1932
      %s1938 = scalar_lea.vmem %s4, 64
      %v1939 = vld [vmem:[%s1938] sm:$0xff]
      %1940 = vrot.lane.b32.xlu0 %v551, 90
      %v1941 = vpop.permute.xlu0 %1940
      %1942 = vrot.lane.b32.xlu0 %v552, 90
      %v1943 = vpop.permute.xlu0 %1942
      %1944 = vrot.lane.b32.xlu0 %v553, 90
      %v1945 = vpop.permute.xlu0 %1944
      %1946 = vrot.lane.b32.xlu0 %v554, 90
      %v1947 = vpop.permute.xlu0 %1946
      %1948 = vrot.lane.b32.xlu0 %v555, 90
      %v1949 = vpop.permute.xlu0 %1948
      %1950 = vrot.lane.b32.xlu0 %v556, 90
      %v1951 = vpop.permute.xlu0 %1950
      %vm1952 = vcmask 736256
      %v1953 = vsel %vm1952, %v1941, %v1943
      %v1954 = vsel %vm1952, %v1943, %v1945
      %v1955 = vsel %vm1952, %v1947, %v1949
      %v1956 = vsel %vm1952, %v1949, %v1951
      %v1961 = vsel %vm586, %v1939, 0
      %v1963 = vsel %vm590, %v1955, 0
      %v1965 = vsel %vm590, %v1956, 0
      %v1967 = vsel %vm590, %v1951, 0
      %1969 = vmatprep.subr.mxu0 %v1954
      %1970 = vmatpush1.msra.mxu0 %v1953
      %1971 = vmatprep.subr.mxu0 %v1965
      %1972 = vmatpush1.msra.mxu0 %v1963
      %1973 = vmatprep.subr.mxu0 0.0
      %1974 = vmatpush1.msra.mxu0 0.0
      %1975 = vmatprep.subr.mxu0 0.0
      %1976 = vmatpush1.msra.mxu0 0.0
      %1977 = vmatprep.subr.mxu0 0.0
      %1978 = vmatpush1.msra.mxu0 0.0
      %1979 = vmatprep.subr.mxu0 0.0
      %1980 = vmatpush1.msra.mxu0 0.0
      %1981 = vmatprep.subr.mxu0 0.0
      %1982 = vmatpush1.msra.mxu0 0.0
      %1983 = vmatprep.subr.mxu0 0.0
      %1984 = vmatpush1.msra.mxu0 0.0
      %1985 = vmatprep.subr.mxu0 0.0
      %1986 = vmatpush1.msra.mxu0 0.0
      %1987 = vmatprep.subr.mxu0 0.0
      %1988 = vmatpush1.msra.mxu0 0.0
      %1989 = vmatprep.subr.mxu0 0.0
      %1990 = vmatpush1.msra.mxu0 0.0
      %1991 = vmatprep.subr.mxu0 0.0
      %1992 = vmatpush1.msra.mxu0 0.0
      %1993 = vmatprep.subr.mxu0 0.0
      %1994 = vmatpush1.msra.mxu0 0.0
      %1995 = vmatprep.subr.mxu0 0.0
      %1996 = vmatpush1.msra.mxu0 0.0
      %1997 = vmatprep.subr.mxu0 0.0
      %1998 = vmatpush1.msra.mxu0 0.0
      %1999 = vmatprep.subr.mxu0 0.0
      %2000 = vmatpush1.msra.mxu0 0.0
      %2001 = vmatprep.subr.mxu0 0.0
      %2002 = vmatpush1.msra.mxu0 0.0
      %2003 = vmatprep.subr.mxu0 0.0
      %2004 = vmatpush1.msra.mxu0 0.0
      %2005 = vmatprep.subr.mxu0 0.0
      %2006 = vmatpush1.msra.mxu0 0.0
      %2007 = vmatprep.subr.mxu0 0.0
      %2008 = vmatpush1.msra.mxu0 0.0
      %2009 = vmatprep.subr.mxu0 0.0
      %2010 = vmatpush1.msra.mxu0 0.0
      %2011 = vmatprep.subr.mxu0 0.0
      %2012 = vmatpush1.msra.mxu0 0.0
      %2013 = vmatprep.subr.mxu0 0.0
      %2014 = vmatpush1.msra.mxu0 0.0
      %2015 = vmatprep.subr.mxu0 0.0
      %2016 = vmatpush1.msra.mxu0 0.0
      %2017 = vmatprep.subr.mxu0 0.0
      %2018 = vmatpush1.msra.mxu0 0.0
      %2019 = vmatprep.subr.mxu0 0.0
      %2020 = vmatpush1.msra.mxu0 0.0
      %2021 = vmatprep.subr.mxu0 0.0
      %2022 = vmatpush1.msra.mxu0 0.0
      %2023 = vmatprep.subr.mxu0 0.0
      %2024 = vmatpush1.msra.mxu0 0.0
      %2025 = vmatprep.subr.mxu0 0.0
      %2026 = vmatpush1.msra.mxu0 0.0
      %2027 = vmatprep.subr.mxu0 0.0
      %2028 = vmatpush1.msra.mxu0 0.0
      %2029 = vmatprep.subr.mxu0 0.0
      %2030 = vmatpush1.msra.mxu0 0.0
      %2031 = vmatprep.subr.mxu0 0.0
      %2032 = vmatpush1.msra.mxu0 0.0
      %2033 = vmatprep.mubr.f32.mxu0 0.0
      %2034 = vmatmul.mubr.f32.gmra.mrb[0].mxu0 %v1961
      %v2035 = vpop.f32.mrb[0].mxu0
      %v2036 = vadd.f32 0.0, %v2035
      %v2037 = vpop.f32.mrb[0].mxu0
      %v2038 = vadd.f32 0.0, %v2037
      %2039 = vdwg.mxu0
      %2040 = vmatprep.subr.mxu0 0.0
      %2041 = vmatpush1.msra.mxu0 %v1945
      %2042 = vmatprep.subr.mxu0 0.0
      %2043 = vmatpush1.msra.mxu0 %v1967
      %2044 = vmatprep.subr.mxu0 0.0
      %2045 = vmatpush1.msra.mxu0 0.0
      %2046 = vmatprep.subr.mxu0 0.0
      %2047 = vmatpush1.msra.mxu0 0.0
      %2048 = vmatprep.subr.mxu0 0.0
      %2049 = vmatpush1.msra.mxu0 0.0
      %2050 = vmatprep.subr.mxu0 0.0
      %2051 = vmatpush1.msra.mxu0 0.0
      %2052 = vmatprep.subr.mxu0 0.0
      %2053 = vmatpush1.msra.mxu0 0.0
      %2054 = vmatprep.subr.mxu0 0.0
      %2055 = vmatpush1.msra.mxu0 0.0
      %2056 = vmatprep.subr.mxu0 0.0
      %2057 = vmatpush1.msra.mxu0 0.0
      %2058 = vmatprep.subr.mxu0 0.0
      %2059 = vmatpush1.msra.mxu0 0.0
      %2060 = vmatprep.subr.mxu0 0.0
      %2061 = vmatpush1.msra.mxu0 0.0
      %2062 = vmatprep.subr.mxu0 0.0
      %2063 = vmatpush1.msra.mxu0 0.0
      %2064 = vmatprep.subr.mxu0 0.0
      %2065 = vmatpush1.msra.mxu0 0.0
      %2066 = vmatprep.subr.mxu0 0.0
      %2067 = vmatpush1.msra.mxu0 0.0
      %2068 = vmatprep.subr.mxu0 0.0
      %2069 = vmatpush1.msra.mxu0 0.0
      %2070 = vmatprep.subr.mxu0 0.0
      %2071 = vmatpush1.msra.mxu0 0.0
      %2072 = vmatprep.subr.mxu0 0.0
      %2073 = vmatpush1.msra.mxu0 0.0
      %2074 = vmatprep.subr.mxu0 0.0
      %2075 = vmatpush1.msra.mxu0 0.0
      %2076 = vmatprep.subr.mxu0 0.0
      %2077 = vmatpush1.msra.mxu0 0.0
      %2078 = vmatprep.subr.mxu0 0.0
      %2079 = vmatpush1.msra.mxu0 0.0
      %2080 = vmatprep.subr.mxu0 0.0
      %2081 = vmatpush1.msra.mxu0 0.0
      %2082 = vmatprep.subr.mxu0 0.0
      %2083 = vmatpush1.msra.mxu0 0.0
      %2084 = vmatprep.subr.mxu0 0.0
      %2085 = vmatpush1.msra.mxu0 0.0
      %2086 = vmatprep.subr.mxu0 0.0
      %2087 = vmatpush1.msra.mxu0 0.0
      %2088 = vmatprep.subr.mxu0 0.0
      %2089 = vmatpush1.msra.mxu0 0.0
      %2090 = vmatprep.subr.mxu0 0.0
      %2091 = vmatpush1.msra.mxu0 0.0
      %2092 = vmatprep.subr.mxu0 0.0
      %2093 = vmatpush1.msra.mxu0 0.0
      %2094 = vmatprep.subr.mxu0 0.0
      %2095 = vmatpush1.msra.mxu0 0.0
      %2096 = vmatprep.subr.mxu0 0.0
      %2097 = vmatpush1.msra.mxu0 0.0
      %2098 = vmatprep.subr.mxu0 0.0
      %2099 = vmatpush1.msra.mxu0 0.0
      %2100 = vmatprep.subr.mxu0 0.0
      %2101 = vmatpush1.msra.mxu0 0.0
      %2102 = vmatprep.subr.mxu0 0.0
      %2103 = vmatpush1.msra.mxu0 0.0
      %2104 = vmatprep.mubr.f32.mxu0 0.0
      %2105 = vmatmul.mubr.f32.gmra.mrb[0].mxu0 %v1961
      %v2106 = vpop.f32.mrb[0].mxu0
      %v2107 = vadd.f32 0.0, %v2106
      %v2108 = vpop.f32.mrb[0].mxu0
      %2109 = vdwg.mxu0
      %v2110 = vadd.f32 %v1935, %v2036
      %v2111 = vadd.f32 %v1936, %v2038
      %v2112 = vadd.f32 %v1937, %v2107
      %v2113 = vld [vmem:[%s5] sm:$0xff]
      %2115 = vset.pattern.permute.xlu0 0
      %2116 = vperm.xlu0 %2115, %v2113
      %v2117 = vpop.permute.xlu0 %2116
      %v2119 = vadd.f32 %v2110, %v2117
      %v2120 = vadd.f32 %v2111, %v2117
      %v2121 = vadd.f32 %v2112, %v2117
      %v2122 = vmax.f32 %v2119, 0.0
      %v2123 = vmax.f32 %v2120, 0.0
      %v2124 = vmax.f32 %v2121, 0.0
      %v2125 = vld [vmem:[%s3] sm:$0x7]
      %v2127 = vlaneseq
      %v2128 = vshrl.u32 %v2127, 7
      %v2129 = vsub.s32 0, %v2128
      %v2130 = vrot.slane %v2125, %v2129
      %v2131 = vlaneseq
      %v2132 = vshrl.u32 %v2131, 7
      %v2133 = vsub.s32 1, %v2132
      %v2134 = vrot.slane %v2125, %v2133
      %v2135 = vlaneseq
      %v2136 = vshrl.u32 %v2135, 7
      %v2137 = vsub.s32 2, %v2136
      %v2138 = vrot.slane %v2125, %v2137
      %v2142 = vmul.f32 %v2122, %v2130
      %v2143 = vmul.f32 %v2123, %v2134
      %v2144 = vmul.f32 %v2124, %v2138
      %2145 = vst [vmem:[#allocation3] sm:$0xff] 0.0
      %2146 = vst [vmem:[#allocation3 + $0x8] sm:$0xff] 0.0
      %2147 = vst.msk [vmem:[#allocation3 + $0x10] sm:$0xff] %vm325, 0.0
      %2151 = vrot.lane.b32.xlu0 %v2142, 19
      %v2152 = vpop.permute.xlu0 %2151
      %2153 = vrot.lane.b32.xlu0 %v2143, 19
      %v2154 = vpop.permute.xlu0 %2153
      %2155 = vrot.lane.b32.xlu0 %v2144, 19
      %v2156 = vpop.permute.xlu0 %2155
      %v2157 = vsel %vm342, %v2152, %v2154
      %v2158 = vsel %vm342, %v2154, %v2156
      %vm2162 = vcmask 1047704
      %2163 = vst.msk [vmem:[#allocation3] sm:$0xff] %vm2162, %v2152
      %2164 = vst [vmem:[#allocation3 + $0x8] sm:$0xff] %v2157
      %vm2165 = vcmask 416768
      %2166 = vst.msk [vmem:[#allocation3 + $0x10] sm:$0xff] %vm2165, %v2158
      %v2167 = vld [vmem:[#allocation3] sm:$0xff]
      %v2168 = vld [vmem:[#allocation3 + $0x8] sm:$0xff]
      %v2169 = vld [vmem:[#allocation3 + $0x10] sm:$0xff]
      %v2170 = vld [vmem:[%s6] sm:$0xff]
      %s2171 = scalar_lea.vmem %s6, 8
      %v2172 = vld [vmem:[%s2171] sm:$0xff]
      %2176 = vrot.lane.b32.xlu0 %v2167, 127
      %v2177 = vpop.permute.xlu0 %2176
      %2178 = vrot.lane.b32.xlu0 %v2168, 127
      %v2179 = vpop.permute.xlu0 %2178
      %2180 = vrot.lane.b32.xlu0 %v2169, 127
      %v2181 = vpop.permute.xlu0 %2180
      %v2182 = vsel %vm578, %v2177, %v2179
      %v2183 = vsel %vm578, %v2179, %v2181
      %vm2187 = vcmask 64512
      %v2189 = vsel %vm2187, %v2172, 0
      %2191 = vmatprep.subr.mxu0 %v2183
      %2192 = vmatpush1.msra.mxu0 %v2182
      %2193 = vmatprep.subr.mxu0 0.0
      %2194 = vmatpush1.msra.mxu0 0.0
      %2195 = vmatprep.subr.mxu0 0.0
      %2196 = vmatpush1.msra.mxu0 0.0
      %2197 = vmatprep.subr.mxu0 0.0
      %2198 = vmatpush1.msra.mxu0 0.0
      %2199 = vmatprep.subr.mxu0 0.0
      %2200 = vmatpush1.msra.mxu0 0.0
      %2201 = vmatprep.subr.mxu0 0.0
      %2202 = vmatpush1.msra.mxu0 0.0
      %2203 = vmatprep.subr.mxu0 0.0
      %2204 = vmatpush1.msra.mxu0 0.0
      %2205 = vmatprep.subr.mxu0 0.0
      %2206 = vmatpush1.msra.mxu0 0.0
      %2207 = vmatprep.subr.mxu0 0.0
      %2208 = vmatpush1.msra.mxu0 0.0
      %2209 = vmatprep.subr.mxu0 0.0
      %2210 = vmatpush1.msra.mxu0 0.0
      %2211 = vmatprep.subr.mxu0 0.0
      %2212 = vmatpush1.msra.mxu0 0.0
      %2213 = vmatprep.subr.mxu0 0.0
      %2214 = vmatpush1.msra.mxu0 0.0
      %2215 = vmatprep.subr.mxu0 0.0
      %2216 = vmatpush1.msra.mxu0 0.0
      %2217 = vmatprep.subr.mxu0 0.0
      %2218 = vmatpush1.msra.mxu0 0.0
      %2219 = vmatprep.subr.mxu0 0.0
      %2220 = vmatpush1.msra.mxu0 0.0
      %2221 = vmatprep.subr.mxu0 0.0
      %2222 = vmatpush1.msra.mxu0 0.0
      %2223 = vmatprep.subr.mxu0 0.0
      %2224 = vmatpush1.msra.mxu0 0.0
      %2225 = vmatprep.subr.mxu0 0.0
      %2226 = vmatpush1.msra.mxu0 0.0
      %2227 = vmatprep.subr.mxu0 0.0
      %2228 = vmatpush1.msra.mxu0 0.0
      %2229 = vmatprep.subr.mxu0 0.0
      %2230 = vmatpush1.msra.mxu0 0.0
      %2231 = vmatprep.subr.mxu0 0.0
      %2232 = vmatpush1.msra.mxu0 0.0
      %2233 = vmatprep.subr.mxu0 0.0
      %2234 = vmatpush1.msra.mxu0 0.0
      %2235 = vmatprep.subr.mxu0 0.0
      %2236 = vmatpush1.msra.mxu0 0.0
      %2237 = vmatprep.subr.mxu0 0.0
      %2238 = vmatpush1.msra.mxu0 0.0
      %2239 = vmatprep.subr.mxu0 0.0
      %2240 = vmatpush1.msra.mxu0 0.0
      %2241 = vmatprep.subr.mxu0 0.0
      %2242 = vmatpush1.msra.mxu0 0.0
      %2243 = vmatprep.subr.mxu0 0.0
      %2244 = vmatpush1.msra.mxu0 0.0
      %2245 = vmatprep.subr.mxu0 0.0
      %2246 = vmatpush1.msra.mxu0 0.0
      %2247 = vmatprep.subr.mxu0 0.0
      %2248 = vmatpush1.msra.mxu0 0.0
      %2249 = vmatprep.subr.mxu0 0.0
      %2250 = vmatpush1.msra.mxu0 0.0
      %2251 = vmatprep.subr.mxu0 0.0
      %2252 = vmatpush1.msra.mxu0 0.0
      %2253 = vmatprep.subr.mxu0 0.0
      %2254 = vmatpush1.msra.mxu0 0.0
      %2255 = vmatprep.mubr.f32.mxu0 0.0
      %2256 = vmatmul.mubr.f32.gmra.mrb[0].mxu0 %v2189
      %v2257 = vpop.f32.mrb[0].mxu0
      %v2258 = vadd.f32 0.0, %v2257
      %v2259 = vpop.f32.mrb[0].mxu0
      %v2260 = vadd.f32 0.0, %v2259
      %2261 = vdwg.mxu0
      %2262 = vmatprep.subr.mxu0 0.0
      %2263 = vmatpush1.msra.mxu0 %v2181
      %2264 = vmatprep.subr.mxu0 0.0
      %2265 = vmatpush1.msra.mxu0 0.0
      %2266 = vmatprep.subr.mxu0 0.0
      %2267 = vmatpush1.msra.mxu0 0.0
      %2268 = vmatprep.subr.mxu0 0.0
      %2269 = vmatpush1.msra.mxu0 0.0
      %2270 = vmatprep.subr.mxu0 0.0
      %2271 = vmatpush1.msra.mxu0 0.0
      %2272 = vmatprep.subr.mxu0 0.0
      %2273 = vmatpush1.msra.mxu0 0.0
      %2274 = vmatprep.subr.mxu0 0.0
      %2275 = vmatpush1.msra.mxu0 0.0
      %2276 = vmatprep.subr.mxu0 0.0
      %2277 = vmatpush1.msra.mxu0 0.0
      %2278 = vmatprep.subr.mxu0 0.0
      %2279 = vmatpush1.msra.mxu0 0.0
      %2280 = vmatprep.subr.mxu0 0.0
      %2281 = vmatpush1.msra.mxu0 0.0
      %2282 = vmatprep.subr.mxu0 0.0
      %2283 = vmatpush1.msra.mxu0 0.0
      %2284 = vmatprep.subr.mxu0 0.0
      %2285 = vmatpush1.msra.mxu0 0.0
      %2286 = vmatprep.subr.mxu0 0.0
      %2287 = vmatpush1.msra.mxu0 0.0
      %2288 = vmatprep.subr.mxu0 0.0
      %2289 = vmatpush1.msra.mxu0 0.0
      %2290 = vmatprep.subr.mxu0 0.0
      %2291 = vmatpush1.msra.mxu0 0.0
      %2292 = vmatprep.subr.mxu0 0.0
      %2293 = vmatpush1.msra.mxu0 0.0
      %2294 = vmatprep.subr.mxu0 0.0
      %2295 = vmatpush1.msra.mxu0 0.0
      %2296 = vmatprep.subr.mxu0 0.0
      %2297 = vmatpush1.msra.mxu0 0.0
      %2298 = vmatprep.subr.mxu0 0.0
      %2299 = vmatpush1.msra.mxu0 0.0
      %2300 = vmatprep.subr.mxu0 0.0
      %2301 = vmatpush1.msra.mxu0 0.0
      %2302 = vmatprep.subr.mxu0 0.0
      %2303 = vmatpush1.msra.mxu0 0.0
      %2304 = vmatprep.subr.mxu0 0.0
      %2305 = vmatpush1.msra.mxu0 0.0
      %2306 = vmatprep.subr.mxu0 0.0
      %2307 = vmatpush1.msra.mxu0 0.0
      %2308 = vmatprep.subr.mxu0 0.0
      %2309 = vmatpush1.msra.mxu0 0.0
      %2310 = vmatprep.subr.mxu0 0.0
      %2311 = vmatpush1.msra.mxu0 0.0
      %2312 = vmatprep.subr.mxu0 0.0
      %2313 = vmatpush1.msra.mxu0 0.0
      %2314 = vmatprep.subr.mxu0 0.0
      %2315 = vmatpush1.msra.mxu0 0.0
      %2316 = vmatprep.subr.mxu0 0.0
      %2317 = vmatpush1.msra.mxu0 0.0
      %2318 = vmatprep.subr.mxu0 0.0
      %2319 = vmatpush1.msra.mxu0 0.0
      %2320 = vmatprep.subr.mxu0 0.0
      %2321 = vmatpush1.msra.mxu0 0.0
      %2322 = vmatprep.subr.mxu0 0.0
      %2323 = vmatpush1.msra.mxu0 0.0
      %2324 = vmatprep.subr.mxu0 0.0
      %2325 = vmatpush1.msra.mxu0 0.0
      %2326 = vmatprep.mubr.f32.mxu0 0.0
      %2327 = vmatmul.mubr.f32.gmra.mrb[0].mxu0 %v2189
      %v2328 = vpop.f32.mrb[0].mxu0
      %v2329 = vadd.f32 0.0, %v2328
      %v2330 = vpop.f32.mrb[0].mxu0
      %2331 = vdwg.mxu0
      %v2333 = vsel %vm2187, %v2170, 0
      %2335 = vmatprep.subr.mxu0 %v2168
      %2336 = vmatpush1.msra.mxu0 %v2167
      %2337 = vmatprep.subr.mxu0 0.0
      %2338 = vmatpush1.msra.mxu0 0.0
      %2339 = vmatprep.subr.mxu0 0.0
      %2340 = vmatpush1.msra.mxu0 0.0
      %2341 = vmatprep.subr.mxu0 0.0
      %2342 = vmatpush1.msra.mxu0 0.0
      %2343 = vmatprep.subr.mxu0 0.0
      %2344 = vmatpush1.msra.mxu0 0.0
      %2345 = vmatprep.subr.mxu0 0.0
      %2346 = vmatpush1.msra.mxu0 0.0
      %2347 = vmatprep.subr.mxu0 0.0
      %2348 = vmatpush1.msra.mxu0 0.0
      %2349 = vmatprep.subr.mxu0 0.0
      %2350 = vmatpush1.msra.mxu0 0.0
      %2351 = vmatprep.subr.mxu0 0.0
      %2352 = vmatpush1.msra.mxu0 0.0
      %2353 = vmatprep.subr.mxu0 0.0
      %2354 = vmatpush1.msra.mxu0 0.0
      %2355 = vmatprep.subr.mxu0 0.0
      %2356 = vmatpush1.msra.mxu0 0.0
      %2357 = vmatprep.subr.mxu0 0.0
      %2358 = vmatpush1.msra.mxu0 0.0
      %2359 = vmatprep.subr.mxu0 0.0
      %2360 = vmatpush1.msra.mxu0 0.0
      %2361 = vmatprep.subr.mxu0 0.0
      %2362 = vmatpush1.msra.mxu0 0.0
      %2363 = vmatprep.subr.mxu0 0.0
      %2364 = vmatpush1.msra.mxu0 0.0
      %2365 = vmatprep.subr.mxu0 0.0
      %2366 = vmatpush1.msra.mxu0 0.0
      %2367 = vmatprep.subr.mxu0 0.0
      %2368 = vmatpush1.msra.mxu0 0.0
      %2369 = vmatprep.subr.mxu0 0.0
      %2370 = vmatpush1.msra.mxu0 0.0
      %2371 = vmatprep.subr.mxu0 0.0
      %2372 = vmatpush1.msra.mxu0 0.0
      %2373 = vmatprep.subr.mxu0 0.0
      %2374 = vmatpush1.msra.mxu0 0.0
      %2375 = vmatprep.subr.mxu0 0.0
      %2376 = vmatpush1.msra.mxu0 0.0
      %2377 = vmatprep.subr.mxu0 0.0
      %2378 = vmatpush1.msra.mxu0 0.0
      %2379 = vmatprep.subr.mxu0 0.0
      %2380 = vmatpush1.msra.mxu0 0.0
      %2381 = vmatprep.subr.mxu0 0.0
      %2382 = vmatpush1.msra.mxu0 0.0
      %2383 = vmatprep.subr.mxu0 0.0
      %2384 = vmatpush1.msra.mxu0 0.0
      %2385 = vmatprep.subr.mxu0 0.0
      %2386 = vmatpush1.msra.mxu0 0.0
      %2387 = vmatprep.subr.mxu0 0.0
      %2388 = vmatpush1.msra.mxu0 0.0
      %2389 = vmatprep.subr.mxu0 0.0
      %2390 = vmatpush1.msra.mxu0 0.0
      %2391 = vmatprep.subr.mxu0 0.0
      %2392 = vmatpush1.msra.mxu0 0.0
      %2393 = vmatprep.subr.mxu0 0.0
      %2394 = vmatpush1.msra.mxu0 0.0
      %2395 = vmatprep.subr.mxu0 0.0
      %2396 = vmatpush1.msra.mxu0 0.0
      %2397 = vmatprep.subr.mxu0 0.0
      %2398 = vmatpush1.msra.mxu0 0.0
      %2399 = vmatprep.mubr.f32.mxu0 0.0
      %2400 = vmatmul.mubr.f32.gmra.mrb[0].mxu0 %v2333
      %v2401 = vpop.f32.mrb[0].mxu0
      %v2402 = vadd.f32 %v2258, %v2401
      %v2403 = vpop.f32.mrb[0].mxu0
      %v2404 = vadd.f32 %v2260, %v2403
      %2405 = vdwg.mxu0
      %2406 = vmatprep.subr.mxu0 0.0
      %2407 = vmatpush1.msra.mxu0 %v2169
      %2408 = vmatprep.subr.mxu0 0.0
      %2409 = vmatpush1.msra.mxu0 0.0
      %2410 = vmatprep.subr.mxu0 0.0
      %2411 = vmatpush1.msra.mxu0 0.0
      %2412 = vmatprep.subr.mxu0 0.0
      %2413 = vmatpush1.msra.mxu0 0.0
      %2414 = vmatprep.subr.mxu0 0.0
      %2415 = vmatpush1.msra.mxu0 0.0
      %2416 = vmatprep.subr.mxu0 0.0
      %2417 = vmatpush1.msra.mxu0 0.0
      %2418 = vmatprep.subr.mxu0 0.0
      %2419 = vmatpush1.msra.mxu0 0.0
      %2420 = vmatprep.subr.mxu0 0.0
      %2421 = vmatpush1.msra.mxu0 0.0
      %2422 = vmatprep.subr.mxu0 0.0
      %2423 = vmatpush1.msra.mxu0 0.0
      %2424 = vmatprep.subr.mxu0 0.0
      %2425 = vmatpush1.msra.mxu0 0.0
      %2426 = vmatprep.subr.mxu0 0.0
      %2427 = vmatpush1.msra.mxu0 0.0
      %2428 = vmatprep.subr.mxu0 0.0
      %2429 = vmatpush1.msra.mxu0 0.0
      %2430 = vmatprep.subr.mxu0 0.0
      %2431 = vmatpush1.msra.mxu0 0.0
      %2432 = vmatprep.subr.mxu0 0.0
      %2433 = vmatpush1.msra.mxu0 0.0
      %2434 = vmatprep.subr.mxu0 0.0
      %2435 = vmatpush1.msra.mxu0 0.0
      %2436 = vmatprep.subr.mxu0 0.0
      %2437 = vmatpush1.msra.mxu0 0.0
      %2438 = vmatprep.subr.mxu0 0.0
      %2439 = vmatpush1.msra.mxu0 0.0
      %2440 = vmatprep.subr.mxu0 0.0
      %2441 = vmatpush1.msra.mxu0 0.0
      %2442 = vmatprep.subr.mxu0 0.0
      %2443 = vmatpush1.msra.mxu0 0.0
      %2444 = vmatprep.subr.mxu0 0.0
      %2445 = vmatpush1.msra.mxu0 0.0
      %2446 = vmatprep.subr.mxu0 0.0
      %2447 = vmatpush1.msra.mxu0 0.0
      %2448 = vmatprep.subr.mxu0 0.0
      %2449 = vmatpush1.msra.mxu0 0.0
      %2450 = vmatprep.subr.mxu0 0.0
      %2451 = vmatpush1.msra.mxu0 0.0
      %2452 = vmatprep.subr.mxu0 0.0
      %2453 = vmatpush1.msra.mxu0 0.0
      %2454 = vmatprep.subr.mxu0 0.0
      %2455 = vmatpush1.msra.mxu0 0.0
      %2456 = vmatprep.subr.mxu0 0.0
      %2457 = vmatpush1.msra.mxu0 0.0
      %2458 = vmatprep.subr.mxu0 0.0
      %2459 = vmatpush1.msra.mxu0 0.0
      %2460 = vmatprep.subr.mxu0 0.0
      %2461 = vmatpush1.msra.mxu0 0.0
      %2462 = vmatprep.subr.mxu0 0.0
      %2463 = vmatpush1.msra.mxu0 0.0
      %2464 = vmatprep.subr.mxu0 0.0
      %2465 = vmatpush1.msra.mxu0 0.0
      %2466 = vmatprep.subr.mxu0 0.0
      %2467 = vmatpush1.msra.mxu0 0.0
      %2468 = vmatprep.subr.mxu0 0.0
      %2469 = vmatpush1.msra.mxu0 0.0
      %2470 = vmatprep.mubr.f32.mxu0 0.0
      %2471 = vmatmul.mubr.f32.gmra.mrb[0].mxu0 %v2333
      %v2472 = vpop.f32.mrb[0].mxu0
      %v2473 = vadd.f32 %v2329, %v2472
      %v2474 = vpop.f32.mrb[0].mxu0
      %2475 = vdwg.mxu0
      %s2476 = scalar_lea.vmem %s6, 16
      %v2477 = vld [vmem:[%s2476] sm:$0xff]
      %2478 = vrot.lane.b32.xlu0 %v2167, 126
      %v2479 = vpop.permute.xlu0 %2478
      %2480 = vrot.lane.b32.xlu0 %v2168, 126
      %v2481 = vpop.permute.xlu0 %2480
      %2482 = vrot.lane.b32.xlu0 %v2169, 126
      %v2483 = vpop.permute.xlu0 %2482
      %v2484 = vsel %vm902, %v2479, %v2481
      %v2485 = vsel %vm902, %v2481, %v2483
      %v2490 = vsel %vm2187, %v2477, 0
      %2492 = vmatprep.subr.mxu0 %v2485
      %2493 = vmatpush1.msra.mxu0 %v2484
      %2494 = vmatprep.subr.mxu0 0.0
      %2495 = vmatpush1.msra.mxu0 0.0
      %2496 = vmatprep.subr.mxu0 0.0
      %2497 = vmatpush1.msra.mxu0 0.0
      %2498 = vmatprep.subr.mxu0 0.0
      %2499 = vmatpush1.msra.mxu0 0.0
      %2500 = vmatprep.subr.mxu0 0.0
      %2501 = vmatpush1.msra.mxu0 0.0
      %2502 = vmatprep.subr.mxu0 0.0
      %2503 = vmatpush1.msra.mxu0 0.0
      %2504 = vmatprep.subr.mxu0 0.0
      %2505 = vmatpush1.msra.mxu0 0.0
      %2506 = vmatprep.subr.mxu0 0.0
      %2507 = vmatpush1.msra.mxu0 0.0
      %2508 = vmatprep.subr.mxu0 0.0
      %2509 = vmatpush1.msra.mxu0 0.0
      %2510 = vmatprep.subr.mxu0 0.0
      %2511 = vmatpush1.msra.mxu0 0.0
      %2512 = vmatprep.subr.mxu0 0.0
      %2513 = vmatpush1.msra.mxu0 0.0
      %2514 = vmatprep.subr.mxu0 0.0
      %2515 = vmatpush1.msra.mxu0 0.0
      %2516 = vmatprep.subr.mxu0 0.0
      %2517 = vmatpush1.msra.mxu0 0.0
      %2518 = vmatprep.subr.mxu0 0.0
      %2519 = vmatpush1.msra.mxu0 0.0
      %2520 = vmatprep.subr.mxu0 0.0
      %2521 = vmatpush1.msra.mxu0 0.0
      %2522 = vmatprep.subr.mxu0 0.0
      %2523 = vmatpush1.msra.mxu0 0.0
      %2524 = vmatprep.subr.mxu0 0.0
      %2525 = vmatpush1.msra.mxu0 0.0
      %2526 = vmatprep.subr.mxu0 0.0
      %2527 = vmatpush1.msra.mxu0 0.0
      %2528 = vmatprep.subr.mxu0 0.0
      %2529 = vmatpush1.msra.mxu0 0.0
      %2530 = vmatprep.subr.mxu0 0.0
      %2531 = vmatpush1.msra.mxu0 0.0
      %2532 = vmatprep.subr.mxu0 0.0
      %2533 = vmatpush1.msra.mxu0 0.0
      %2534 = vmatprep.subr.mxu0 0.0
      %2535 = vmatpush1.msra.mxu0 0.0
      %2536 = vmatprep.subr.mxu0 0.0
      %2537 = vmatpush1.msra.mxu0 0.0
      %2538 = vmatprep.subr.mxu0 0.0
      %2539 = vmatpush1.msra.mxu0 0.0
      %2540 = vmatprep.subr.mxu0 0.0
      %2541 = vmatpush1.msra.mxu0 0.0
      %2542 = vmatprep.subr.mxu0 0.0
      %2543 = vmatpush1.msra.mxu0 0.0
      %2544 = vmatprep.subr.mxu0 0.0
      %2545 = vmatpush1.msra.mxu0 0.0
      %2546 = vmatprep.subr.mxu0 0.0
      %2547 = vmatpush1.msra.mxu0 0.0
      %2548 = vmatprep.subr.mxu0 0.0
      %2549 = vmatpush1.msra.mxu0 0.0
      %2550 = vmatprep.subr.mxu0 0.0
      %2551 = vmatpush1.msra.mxu0 0.0
      %2552 = vmatprep.subr.mxu0 0.0
      %2553 = vmatpush1.msra.mxu0 0.0
      %2554 = vmatprep.subr.mxu0 0.0
      %2555 = vmatpush1.msra.mxu0 0.0
      %2556 = vmatprep.mubr.f32.mxu0 0.0
      %2557 = vmatmul.mubr.f32.gmra.mrb[0].mxu0 %v2490
      %v2558 = vpop.f32.mrb[0].mxu0
      %v2559 = vadd.f32 0.0, %v2558
      %v2560 = vpop.f32.mrb[0].mxu0
      %v2561 = vadd.f32 0.0, %v2560
      %2562 = vdwg.mxu0
      %2563 = vmatprep.subr.mxu0 0.0
      %2564 = vmatpush1.msra.mxu0 %v2483
      %2565 = vmatprep.subr.mxu0 0.0
      %2566 = vmatpush1.msra.mxu0 0.0
      %2567 = vmatprep.subr.mxu0 0.0
      %2568 = vmatpush1.msra.mxu0 0.0
      %2569 = vmatprep.subr.mxu0 0.0
      %2570 = vmatpush1.msra.mxu0 0.0
      %2571 = vmatprep.subr.mxu0 0.0
      %2572 = vmatpush1.msra.mxu0 0.0
      %2573 = vmatprep.subr.mxu0 0.0
      %2574 = vmatpush1.msra.mxu0 0.0
      %2575 = vmatprep.subr.mxu0 0.0
      %2576 = vmatpush1.msra.mxu0 0.0
      %2577 = vmatprep.subr.mxu0 0.0
      %2578 = vmatpush1.msra.mxu0 0.0
      %2579 = vmatprep.subr.mxu0 0.0
      %2580 = vmatpush1.msra.mxu0 0.0
      %2581 = vmatprep.subr.mxu0 0.0
      %2582 = vmatpush1.msra.mxu0 0.0
      %2583 = vmatprep.subr.mxu0 0.0
      %2584 = vmatpush1.msra.mxu0 0.0
      %2585 = vmatprep.subr.mxu0 0.0
      %2586 = vmatpush1.msra.mxu0 0.0
      %2587 = vmatprep.subr.mxu0 0.0
      %2588 = vmatpush1.msra.mxu0 0.0
      %2589 = vmatprep.subr.mxu0 0.0
      %2590 = vmatpush1.msra.mxu0 0.0
      %2591 = vmatprep.subr.mxu0 0.0
      %2592 = vmatpush1.msra.mxu0 0.0
      %2593 = vmatprep.subr.mxu0 0.0
      %2594 = vmatpush1.msra.mxu0 0.0
      %2595 = vmatprep.subr.mxu0 0.0
      %2596 = vmatpush1.msra.mxu0 0.0
      %2597 = vmatprep.subr.mxu0 0.0
      %2598 = vmatpush1.msra.mxu0 0.0
      %2599 = vmatprep.subr.mxu0 0.0
      %2600 = vmatpush1.msra.mxu0 0.0
      %2601 = vmatprep.subr.mxu0 0.0
      %2602 = vmatpush1.msra.mxu0 0.0
      %2603 = vmatprep.subr.mxu0 0.0
      %2604 = vmatpush1.msra.mxu0 0.0
      %2605 = vmatprep.subr.mxu0 0.0
      %2606 = vmatpush1.msra.mxu0 0.0
      %2607 = vmatprep.subr.mxu0 0.0
      %2608 = vmatpush1.msra.mxu0 0.0
      %2609 = vmatprep.subr.mxu0 0.0
      %2610 = vmatpush1.msra.mxu0 0.0
      %2611 = vmatprep.subr.mxu0 0.0
      %2612 = vmatpush1.msra.mxu0 0.0
      %2613 = vmatprep.subr.mxu0 0.0
      %2614 = vmatpush1.msra.mxu0 0.0
      %2615 = vmatprep.subr.mxu0 0.0
      %2616 = vmatpush1.msra.mxu0 0.0
      %2617 = vmatprep.subr.mxu0 0.0
      %2618 = vmatpush1.msra.mxu0 0.0
      %2619 = vmatprep.subr.mxu0 0.0
      %2620 = vmatpush1.msra.mxu0 0.0
      %2621 = vmatprep.subr.mxu0 0.0
      %2622 = vmatpush1.msra.mxu0 0.0
      %2623 = vmatprep.subr.mxu0 0.0
      %2624 = vmatpush1.msra.mxu0 0.0
      %2625 = vmatprep.subr.mxu0 0.0
      %2626 = vmatpush1.msra.mxu0 0.0
      %2627 = vmatprep.mubr.f32.mxu0 0.0
      %2628 = vmatmul.mubr.f32.gmra.mrb[0].mxu0 %v2490
      %v2629 = vpop.f32.mrb[0].mxu0
      %v2630 = vadd.f32 0.0, %v2629
      %v2631 = vpop.f32.mrb[0].mxu0
      %2632 = vdwg.mxu0
      %v2633 = vadd.f32 %v2402, %v2559
      %v2634 = vadd.f32 %v2404, %v2561
      %v2635 = vadd.f32 %v2473, %v2630
      %s2636 = scalar_lea.vmem %s6, 24
      %v2637 = vld [vmem:[%s2636] sm:$0xff]
      %2638 = vrot.lane.b32.xlu0 %v2167, 110
      %v2639 = vpop.permute.xlu0 %2638
      %2640 = vrot.lane.b32.xlu0 %v2168, 110
      %v2641 = vpop.permute.xlu0 %2640
      %2642 = vrot.lane.b32.xlu0 %v2169, 110
      %v2643 = vpop.permute.xlu0 %2642
      %v2644 = vsel %vm1077, %v2639, %v2641
      %v2645 = vsel %vm1077, %v2641, %v2643
      %v2650 = vsel %vm2187, %v2637, 0
      %2652 = vmatprep.subr.mxu0 %v2645
      %2653 = vmatpush1.msra.mxu0 %v2644
      %2654 = vmatprep.subr.mxu0 0.0
      %2655 = vmatpush1.msra.mxu0 0.0
      %2656 = vmatprep.subr.mxu0 0.0
      %2657 = vmatpush1.msra.mxu0 0.0
      %2658 = vmatprep.subr.mxu0 0.0
      %2659 = vmatpush1.msra.mxu0 0.0
      %2660 = vmatprep.subr.mxu0 0.0
      %2661 = vmatpush1.msra.mxu0 0.0
      %2662 = vmatprep.subr.mxu0 0.0
      %2663 = vmatpush1.msra.mxu0 0.0
      %2664 = vmatprep.subr.mxu0 0.0
      %2665 = vmatpush1.msra.mxu0 0.0
      %2666 = vmatprep.subr.mxu0 0.0
      %2667 = vmatpush1.msra.mxu0 0.0
      %2668 = vmatprep.subr.mxu0 0.0
      %2669 = vmatpush1.msra.mxu0 0.0
      %2670 = vmatprep.subr.mxu0 0.0
      %2671 = vmatpush1.msra.mxu0 0.0
      %2672 = vmatprep.subr.mxu0 0.0
      %2673 = vmatpush1.msra.mxu0 0.0
      %2674 = vmatprep.subr.mxu0 0.0
      %2675 = vmatpush1.msra.mxu0 0.0
      %2676 = vmatprep.subr.mxu0 0.0
      %2677 = vmatpush1.msra.mxu0 0.0
      %2678 = vmatprep.subr.mxu0 0.0
      %2679 = vmatpush1.msra.mxu0 0.0
      %2680 = vmatprep.subr.mxu0 0.0
      %2681 = vmatpush1.msra.mxu0 0.0
      %2682 = vmatprep.subr.mxu0 0.0
      %2683 = vmatpush1.msra.mxu0 0.0
      %2684 = vmatprep.subr.mxu0 0.0
      %2685 = vmatpush1.msra.mxu0 0.0
      %2686 = vmatprep.subr.mxu0 0.0
      %2687 = vmatpush1.msra.mxu0 0.0
      %2688 = vmatprep.subr.mxu0 0.0
      %2689 = vmatpush1.msra.mxu0 0.0
      %2690 = vmatprep.subr.mxu0 0.0
      %2691 = vmatpush1.msra.mxu0 0.0
      %2692 = vmatprep.subr.mxu0 0.0
      %2693 = vmatpush1.msra.mxu0 0.0
      %2694 = vmatprep.subr.mxu0 0.0
      %2695 = vmatpush1.msra.mxu0 0.0
      %2696 = vmatprep.subr.mxu0 0.0
      %2697 = vmatpush1.msra.mxu0 0.0
      %2698 = vmatprep.subr.mxu0 0.0
      %2699 = vmatpush1.msra.mxu0 0.0
      %2700 = vmatprep.subr.mxu0 0.0
      %2701 = vmatpush1.msra.mxu0 0.0
      %2702 = vmatprep.subr.mxu0 0.0
      %2703 = vmatpush1.msra.mxu0 0.0
      %2704 = vmatprep.subr.mxu0 0.0
      %2705 = vmatpush1.msra.mxu0 0.0
      %2706 = vmatprep.subr.mxu0 0.0
      %2707 = vmatpush1.msra.mxu0 0.0
      %2708 = vmatprep.subr.mxu0 0.0
      %2709 = vmatpush1.msra.mxu0 0.0
      %2710 = vmatprep.subr.mxu0 0.0
      %2711 = vmatpush1.msra.mxu0 0.0
      %2712 = vmatprep.subr.mxu0 0.0
      %2713 = vmatpush1.msra.mxu0 0.0
      %2714 = vmatprep.subr.mxu0 0.0
      %2715 = vmatpush1.msra.mxu0 0.0
      %2716 = vmatprep.mubr.f32.mxu0 0.0
      %2717 = vmatmul.mubr.f32.gmra.mrb[0].mxu0 %v2650
      %v2718 = vpop.f32.mrb[0].mxu0
      %v2719 = vadd.f32 0.0, %v2718
      %v2720 = vpop.f32.mrb[0].mxu0
      %v2721 = vadd.f32 0.0, %v2720
      %2722 = vdwg.mxu0
      %2723 = vmatprep.subr.mxu0 0.0
      %2724 = vmatpush1.msra.mxu0 %v2643
      %2725 = vmatprep.subr.mxu0 0.0
      %2726 = vmatpush1.msra.mxu0 0.0
      %2727 = vmatprep.subr.mxu0 0.0
      %2728 = vmatpush1.msra.mxu0 0.0
      %2729 = vmatprep.subr.mxu0 0.0
      %2730 = vmatpush1.msra.mxu0 0.0
      %2731 = vmatprep.subr.mxu0 0.0
      %2732 = vmatpush1.msra.mxu0 0.0
      %2733 = vmatprep.subr.mxu0 0.0
      %2734 = vmatpush1.msra.mxu0 0.0
      %2735 = vmatprep.subr.mxu0 0.0
      %2736 = vmatpush1.msra.mxu0 0.0
      %2737 = vmatprep.subr.mxu0 0.0
      %2738 = vmatpush1.msra.mxu0 0.0
      %2739 = vmatprep.subr.mxu0 0.0
      %2740 = vmatpush1.msra.mxu0 0.0
      %2741 = vmatprep.subr.mxu0 0.0
      %2742 = vmatpush1.msra.mxu0 0.0
      %2743 = vmatprep.subr.mxu0 0.0
      %2744 = vmatpush1.msra.mxu0 0.0
      %2745 = vmatprep.subr.mxu0 0.0
      %2746 = vmatpush1.msra.mxu0 0.0
      %2747 = vmatprep.subr.mxu0 0.0
      %2748 = vmatpush1.msra.mxu0 0.0
      %2749 = vmatprep.subr.mxu0 0.0
      %2750 = vmatpush1.msra.mxu0 0.0
      %2751 = vmatprep.subr.mxu0 0.0
      %2752 = vmatpush1.msra.mxu0 0.0
      %2753 = vmatprep.subr.mxu0 0.0
      %2754 = vmatpush1.msra.mxu0 0.0
      %2755 = vmatprep.subr.mxu0 0.0
      %2756 = vmatpush1.msra.mxu0 0.0
      %2757 = vmatprep.subr.mxu0 0.0
      %2758 = vmatpush1.msra.mxu0 0.0
      %2759 = vmatprep.subr.mxu0 0.0
      %2760 = vmatpush1.msra.mxu0 0.0
      %2761 = vmatprep.subr.mxu0 0.0
      %2762 = vmatpush1.msra.mxu0 0.0
      %2763 = vmatprep.subr.mxu0 0.0
      %2764 = vmatpush1.msra.mxu0 0.0
      %2765 = vmatprep.subr.mxu0 0.0
      %2766 = vmatpush1.msra.mxu0 0.0
      %2767 = vmatprep.subr.mxu0 0.0
      %2768 = vmatpush1.msra.mxu0 0.0
      %2769 = vmatprep.subr.mxu0 0.0
      %2770 = vmatpush1.msra.mxu0 0.0
      %2771 = vmatprep.subr.mxu0 0.0
      %2772 = vmatpush1.msra.mxu0 0.0
      %2773 = vmatprep.subr.mxu0 0.0
      %2774 = vmatpush1.msra.mxu0 0.0
      %2775 = vmatprep.subr.mxu0 0.0
      %2776 = vmatpush1.msra.mxu0 0.0
      %2777 = vmatprep.subr.mxu0 0.0
      %2778 = vmatpush1.msra.mxu0 0.0
      %2779 = vmatprep.subr.mxu0 0.0
      %2780 = vmatpush1.msra.mxu0 0.0
      %2781 = vmatprep.subr.mxu0 0.0
      %2782 = vmatpush1.msra.mxu0 0.0
      %2783 = vmatprep.subr.mxu0 0.0
      %2784 = vmatpush1.msra.mxu0 0.0
      %2785 = vmatprep.subr.mxu0 0.0
      %2786 = vmatpush1.msra.mxu0 0.0
      %2787 = vmatprep.mubr.f32.mxu0 0.0
      %2788 = vmatmul.mubr.f32.gmra.mrb[0].mxu0 %v2650
      %v2789 = vpop.f32.mrb[0].mxu0
      %v2790 = vadd.f32 0.0, %v2789
      %v2791 = vpop.f32.mrb[0].mxu0
      %2792 = vdwg.mxu0
      %v2793 = vadd.f32 %v2633, %v2719
      %v2794 = vadd.f32 %v2634, %v2721
      %v2795 = vadd.f32 %v2635, %v2790
      %s2796 = scalar_lea.vmem %s6, 32
      %v2797 = vld [vmem:[%s2796] sm:$0xff]
      %2798 = vrot.lane.b32.xlu0 %v2167, 109
      %v2799 = vpop.permute.xlu0 %2798
      %2800 = vrot.lane.b32.xlu0 %v2168, 109
      %v2801 = vpop.permute.xlu0 %2800
      %2802 = vrot.lane.b32.xlu0 %v2169, 109
      %v2803 = vpop.permute.xlu0 %2802
      %v2804 = vsel %vm1252, %v2799, %v2801
      %v2805 = vsel %vm1252, %v2801, %v2803
      %v2810 = vsel %vm2187, %v2797, 0
      %2812 = vmatprep.subr.mxu0 %v2805
      %2813 = vmatpush1.msra.mxu0 %v2804
      %2814 = vmatprep.subr.mxu0 0.0
      %2815 = vmatpush1.msra.mxu0 0.0
      %2816 = vmatprep.subr.mxu0 0.0
      %2817 = vmatpush1.msra.mxu0 0.0
      %2818 = vmatprep.subr.mxu0 0.0
      %2819 = vmatpush1.msra.mxu0 0.0
      %2820 = vmatprep.subr.mxu0 0.0
      %2821 = vmatpush1.msra.mxu0 0.0
      %2822 = vmatprep.subr.mxu0 0.0
      %2823 = vmatpush1.msra.mxu0 0.0
      %2824 = vmatprep.subr.mxu0 0.0
      %2825 = vmatpush1.msra.mxu0 0.0
      %2826 = vmatprep.subr.mxu0 0.0
      %2827 = vmatpush1.msra.mxu0 0.0
      %2828 = vmatprep.subr.mxu0 0.0
      %2829 = vmatpush1.msra.mxu0 0.0
      %2830 = vmatprep.subr.mxu0 0.0
      %2831 = vmatpush1.msra.mxu0 0.0
      %2832 = vmatprep.subr.mxu0 0.0
      %2833 = vmatpush1.msra.mxu0 0.0
      %2834 = vmatprep.subr.mxu0 0.0
      %2835 = vmatpush1.msra.mxu0 0.0
      %2836 = vmatprep.subr.mxu0 0.0
      %2837 = vmatpush1.msra.mxu0 0.0
      %2838 = vmatprep.subr.mxu0 0.0
      %2839 = vmatpush1.msra.mxu0 0.0
      %2840 = vmatprep.subr.mxu0 0.0
      %2841 = vmatpush1.msra.mxu0 0.0
      %2842 = vmatprep.subr.mxu0 0.0
      %2843 = vmatpush1.msra.mxu0 0.0
      %2844 = vmatprep.subr.mxu0 0.0
      %2845 = vmatpush1.msra.mxu0 0.0
      %2846 = vmatprep.subr.mxu0 0.0
      %2847 = vmatpush1.msra.mxu0 0.0
      %2848 = vmatprep.subr.mxu0 0.0
      %2849 = vmatpush1.msra.mxu0 0.0
      %2850 = vmatprep.subr.mxu0 0.0
      %2851 = vmatpush1.msra.mxu0 0.0
      %2852 = vmatprep.subr.mxu0 0.0
      %2853 = vmatpush1.msra.mxu0 0.0
      %2854 = vmatprep.subr.mxu0 0.0
      %2855 = vmatpush1.msra.mxu0 0.0
      %2856 = vmatprep.subr.mxu0 0.0
      %2857 = vmatpush1.msra.mxu0 0.0
      %2858 = vmatprep.subr.mxu0 0.0
      %2859 = vmatpush1.msra.mxu0 0.0
      %2860 = vmatprep.subr.mxu0 0.0
      %2861 = vmatpush1.msra.mxu0 0.0
      %2862 = vmatprep.subr.mxu0 0.0
      %2863 = vmatpush1.msra.mxu0 0.0
      %2864 = vmatprep.subr.mxu0 0.0
      %2865 = vmatpush1.msra.mxu0 0.0
      %2866 = vmatprep.subr.mxu0 0.0
      %2867 = vmatpush1.msra.mxu0 0.0
      %2868 = vmatprep.subr.mxu0 0.0
      %2869 = vmatpush1.msra.mxu0 0.0
      %2870 = vmatprep.subr.mxu0 0.0
      %2871 = vmatpush1.msra.mxu0 0.0
      %2872 = vmatprep.subr.mxu0 0.0
      %2873 = vmatpush1.msra.mxu0 0.0
      %2874 = vmatprep.subr.mxu0 0.0
      %2875 = vmatpush1.msra.mxu0 0.0
      %2876 = vmatprep.mubr.f32.mxu0 0.0
      %2877 = vmatmul.mubr.f32.gmra.mrb[0].mxu0 %v2810
      %v2878 = vpop.f32.mrb[0].mxu0
      %v2879 = vadd.f32 0.0, %v2878
      %v2880 = vpop.f32.mrb[0].mxu0
      %v2881 = vadd.f32 0.0, %v2880
      %2882 = vdwg.mxu0
      %2883 = vmatprep.subr.mxu0 0.0
      %2884 = vmatpush1.msra.mxu0 %v2803
      %2885 = vmatprep.subr.mxu0 0.0
      %2886 = vmatpush1.msra.mxu0 0.0
      %2887 = vmatprep.subr.mxu0 0.0
      %2888 = vmatpush1.msra.mxu0 0.0
      %2889 = vmatprep.subr.mxu0 0.0
      %2890 = vmatpush1.msra.mxu0 0.0
      %2891 = vmatprep.subr.mxu0 0.0
      %2892 = vmatpush1.msra.mxu0 0.0
      %2893 = vmatprep.subr.mxu0 0.0
      %2894 = vmatpush1.msra.mxu0 0.0
      %2895 = vmatprep.subr.mxu0 0.0
      %2896 = vmatpush1.msra.mxu0 0.0
      %2897 = vmatprep.subr.mxu0 0.0
      %2898 = vmatpush1.msra.mxu0 0.0
      %2899 = vmatprep.subr.mxu0 0.0
      %2900 = vmatpush1.msra.mxu0 0.0
      %2901 = vmatprep.subr.mxu0 0.0
      %2902 = vmatpush1.msra.mxu0 0.0
      %2903 = vmatprep.subr.mxu0 0.0
      %2904 = vmatpush1.msra.mxu0 0.0
      %2905 = vmatprep.subr.mxu0 0.0
      %2906 = vmatpush1.msra.mxu0 0.0
      %2907 = vmatprep.subr.mxu0 0.0
      %2908 = vmatpush1.msra.mxu0 0.0
      %2909 = vmatprep.subr.mxu0 0.0
      %2910 = vmatpush1.msra.mxu0 0.0
      %2911 = vmatprep.subr.mxu0 0.0
      %2912 = vmatpush1.msra.mxu0 0.0
      %2913 = vmatprep.subr.mxu0 0.0
      %2914 = vmatpush1.msra.mxu0 0.0
      %2915 = vmatprep.subr.mxu0 0.0
      %2916 = vmatpush1.msra.mxu0 0.0
      %2917 = vmatprep.subr.mxu0 0.0
      %2918 = vmatpush1.msra.mxu0 0.0
      %2919 = vmatprep.subr.mxu0 0.0
      %2920 = vmatpush1.msra.mxu0 0.0
      %2921 = vmatprep.subr.mxu0 0.0
      %2922 = vmatpush1.msra.mxu0 0.0
      %2923 = vmatprep.subr.mxu0 0.0
      %2924 = vmatpush1.msra.mxu0 0.0
      %2925 = vmatprep.subr.mxu0 0.0
      %2926 = vmatpush1.msra.mxu0 0.0
      %2927 = vmatprep.subr.mxu0 0.0
      %2928 = vmatpush1.msra.mxu0 0.0
      %2929 = vmatprep.subr.mxu0 0.0
      %2930 = vmatpush1.msra.mxu0 0.0
      %2931 = vmatprep.subr.mxu0 0.0
      %2932 = vmatpush1.msra.mxu0 0.0
      %2933 = vmatprep.subr.mxu0 0.0
      %2934 = vmatpush1.msra.mxu0 0.0
      %2935 = vmatprep.subr.mxu0 0.0
      %2936 = vmatpush1.msra.mxu0 0.0
      %2937 = vmatprep.subr.mxu0 0.0
      %2938 = vmatpush1.msra.mxu0 0.0
      %2939 = vmatprep.subr.mxu0 0.0
      %2940 = vmatpush1.msra.mxu0 0.0
      %2941 = vmatprep.subr.mxu0 0.0
      %2942 = vmatpush1.msra.mxu0 0.0
      %2943 = vmatprep.subr.mxu0 0.0
      %2944 = vmatpush1.msra.mxu0 0.0
      %2945 = vmatprep.subr.mxu0 0.0
      %2946 = vmatpush1.msra.mxu0 0.0
      %2947 = vmatprep.mubr.f32.mxu0 0.0
      %2948 = vmatmul.mubr.f32.gmra.mrb[0].mxu0 %v2810
      %v2949 = vpop.f32.mrb[0].mxu0
      %v2950 = vadd.f32 0.0, %v2949
      %v2951 = vpop.f32.mrb[0].mxu0
      %2952 = vdwg.mxu0
      %v2953 = vadd.f32 %v2793, %v2879
      %v2954 = vadd.f32 %v2794, %v2881
      %v2955 = vadd.f32 %v2795, %v2950
      %s2956 = scalar_lea.vmem %s6, 40
      %v2957 = vld [vmem:[%s2956] sm:$0xff]
      %2958 = vrot.lane.b32.xlu0 %v2167, 108
      %v2959 = vpop.permute.xlu0 %2958
      %2960 = vrot.lane.b32.xlu0 %v2168, 108
      %v2961 = vpop.permute.xlu0 %2960
      %2962 = vrot.lane.b32.xlu0 %v2169, 108
      %v2963 = vpop.permute.xlu0 %2962
      %v2964 = vsel %vm1427, %v2959, %v2961
      %v2965 = vsel %vm1427, %v2961, %v2963
      %v2970 = vsel %vm2187, %v2957, 0
      %2972 = vmatprep.subr.mxu0 %v2965
      %2973 = vmatpush1.msra.mxu0 %v2964
      %2974 = vmatprep.subr.mxu0 0.0
      %2975 = vmatpush1.msra.mxu0 0.0
      %2976 = vmatprep.subr.mxu0 0.0
      %2977 = vmatpush1.msra.mxu0 0.0
      %2978 = vmatprep.subr.mxu0 0.0
      %2979 = vmatpush1.msra.mxu0 0.0
      %2980 = vmatprep.subr.mxu0 0.0
      %2981 = vmatpush1.msra.mxu0 0.0
      %2982 = vmatprep.subr.mxu0 0.0
      %2983 = vmatpush1.msra.mxu0 0.0
      %2984 = vmatprep.subr.mxu0 0.0
      %2985 = vmatpush1.msra.mxu0 0.0
      %2986 = vmatprep.subr.mxu0 0.0
      %2987 = vmatpush1.msra.mxu0 0.0
      %2988 = vmatprep.subr.mxu0 0.0
      %2989 = vmatpush1.msra.mxu0 0.0
      %2990 = vmatprep.subr.mxu0 0.0
      %2991 = vmatpush1.msra.mxu0 0.0
      %2992 = vmatprep.subr.mxu0 0.0
      %2993 = vmatpush1.msra.mxu0 0.0
      %2994 = vmatprep.subr.mxu0 0.0
      %2995 = vmatpush1.msra.mxu0 0.0
      %2996 = vmatprep.subr.mxu0 0.0
      %2997 = vmatpush1.msra.mxu0 0.0
      %2998 = vmatprep.subr.mxu0 0.0
      %2999 = vmatpush1.msra.mxu0 0.0
      %3000 = vmatprep.subr.mxu0 0.0
      %3001 = vmatpush1.msra.mxu0 0.0
      %3002 = vmatprep.subr.mxu0 0.0
      %3003 = vmatpush1.msra.mxu0 0.0
      %3004 = vmatprep.subr.mxu0 0.0
      %3005 = vmatpush1.msra.mxu0 0.0
      %3006 = vmatprep.subr.mxu0 0.0
      %3007 = vmatpush1.msra.mxu0 0.0
      %3008 = vmatprep.subr.mxu0 0.0
      %3009 = vmatpush1.msra.mxu0 0.0
      %3010 = vmatprep.subr.mxu0 0.0
      %3011 = vmatpush1.msra.mxu0 0.0
      %3012 = vmatprep.subr.mxu0 0.0
      %3013 = vmatpush1.msra.mxu0 0.0
      %3014 = vmatprep.subr.mxu0 0.0
      %3015 = vmatpush1.msra.mxu0 0.0
      %3016 = vmatprep.subr.mxu0 0.0
      %3017 = vmatpush1.msra.mxu0 0.0
      %3018 = vmatprep.subr.mxu0 0.0
      %3019 = vmatpush1.msra.mxu0 0.0
      %3020 = vmatprep.subr.mxu0 0.0
      %3021 = vmatpush1.msra.mxu0 0.0
      %3022 = vmatprep.subr.mxu0 0.0
      %3023 = vmatpush1.msra.mxu0 0.0
      %3024 = vmatprep.subr.mxu0 0.0
      %3025 = vmatpush1.msra.mxu0 0.0
      %3026 = vmatprep.subr.mxu0 0.0
      %3027 = vmatpush1.msra.mxu0 0.0
      %3028 = vmatprep.subr.mxu0 0.0
      %3029 = vmatpush1.msra.mxu0 0.0
      %3030 = vmatprep.subr.mxu0 0.0
      %3031 = vmatpush1.msra.mxu0 0.0
      %3032 = vmatprep.subr.mxu0 0.0
      %3033 = vmatpush1.msra.mxu0 0.0
      %3034 = vmatprep.subr.mxu0 0.0
      %3035 = vmatpush1.msra.mxu0 0.0
      %3036 = vmatprep.mubr.f32.mxu0 0.0
      %3037 = vmatmul.mubr.f32.gmra.mrb[0].mxu0 %v2970
      %v3038 = vpop.f32.mrb[0].mxu0
      %v3039 = vadd.f32 0.0, %v3038
      %v3040 = vpop.f32.mrb[0].mxu0
      %v3041 = vadd.f32 0.0, %v3040
      %3042 = vdwg.mxu0
      %3043 = vmatprep.subr.mxu0 0.0
      %3044 = vmatpush1.msra.mxu0 %v2963
      %3045 = vmatprep.subr.mxu0 0.0
      %3046 = vmatpush1.msra.mxu0 0.0
      %3047 = vmatprep.subr.mxu0 0.0
      %3048 = vmatpush1.msra.mxu0 0.0
      %3049 = vmatprep.subr.mxu0 0.0
      %3050 = vmatpush1.msra.mxu0 0.0
      %3051 = vmatprep.subr.mxu0 0.0
      %3052 = vmatpush1.msra.mxu0 0.0
      %3053 = vmatprep.subr.mxu0 0.0
      %3054 = vmatpush1.msra.mxu0 0.0
      %3055 = vmatprep.subr.mxu0 0.0
      %3056 = vmatpush1.msra.mxu0 0.0
      %3057 = vmatprep.subr.mxu0 0.0
      %3058 = vmatpush1.msra.mxu0 0.0
      %3059 = vmatprep.subr.mxu0 0.0
      %3060 = vmatpush1.msra.mxu0 0.0
      %3061 = vmatprep.subr.mxu0 0.0
      %3062 = vmatpush1.msra.mxu0 0.0
      %3063 = vmatprep.subr.mxu0 0.0
      %3064 = vmatpush1.msra.mxu0 0.0
      %3065 = vmatprep.subr.mxu0 0.0
      %3066 = vmatpush1.msra.mxu0 0.0
      %3067 = vmatprep.subr.mxu0 0.0
      %3068 = vmatpush1.msra.mxu0 0.0
      %3069 = vmatprep.subr.mxu0 0.0
      %3070 = vmatpush1.msra.mxu0 0.0
      %3071 = vmatprep.subr.mxu0 0.0
      %3072 = vmatpush1.msra.mxu0 0.0
      %3073 = vmatprep.subr.mxu0 0.0
      %3074 = vmatpush1.msra.mxu0 0.0
      %3075 = vmatprep.subr.mxu0 0.0
      %3076 = vmatpush1.msra.mxu0 0.0
      %3077 = vmatprep.subr.mxu0 0.0
      %3078 = vmatpush1.msra.mxu0 0.0
      %3079 = vmatprep.subr.mxu0 0.0
      %3080 = vmatpush1.msra.mxu0 0.0
      %3081 = vmatprep.subr.mxu0 0.0
      %3082 = vmatpush1.msra.mxu0 0.0
      %3083 = vmatprep.subr.mxu0 0.0
      %3084 = vmatpush1.msra.mxu0 0.0
      %3085 = vmatprep.subr.mxu0 0.0
      %3086 = vmatpush1.msra.mxu0 0.0
      %3087 = vmatprep.subr.mxu0 0.0
      %3088 = vmatpush1.msra.mxu0 0.0
      %3089 = vmatprep.subr.mxu0 0.0
      %3090 = vmatpush1.msra.mxu0 0.0
      %3091 = vmatprep.subr.mxu0 0.0
      %3092 = vmatpush1.msra.mxu0 0.0
      %3093 = vmatprep.subr.mxu0 0.0
      %3094 = vmatpush1.msra.mxu0 0.0
      %3095 = vmatprep.subr.mxu0 0.0
      %3096 = vmatpush1.msra.mxu0 0.0
      %3097 = vmatprep.subr.mxu0 0.0
      %3098 = vmatpush1.msra.mxu0 0.0
      %3099 = vmatprep.subr.mxu0 0.0
      %3100 = vmatpush1.msra.mxu0 0.0
      %3101 = vmatprep.subr.mxu0 0.0
      %3102 = vmatpush1.msra.mxu0 0.0
      %3103 = vmatprep.subr.mxu0 0.0
      %3104 = vmatpush1.msra.mxu0 0.0
      %3105 = vmatprep.subr.mxu0 0.0
      %3106 = vmatpush1.msra.mxu0 0.0
      %3107 = vmatprep.mubr.f32.mxu0 0.0
      %3108 = vmatmul.mubr.f32.gmra.mrb[0].mxu0 %v2970
      %v3109 = vpop.f32.mrb[0].mxu0
      %v3110 = vadd.f32 0.0, %v3109
      %v3111 = vpop.f32.mrb[0].mxu0
      %3112 = vdwg.mxu0
      %v3113 = vadd.f32 %v2953, %v3039
      %v3114 = vadd.f32 %v2954, %v3041
      %v3115 = vadd.f32 %v2955, %v3110
      %s3116 = scalar_lea.vmem %s6, 48
      %v3117 = vld [vmem:[%s3116] sm:$0xff]
      %3118 = vrot.lane.b32.xlu0 %v2167, 92
      %v3119 = vpop.permute.xlu0 %3118
      %3120 = vrot.lane.b32.xlu0 %v2168, 92
      %v3121 = vpop.permute.xlu0 %3120
      %3122 = vrot.lane.b32.xlu0 %v2169, 92
      %v3123 = vpop.permute.xlu0 %3122
      %v3124 = vsel %vm1602, %v3119, %v3121
      %v3125 = vsel %vm1602, %v3121, %v3123
      %v3130 = vsel %vm2187, %v3117, 0
      %3132 = vmatprep.subr.mxu0 %v3125
      %3133 = vmatpush1.msra.mxu0 %v3124
      %3134 = vmatprep.subr.mxu0 0.0
      %3135 = vmatpush1.msra.mxu0 0.0
      %3136 = vmatprep.subr.mxu0 0.0
      %3137 = vmatpush1.msra.mxu0 0.0
      %3138 = vmatprep.subr.mxu0 0.0
      %3139 = vmatpush1.msra.mxu0 0.0
      %3140 = vmatprep.subr.mxu0 0.0
      %3141 = vmatpush1.msra.mxu0 0.0
      %3142 = vmatprep.subr.mxu0 0.0
      %3143 = vmatpush1.msra.mxu0 0.0
      %3144 = vmatprep.subr.mxu0 0.0
      %3145 = vmatpush1.msra.mxu0 0.0
      %3146 = vmatprep.subr.mxu0 0.0
      %3147 = vmatpush1.msra.mxu0 0.0
      %3148 = vmatprep.subr.mxu0 0.0
      %3149 = vmatpush1.msra.mxu0 0.0
      %3150 = vmatprep.subr.mxu0 0.0
      %3151 = vmatpush1.msra.mxu0 0.0
      %3152 = vmatprep.subr.mxu0 0.0
      %3153 = vmatpush1.msra.mxu0 0.0
      %3154 = vmatprep.subr.mxu0 0.0
      %3155 = vmatpush1.msra.mxu0 0.0
      %3156 = vmatprep.subr.mxu0 0.0
      %3157 = vmatpush1.msra.mxu0 0.0
      %3158 = vmatprep.subr.mxu0 0.0
      %3159 = vmatpush1.msra.mxu0 0.0
      %3160 = vmatprep.subr.mxu0 0.0
      %3161 = vmatpush1.msra.mxu0 0.0
      %3162 = vmatprep.subr.mxu0 0.0
      %3163 = vmatpush1.msra.mxu0 0.0
      %3164 = vmatprep.subr.mxu0 0.0
      %3165 = vmatpush1.msra.mxu0 0.0
      %3166 = vmatprep.subr.mxu0 0.0
      %3167 = vmatpush1.msra.mxu0 0.0
      %3168 = vmatprep.subr.mxu0 0.0
      %3169 = vmatpush1.msra.mxu0 0.0
      %3170 = vmatprep.subr.mxu0 0.0
      %3171 = vmatpush1.msra.mxu0 0.0
      %3172 = vmatprep.subr.mxu0 0.0
      %3173 = vmatpush1.msra.mxu0 0.0
      %3174 = vmatprep.subr.mxu0 0.0
      %3175 = vmatpush1.msra.mxu0 0.0
      %3176 = vmatprep.subr.mxu0 0.0
      %3177 = vmatpush1.msra.mxu0 0.0
      %3178 = vmatprep.subr.mxu0 0.0
      %3179 = vmatpush1.msra.mxu0 0.0
      %3180 = vmatprep.subr.mxu0 0.0
      %3181 = vmatpush1.msra.mxu0 0.0
      %3182 = vmatprep.subr.mxu0 0.0
      %3183 = vmatpush1.msra.mxu0 0.0
      %3184 = vmatprep.subr.mxu0 0.0
      %3185 = vmatpush1.msra.mxu0 0.0
      %3186 = vmatprep.subr.mxu0 0.0
      %3187 = vmatpush1.msra.mxu0 0.0
      %3188 = vmatprep.subr.mxu0 0.0
      %3189 = vmatpush1.msra.mxu0 0.0
      %3190 = vmatprep.subr.mxu0 0.0
      %3191 = vmatpush1.msra.mxu0 0.0
      %3192 = vmatprep.subr.mxu0 0.0
      %3193 = vmatpush1.msra.mxu0 0.0
      %3194 = vmatprep.subr.mxu0 0.0
      %3195 = vmatpush1.msra.mxu0 0.0
      %3196 = vmatprep.mubr.f32.mxu0 0.0
      %3197 = vmatmul.mubr.f32.gmra.mrb[0].mxu0 %v3130
      %v3198 = vpop.f32.mrb[0].mxu0
      %v3199 = vadd.f32 0.0, %v3198
      %v3200 = vpop.f32.mrb[0].mxu0
      %v3201 = vadd.f32 0.0, %v3200
      %3202 = vdwg.mxu0
      %3203 = vmatprep.subr.mxu0 0.0
      %3204 = vmatpush1.msra.mxu0 %v3123
      %3205 = vmatprep.subr.mxu0 0.0
      %3206 = vmatpush1.msra.mxu0 0.0
      %3207 = vmatprep.subr.mxu0 0.0
      %3208 = vmatpush1.msra.mxu0 0.0
      %3209 = vmatprep.subr.mxu0 0.0
      %3210 = vmatpush1.msra.mxu0 0.0
      %3211 = vmatprep.subr.mxu0 0.0
      %3212 = vmatpush1.msra.mxu0 0.0
      %3213 = vmatprep.subr.mxu0 0.0
      %3214 = vmatpush1.msra.mxu0 0.0
      %3215 = vmatprep.subr.mxu0 0.0
      %3216 = vmatpush1.msra.mxu0 0.0
      %3217 = vmatprep.subr.mxu0 0.0
      %3218 = vmatpush1.msra.mxu0 0.0
      %3219 = vmatprep.subr.mxu0 0.0
      %3220 = vmatpush1.msra.mxu0 0.0
      %3221 = vmatprep.subr.mxu0 0.0
      %3222 = vmatpush1.msra.mxu0 0.0
      %3223 = vmatprep.subr.mxu0 0.0
      %3224 = vmatpush1.msra.mxu0 0.0
      %3225 = vmatprep.subr.mxu0 0.0
      %3226 = vmatpush1.msra.mxu0 0.0
      %3227 = vmatprep.subr.mxu0 0.0
      %3228 = vmatpush1.msra.mxu0 0.0
      %3229 = vmatprep.subr.mxu0 0.0
      %3230 = vmatpush1.msra.mxu0 0.0
      %3231 = vmatprep.subr.mxu0 0.0
      %3232 = vmatpush1.msra.mxu0 0.0
      %3233 = vmatprep.subr.mxu0 0.0
      %3234 = vmatpush1.msra.mxu0 0.0
      %3235 = vmatprep.subr.mxu0 0.0
      %3236 = vmatpush1.msra.mxu0 0.0
      %3237 = vmatprep.subr.mxu0 0.0
      %3238 = vmatpush1.msra.mxu0 0.0
      %3239 = vmatprep.subr.mxu0 0.0
      %3240 = vmatpush1.msra.mxu0 0.0
      %3241 = vmatprep.subr.mxu0 0.0
      %3242 = vmatpush1.msra.mxu0 0.0
      %3243 = vmatprep.subr.mxu0 0.0
      %3244 = vmatpush1.msra.mxu0 0.0
      %3245 = vmatprep.subr.mxu0 0.0
      %3246 = vmatpush1.msra.mxu0 0.0
      %3247 = vmatprep.subr.mxu0 0.0
      %3248 = vmatpush1.msra.mxu0 0.0
      %3249 = vmatprep.subr.mxu0 0.0
      %3250 = vmatpush1.msra.mxu0 0.0
      %3251 = vmatprep.subr.mxu0 0.0
      %3252 = vmatpush1.msra.mxu0 0.0
      %3253 = vmatprep.subr.mxu0 0.0
      %3254 = vmatpush1.msra.mxu0 0.0
      %3255 = vmatprep.subr.mxu0 0.0
      %3256 = vmatpush1.msra.mxu0 0.0
      %3257 = vmatprep.subr.mxu0 0.0
      %3258 = vmatpush1.msra.mxu0 0.0
      %3259 = vmatprep.subr.mxu0 0.0
      %3260 = vmatpush1.msra.mxu0 0.0
      %3261 = vmatprep.subr.mxu0 0.0
      %3262 = vmatpush1.msra.mxu0 0.0
      %3263 = vmatprep.subr.mxu0 0.0
      %3264 = vmatpush1.msra.mxu0 0.0
      %3265 = vmatprep.subr.mxu0 0.0
      %3266 = vmatpush1.msra.mxu0 0.0
      %3267 = vmatprep.mubr.f32.mxu0 0.0
      %3268 = vmatmul.mubr.f32.gmra.mrb[0].mxu0 %v3130
      %v3269 = vpop.f32.mrb[0].mxu0
      %v3270 = vadd.f32 0.0, %v3269
      %v3271 = vpop.f32.mrb[0].mxu0
      %3272 = vdwg.mxu0
      %v3273 = vadd.f32 %v3113, %v3199
      %v3274 = vadd.f32 %v3114, %v3201
      %v3275 = vadd.f32 %v3115, %v3270
      %s3276 = scalar_lea.vmem %s6, 56
      %v3277 = vld [vmem:[%s3276] sm:$0xff]
      %3278 = vrot.lane.b32.xlu0 %v2167, 91
      %v3279 = vpop.permute.xlu0 %3278
      %3280 = vrot.lane.b32.xlu0 %v2168, 91
      %v3281 = vpop.permute.xlu0 %3280
      %3282 = vrot.lane.b32.xlu0 %v2169, 91
      %v3283 = vpop.permute.xlu0 %3282
      %v3284 = vsel %vm1777, %v3279, %v3281
      %v3285 = vsel %vm1777, %v3281, %v3283
      %v3290 = vsel %vm2187, %v3277, 0
      %3292 = vmatprep.subr.mxu0 %v3285
      %3293 = vmatpush1.msra.mxu0 %v3284
      %3294 = vmatprep.subr.mxu0 0.0
      %3295 = vmatpush1.msra.mxu0 0.0
      %3296 = vmatprep.subr.mxu0 0.0
      %3297 = vmatpush1.msra.mxu0 0.0
      %3298 = vmatprep.subr.mxu0 0.0
      %3299 = vmatpush1.msra.mxu0 0.0
      %3300 = vmatprep.subr.mxu0 0.0
      %3301 = vmatpush1.msra.mxu0 0.0
      %3302 = vmatprep.subr.mxu0 0.0
      %3303 = vmatpush1.msra.mxu0 0.0
      %3304 = vmatprep.subr.mxu0 0.0
      %3305 = vmatpush1.msra.mxu0 0.0
      %3306 = vmatprep.subr.mxu0 0.0
      %3307 = vmatpush1.msra.mxu0 0.0
      %3308 = vmatprep.subr.mxu0 0.0
      %3309 = vmatpush1.msra.mxu0 0.0
      %3310 = vmatprep.subr.mxu0 0.0
      %3311 = vmatpush1.msra.mxu0 0.0
      %3312 = vmatprep.subr.mxu0 0.0
      %3313 = vmatpush1.msra.mxu0 0.0
      %3314 = vmatprep.subr.mxu0 0.0
      %3315 = vmatpush1.msra.mxu0 0.0
      %3316 = vmatprep.subr.mxu0 0.0
      %3317 = vmatpush1.msra.mxu0 0.0
      %3318 = vmatprep.subr.mxu0 0.0
      %3319 = vmatpush1.msra.mxu0 0.0
      %3320 = vmatprep.subr.mxu0 0.0
      %3321 = vmatpush1.msra.mxu0 0.0
      %3322 = vmatprep.subr.mxu0 0.0
      %3323 = vmatpush1.msra.mxu0 0.0
      %3324 = vmatprep.subr.mxu0 0.0
      %3325 = vmatpush1.msra.mxu0 0.0
      %3326 = vmatprep.subr.mxu0 0.0
      %3327 = vmatpush1.msra.mxu0 0.0
      %3328 = vmatprep.subr.mxu0 0.0
      %3329 = vmatpush1.msra.mxu0 0.0
      %3330 = vmatprep.subr.mxu0 0.0
      %3331 = vmatpush1.msra.mxu0 0.0
      %3332 = vmatprep.subr.mxu0 0.0
      %3333 = vmatpush1.msra.mxu0 0.0
      %3334 = vmatprep.subr.mxu0 0.0
      %3335 = vmatpush1.msra.mxu0 0.0
      %3336 = vmatprep.subr.mxu0 0.0
      %3337 = vmatpush1.msra.mxu0 0.0
      %3338 = vmatprep.subr.mxu0 0.0
      %3339 = vmatpush1.msra.mxu0 0.0
      %3340 = vmatprep.subr.mxu0 0.0
      %3341 = vmatpush1.msra.mxu0 0.0
      %3342 = vmatprep.subr.mxu0 0.0
      %3343 = vmatpush1.msra.mxu0 0.0
      %3344 = vmatprep.subr.mxu0 0.0
      %3345 = vmatpush1.msra.mxu0 0.0
      %3346 = vmatprep.subr.mxu0 0.0
      %3347 = vmatpush1.msra.mxu0 0.0
      %3348 = vmatprep.subr.mxu0 0.0
      %3349 = vmatpush1.msra.mxu0 0.0
      %3350 = vmatprep.subr.mxu0 0.0
      %3351 = vmatpush1.msra.mxu0 0.0
      %3352 = vmatprep.subr.mxu0 0.0
      %3353 = vmatpush1.msra.mxu0 0.0
      %3354 = vmatprep.subr.mxu0 0.0
      %3355 = vmatpush1.msra.mxu0 0.0
      %3356 = vmatprep.mubr.f32.mxu0 0.0
      %3357 = vmatmul.mubr.f32.gmra.mrb[0].mxu0 %v3290
      %v3358 = vpop.f32.mrb[0].mxu0
      %v3359 = vadd.f32 0.0, %v3358
      %v3360 = vpop.f32.mrb[0].mxu0
      %v3361 = vadd.f32 0.0, %v3360
      %3362 = vdwg.mxu0
      %3363 = vmatprep.subr.mxu0 0.0
      %3364 = vmatpush1.msra.mxu0 %v3283
      %3365 = vmatprep.subr.mxu0 0.0
      %3366 = vmatpush1.msra.mxu0 0.0
      %3367 = vmatprep.subr.mxu0 0.0
      %3368 = vmatpush1.msra.mxu0 0.0
      %3369 = vmatprep.subr.mxu0 0.0
      %3370 = vmatpush1.msra.mxu0 0.0
      %3371 = vmatprep.subr.mxu0 0.0
      %3372 = vmatpush1.msra.mxu0 0.0
      %3373 = vmatprep.subr.mxu0 0.0
      %3374 = vmatpush1.msra.mxu0 0.0
      %3375 = vmatprep.subr.mxu0 0.0
      %3376 = vmatpush1.msra.mxu0 0.0
      %3377 = vmatprep.subr.mxu0 0.0
      %3378 = vmatpush1.msra.mxu0 0.0
      %3379 = vmatprep.subr.mxu0 0.0
      %3380 = vmatpush1.msra.mxu0 0.0
      %3381 = vmatprep.subr.mxu0 0.0
      %3382 = vmatpush1.msra.mxu0 0.0
      %3383 = vmatprep.subr.mxu0 0.0
      %3384 = vmatpush1.msra.mxu0 0.0
      %3385 = vmatprep.subr.mxu0 0.0
      %3386 = vmatpush1.msra.mxu0 0.0
      %3387 = vmatprep.subr.mxu0 0.0
      %3388 = vmatpush1.msra.mxu0 0.0
      %3389 = vmatprep.subr.mxu0 0.0
      %3390 = vmatpush1.msra.mxu0 0.0
      %3391 = vmatprep.subr.mxu0 0.0
      %3392 = vmatpush1.msra.mxu0 0.0
      %3393 = vmatprep.subr.mxu0 0.0
      %3394 = vmatpush1.msra.mxu0 0.0
      %3395 = vmatprep.subr.mxu0 0.0
      %3396 = vmatpush1.msra.mxu0 0.0
      %3397 = vmatprep.subr.mxu0 0.0
      %3398 = vmatpush1.msra.mxu0 0.0
      %3399 = vmatprep.subr.mxu0 0.0
      %3400 = vmatpush1.msra.mxu0 0.0
      %3401 = vmatprep.subr.mxu0 0.0
      %3402 = vmatpush1.msra.mxu0 0.0
      %3403 = vmatprep.subr.mxu0 0.0
      %3404 = vmatpush1.msra.mxu0 0.0
      %3405 = vmatprep.subr.mxu0 0.0
      %3406 = vmatpush1.msra.mxu0 0.0
      %3407 = vmatprep.subr.mxu0 0.0
      %3408 = vmatpush1.msra.mxu0 0.0
      %3409 = vmatprep.subr.mxu0 0.0
      %3410 = vmatpush1.msra.mxu0 0.0
      %3411 = vmatprep.subr.mxu0 0.0
      %3412 = vmatpush1.msra.mxu0 0.0
      %3413 = vmatprep.subr.mxu0 0.0
      %3414 = vmatpush1.msra.mxu0 0.0
      %3415 = vmatprep.subr.mxu0 0.0
      %3416 = vmatpush1.msra.mxu0 0.0
      %3417 = vmatprep.subr.mxu0 0.0
      %3418 = vmatpush1.msra.mxu0 0.0
      %3419 = vmatprep.subr.mxu0 0.0
      %3420 = vmatpush1.msra.mxu0 0.0
      %3421 = vmatprep.subr.mxu0 0.0
      %3422 = vmatpush1.msra.mxu0 0.0
      %3423 = vmatprep.subr.mxu0 0.0
      %3424 = vmatpush1.msra.mxu0 0.0
      %3425 = vmatprep.subr.mxu0 0.0
      %3426 = vmatpush1.msra.mxu0 0.0
      %3427 = vmatprep.mubr.f32.mxu0 0.0
      %3428 = vmatmul.mubr.f32.gmra.mrb[0].mxu0 %v3290
      %v3429 = vpop.f32.mrb[0].mxu0
      %v3430 = vadd.f32 0.0, %v3429
      %v3431 = vpop.f32.mrb[0].mxu0
      %3432 = vdwg.mxu0
      %v3433 = vadd.f32 %v3273, %v3359
      %v3434 = vadd.f32 %v3274, %v3361
      %v3435 = vadd.f32 %v3275, %v3430
      %s3436 = scalar_lea.vmem %s6, 64
      %v3437 = vld [vmem:[%s3436] sm:$0xff]
      %3438 = vrot.lane.b32.xlu0 %v2167, 90
      %v3439 = vpop.permute.xlu0 %3438
      %3440 = vrot.lane.b32.xlu0 %v2168, 90
      %v3441 = vpop.permute.xlu0 %3440
      %3442 = vrot.lane.b32.xlu0 %v2169, 90
      %v3443 = vpop.permute.xlu0 %3442
      %v3444 = vsel %vm1952, %v3439, %v3441
      %v3445 = vsel %vm1952, %v3441, %v3443
      %v3450 = vsel %vm2187, %v3437, 0
      %3452 = vmatprep.subr.mxu0 %v3445
      %3453 = vmatpush1.msra.mxu0 %v3444
      %3454 = vmatprep.subr.mxu0 0.0
      %3455 = vmatpush1.msra.mxu0 0.0
      %3456 = vmatprep.subr.mxu0 0.0
      %3457 = vmatpush1.msra.mxu0 0.0
      %3458 = vmatprep.subr.mxu0 0.0
      %3459 = vmatpush1.msra.mxu0 0.0
      %3460 = vmatprep.subr.mxu0 0.0
      %3461 = vmatpush1.msra.mxu0 0.0
      %3462 = vmatprep.subr.mxu0 0.0
      %3463 = vmatpush1.msra.mxu0 0.0
      %3464 = vmatprep.subr.mxu0 0.0
      %3465 = vmatpush1.msra.mxu0 0.0
      %3466 = vmatprep.subr.mxu0 0.0
      %3467 = vmatpush1.msra.mxu0 0.0
      %3468 = vmatprep.subr.mxu0 0.0
      %3469 = vmatpush1.msra.mxu0 0.0
      %3470 = vmatprep.subr.mxu0 0.0
      %3471 = vmatpush1.msra.mxu0 0.0
      %3472 = vmatprep.subr.mxu0 0.0
      %3473 = vmatpush1.msra.mxu0 0.0
      %3474 = vmatprep.subr.mxu0 0.0
      %3475 = vmatpush1.msra.mxu0 0.0
      %3476 = vmatprep.subr.mxu0 0.0
      %3477 = vmatpush1.msra.mxu0 0.0
      %3478 = vmatprep.subr.mxu0 0.0
      %3479 = vmatpush1.msra.mxu0 0.0
      %3480 = vmatprep.subr.mxu0 0.0
      %3481 = vmatpush1.msra.mxu0 0.0
      %3482 = vmatprep.subr.mxu0 0.0
      %3483 = vmatpush1.msra.mxu0 0.0
      %3484 = vmatprep.subr.mxu0 0.0
      %3485 = vmatpush1.msra.mxu0 0.0
      %3486 = vmatprep.subr.mxu0 0.0
      %3487 = vmatpush1.msra.mxu0 0.0
      %3488 = vmatprep.subr.mxu0 0.0
      %3489 = vmatpush1.msra.mxu0 0.0
      %3490 = vmatprep.subr.mxu0 0.0
      %3491 = vmatpush1.msra.mxu0 0.0
      %3492 = vmatprep.subr.mxu0 0.0
      %3493 = vmatpush1.msra.mxu0 0.0
      %3494 = vmatprep.subr.mxu0 0.0
      %3495 = vmatpush1.msra.mxu0 0.0
      %3496 = vmatprep.subr.mxu0 0.0
      %3497 = vmatpush1.msra.mxu0 0.0
      %3498 = vmatprep.subr.mxu0 0.0
      %3499 = vmatpush1.msra.mxu0 0.0
      %3500 = vmatprep.subr.mxu0 0.0
      %3501 = vmatpush1.msra.mxu0 0.0
      %3502 = vmatprep.subr.mxu0 0.0
      %3503 = vmatpush1.msra.mxu0 0.0
      %3504 = vmatprep.subr.mxu0 0.0
      %3505 = vmatpush1.msra.mxu0 0.0
      %3506 = vmatprep.subr.mxu0 0.0
      %3507 = vmatpush1.msra.mxu0 0.0
      %3508 = vmatprep.subr.mxu0 0.0
      %3509 = vmatpush1.msra.mxu0 0.0
      %3510 = vmatprep.subr.mxu0 0.0
      %3511 = vmatpush1.msra.mxu0 0.0
      %3512 = vmatprep.subr.mxu0 0.0
      %3513 = vmatpush1.msra.mxu0 0.0
      %3514 = vmatprep.subr.mxu0 0.0
      %3515 = vmatpush1.msra.mxu0 0.0
      %3516 = vmatprep.mubr.f32.mxu0 0.0
      %3517 = vmatmul.mubr.f32.gmra.mrb[0].mxu0 %v3450
      %v3518 = vpop.f32.mrb[0].mxu0
      %v3519 = vadd.f32 0.0, %v3518
      %v3520 = vpop.f32.mrb[0].mxu0
      %v3521 = vadd.f32 0.0, %v3520
      %3522 = vdwg.mxu0
      %3523 = vmatprep.subr.mxu0 0.0
      %3524 = vmatpush1.msra.mxu0 %v3443
      %3525 = vmatprep.subr.mxu0 0.0
      %3526 = vmatpush1.msra.mxu0 0.0
      %3527 = vmatprep.subr.mxu0 0.0
      %3528 = vmatpush1.msra.mxu0 0.0
      %3529 = vmatprep.subr.mxu0 0.0
      %3530 = vmatpush1.msra.mxu0 0.0
      %3531 = vmatprep.subr.mxu0 0.0
      %3532 = vmatpush1.msra.mxu0 0.0
      %3533 = vmatprep.subr.mxu0 0.0
      %3534 = vmatpush1.msra.mxu0 0.0
      %3535 = vmatprep.subr.mxu0 0.0
      %3536 = vmatpush1.msra.mxu0 0.0
      %3537 = vmatprep.subr.mxu0 0.0
      %3538 = vmatpush1.msra.mxu0 0.0
      %3539 = vmatprep.subr.mxu0 0.0
      %3540 = vmatpush1.msra.mxu0 0.0
      %3541 = vmatprep.subr.mxu0 0.0
      %3542 = vmatpush1.msra.mxu0 0.0
      %3543 = vmatprep.subr.mxu0 0.0
      %3544 = vmatpush1.msra.mxu0 0.0
      %3545 = vmatprep.subr.mxu0 0.0
      %3546 = vmatpush1.msra.mxu0 0.0
      %3547 = vmatprep.subr.mxu0 0.0
      %3548 = vmatpush1.msra.mxu0 0.0
      %3549 = vmatprep.subr.mxu0 0.0
      %3550 = vmatpush1.msra.mxu0 0.0
      %3551 = vmatprep.subr.mxu0 0.0
      %3552 = vmatpush1.msra.mxu0 0.0
      %3553 = vmatprep.subr.mxu0 0.0
      %3554 = vmatpush1.msra.mxu0 0.0
      %3555 = vmatprep.subr.mxu0 0.0
      %3556 = vmatpush1.msra.mxu0 0.0
      %3557 = vmatprep.subr.mxu0 0.0
      %3558 = vmatpush1.msra.mxu0 0.0
      %3559 = vmatprep.subr.mxu0 0.0
      %3560 = vmatpush1.msra.mxu0 0.0
      %3561 = vmatprep.subr.mxu0 0.0
      %3562 = vmatpush1.msra.mxu0 0.0
      %3563 = vmatprep.subr.mxu0 0.0
      %3564 = vmatpush1.msra.mxu0 0.0
      %3565 = vmatprep.subr.mxu0 0.0
      %3566 = vmatpush1.msra.mxu0 0.0
      %3567 = vmatprep.subr.mxu0 0.0
      %3568 = vmatpush1.msra.mxu0 0.0
      %3569 = vmatprep.subr.mxu0 0.0
      %3570 = vmatpush1.msra.mxu0 0.0
      %3571 = vmatprep.subr.mxu0 0.0
      %3572 = vmatpush1.msra.mxu0 0.0
      %3573 = vmatprep.subr.mxu0 0.0
      %3574 = vmatpush1.msra.mxu0 0.0
      %3575 = vmatprep.subr.mxu0 0.0
      %3576 = vmatpush1.msra.mxu0 0.0
      %3577 = vmatprep.subr.mxu0 0.0
      %3578 = vmatpush1.msra.mxu0 0.0
      %3579 = vmatprep.subr.mxu0 0.0
      %3580 = vmatpush1.msra.mxu0 0.0
      %3581 = vmatprep.subr.mxu0 0.0
      %3582 = vmatpush1.msra.mxu0 0.0
      %3583 = vmatprep.subr.mxu0 0.0
      %3584 = vmatpush1.msra.mxu0 0.0
      %3585 = vmatprep.subr.mxu0 0.0
      %3586 = vmatpush1.msra.mxu0 0.0
      %3587 = vmatprep.mubr.f32.mxu0 0.0
      %3588 = vmatmul.mubr.f32.gmra.mrb[0].mxu0 %v3450
      %v3589 = vpop.f32.mrb[0].mxu0
      %v3590 = vadd.f32 0.0, %v3589
      %v3591 = vpop.f32.mrb[0].mxu0
      %3592 = vdwg.mxu0
      %v3593 = vadd.f32 %v3433, %v3519
      %v3594 = vadd.f32 %v3434, %v3521
      %v3595 = vadd.f32 %v3435, %v3590
      %v3596 = vld [vmem:[%s7] sm:$0xff]
      %3598 = vset.pattern.permute.xlu0 0
      %3599 = vperm.xlu0 %3598, %v3596
      %v3600 = vpop.permute.xlu0 %3599
      %v3602 = vadd.f32 %v3593, %v3600
      %v3603 = vadd.f32 %v3594, %v3600
      %v3604 = vadd.f32 %v3595, %v3600
      %v3605 = vmax.f32 %v3602, 0.0
      %v3606 = vmax.f32 %v3603, 0.0
      %v3607 = vmax.f32 %v3604, 0.0
      %3608 = vst [vmem:[%s322] sm:$0xff] %v3605
      %3609 = vst [vmem:[%s322 + $0x8] sm:$0xff] %v3606
      %vm3610 = vcmask 261120
      %3611 = vst.msk [vmem:[%s322 + $0x10] sm:$0xff] %vm3610, %v3607
      %p3612 = scmp.lt.s32.totalorder %s19, 1
      %s3613 = scalar_select %p3612, %s19, 1
      %s3614 = smul.addr %s3613, 3
      %s3615 = smul.addr %s3614, 8
      %s3616 = scalar_lea.vmem %s8, %s3615
      // Predicated region
      $region53: #{unet_up_forward.1} parent=51 // pred_check
        %p3617 = pneg %p215
      $region54: #{unet_up_forward.1} parent=51 // pred_check_branch
        %3619 = sbr.rel (%p3617) target = $region56
      $region55: #{unet_up_forward.1} parent=51 // pred_region
        _
      $region56: #{unet_up_forward.1} parent=51 // pred_fallthru
        _
    $region52: #{unet_up_forward.1} parent=5 // pred_fallthru
      _
    %p3620 = scmp.le.s32.totalorder 2, %s14
    // Predicated region
    $region57: #{unet_up_forward.1} parent=5 // pred_check
      %p3621 = pneg %p3620
    $region58: #{unet_up_forward.1} parent=5 // pred_check_branch
      %3623 = sbr.rel (%p3621) target = $region60
    $region59: #{unet_up_forward.1} parent=5 // pred_region
      %s3624 = ssub.s32 %s14, 2
      // Predicated region
      $region61: #{unet_up_forward.1} parent=59 // pred_check
        %p3625 = pneg %p221
      $region62: #{unet_up_forward.1} parent=59 // pred_check_branch
        %3627 = sbr.rel (%p3625) target = $region64
      $region63: #{unet_up_forward.1} parent=59 // pred_region
        %p3628 = scmp.lt.s32.totalorder %s20, 1
        %s3629 = scalar_select %p3628, %s20, 1
        %s3630 = smul.addr %s3629, 3
        %s3631 = smul.addr %s3630, 8
        %s3632 = scalar_lea.vmem %s8, %s3631
      $region64: #{unet_up_forward.1} parent=59 // pred_fallthru
        _
    $region60: #{unet_up_forward.1} parent=5 // pred_fallthru
      _
  $region6: #{unet_up_forward.1} parent=0 // loop_footer
    %s18 = sadd.s32 1, %s14
  $region7: #{unet_up_forward.1} parent=0 // loop_footer_branch
    %13 = sbr.rel target = $region3
  $region8: #{unet_up_forward.1} parent=0 // loop_exit
    _

</llo_original>
